<compile_context>
chip_gen: v7x
topology: tpu7x:2x2x1
jax: 0.10.0
libtpu: 0.0.40
codegen_flags: <defaults>
</compile_context>

<pallas_src>
import functools

import jax
import jax.numpy as jnp
from jax.experimental import pallas as pl
from jax.experimental.pallas import tpu as pltpu

_LANE = 128
_SUBLANE = 8


def _pad_to(n: int, m: int) -> int:
    return ((n + m - 1) // m) * m


def _fused_disc_kernel(x_ref, *refs, num_layers: int):
    """All 6 weight-normed linears fused; activations stay in VMEM/vregs."""
    out_ref = refs[-1]
    prm = refs[:-1]                      # (w, inv_norm, bias) x num_layers
    h = x_ref[...]                       # (Bp, K0p) bf16
    for i in range(num_layers):
        w = prm[3 * i][...]              # (Kp, Np) bf16, raw (unnormalized) weight
        inv = prm[3 * i + 1][...]        # (1, Np) f32, 1/||w_col||  (1 on padding)
        b = prm[3 * i + 2][...]          # (1, Np) f32
        # Weight norm applied post-matmul as a per-column scale (identical math).
        y = jnp.dot(h, w, preferred_element_type=jnp.float32) * inv + b
        if i + 1 < num_layers:
            h = jnp.maximum(y, 0.0).astype(jnp.bfloat16)   # ReLU, back to bf16
        else:
            out_ref[...] = y


def init_discriminator_params(key, input_dim=28 ** 2, output_dim=10,
                              weight_init_stdv=0.1):
    """PyTorch-layout params matching LinearWeightNorm.__init__ (randn*0.1, zero bias)."""
    dims = [input_dim, 1000, 500, 250, 250, 250]
    params = []
    for i in range(5):
        key, wk = jax.random.split(key)
        w = jax.random.normal(wk, (dims[i + 1], dims[i]), jnp.float32) * weight_init_stdv
        params.append((w, jnp.zeros((dims[i + 1],), jnp.float32)))
    key, wk = jax.random.split(key)
    w_final = jax.random.normal(wk, (output_dim, dims[-1]), jnp.float32) * weight_init_stdv
    # final layer's weight_scale parameter is ones(output_dim, 1) * 1 -> identity
    final = (w_final, jnp.zeros((output_dim,), jnp.float32))
    return params, final


def prepare_params(params, final):
    """Pad to lane multiples, transpose to (in, out), bf16 weights, f32 inv-norm."""
    layers = []
    for (w, b) in list(params) + [final]:            # w: (out, in) f32
        out_f, in_f = w.shape
        kp, np_ = _pad_to(in_f, _LANE), _pad_to(out_f, _LANE)
        # torch.sum(weight**2, dim=1): reduce over in_features.
        inv = jax.lax.rsqrt(jnp.sum(w.astype(jnp.float32) ** 2, axis=1))   # (out,)
        w_pad = jnp.zeros((kp, np_), jnp.float32).at[:in_f, :out_f].set(w.T)
        inv_pad = jnp.ones((np_,), jnp.float32).at[:out_f].set(inv)        # pad with 1
        b_pad = jnp.zeros((np_,), jnp.float32).at[:out_f].set(b)
        layers.append((w_pad.astype(jnp.bfloat16),
                       inv_pad.reshape(1, np_),
                       b_pad.reshape(1, np_)))
    return tuple(layers)


@functools.partial(jax.jit, static_argnames=("input_dim", "output_dim"))
def discriminator_forward(x, layers, *, input_dim=28 ** 2, output_dim=10):
    """Eval-mode Discriminator.forward(x): all noise terms are exactly zero."""
    x = x.reshape(-1, input_dim).astype(jnp.float32)          # x.view(-1, input_dim)
    batch = x.shape[0]
    bp = _pad_to(batch, _SUBLANE)
    k0p = layers[0][0].shape[0]
    np_out = layers[-1][0].shape[1]
    x_pad = (jnp.zeros((bp, k0p), jnp.float32)
             .at[:batch, :input_dim].set(x).astype(jnp.bfloat16))

    flat_args = [x_pad]
    in_specs = [pl.BlockSpec(x_pad.shape, lambda: (0, 0))]
    for (w, inv, b) in layers:
        flat_args.extend((w, inv, b))
        in_specs.extend([pl.BlockSpec(w.shape, lambda: (0, 0)),
                         pl.BlockSpec(inv.shape, lambda: (0, 0)),
                         pl.BlockSpec(b.shape, lambda: (0, 0))])

    flops = 2 * bp * sum(w.shape[0] * w.shape[1] for (w, _, _) in layers)
    bytes_accessed = (x_pad.size * 2 + bp * np_out * 4
                      + sum(w.size * 2 + inv.size * 4 + b.size * 4
                            for (w, inv, b) in layers))

    out_pad = pl.pallas_call(
        functools.partial(_fused_disc_kernel, num_layers=len(layers)),
        out_shape=jax.ShapeDtypeStruct((bp, np_out), jnp.float32),
        in_specs=in_specs,
        out_specs=pl.BlockSpec((bp, np_out), lambda: (0, 0)),
        compiler_params=pltpu.CompilerParams(vmem_limit_bytes=32 << 20),
        cost_estimate=pl.CostEstimate(flops=flops, transcendentals=0,
                                      bytes_accessed=bytes_accessed),
    )(*flat_args)
    return out_pad[:batch, :output_dim]


def _reference_forward_f32(x, params, final, input_dim):
    """Pure-JAX f32 reference of the PyTorch module (eval mode)."""
    h = x.reshape(-1, input_dim).astype(jnp.float32)
    for (w, b) in params:
        wn = w / jnp.sqrt(jnp.sum(w ** 2, axis=1, keepdims=True))
        h = jnp.maximum(h @ wn.T + b, 0.0)
    w, b = final
    wn = w / jnp.sqrt(jnp.sum(w ** 2, axis=1, keepdims=True))
    return h @ wn.T + b


def _reference_forward_bf16(x, layers, input_dim, output_dim):
    """Mirrors the kernel's bf16-input / f32-accumulate numerics."""
    xf = x.reshape(-1, input_dim).astype(jnp.float32)
    batch = xf.shape[0]
    bp = _pad_to(batch, _SUBLANE)
    k0p = layers[0][0].shape[0]
    h = (jnp.zeros((bp, k0p), jnp.float32).at[:batch, :input_dim].set(xf)
         .astype(jnp.bfloat16).astype(jnp.float32))
    out = None
    for i, (w, inv, b) in enumerate(layers):
        y = h @ w.astype(jnp.float32) * inv + b
        if i + 1 < len(layers):
            h = jnp.maximum(y, 0.0).astype(jnp.bfloat16).astype(jnp.float32)
        else:
            out = y
    return out[:batch, :output_dim]


if __name__ == "__main__":
    key = jax.random.PRNGKey(0)
    pkey, xkey = jax.random.split(key)

    input_dim, output_dim, batch = 28 ** 2, 10, 8
    params, final = init_discriminator_params(pkey, input_dim, output_dim)
    layers = prepare_params(params, final)

    # MNIST-like input, NCHW (B, 1, 28, 28); forward flattens to (B, 784).
    x = jax.random.normal(xkey, (batch, 1, 28, 28), jnp.float32)

    out = discriminator_forward(x, layers, input_dim=input_dim, output_dim=output_dim)
    out = jax.block_until_ready(out)
    assert out.shape == (batch, output_dim), out.shape

    # Tight check vs. a reference that mirrors the kernel's bf16 quantization...
    ref16 = _reference_forward_bf16(x, layers, input_dim, output_dim)
    assert jnp.allclose(out, ref16, atol=5e-3, rtol=5e-3), \
        float(jnp.max(jnp.abs(out - ref16)))
    # ... and a loose check vs. the exact f32 PyTorch math (covers bf16 rounding).
    ref32 = _reference_forward_f32(x, params, final, input_dim)
    assert jnp.allclose(out, ref32, atol=5e-2, rtol=5e-2), \
        float(jnp.max(jnp.abs(out - ref32)))

    print("KERNEL_OK")
</pallas_src>

<mosaic_0001>
module attributes {stable_mosaic.version = 11 : i64} {
  func.func @_fused_disc_kernel(%arg0: memref<8x896xbf16, #tpu.memory_space<vmem>>, %arg1: memref<896x1024xbf16, #tpu.memory_space<vmem>>, %arg2: memref<1x1024xf32, #tpu.memory_space<vmem>>, %arg3: memref<1x1024xf32, #tpu.memory_space<vmem>>, %arg4: memref<1024x512xbf16, #tpu.memory_space<vmem>>, %arg5: memref<1x512xf32, #tpu.memory_space<vmem>>, %arg6: memref<1x512xf32, #tpu.memory_space<vmem>>, %arg7: memref<512x256xbf16, #tpu.memory_space<vmem>>, %arg8: memref<1x256xf32, #tpu.memory_space<vmem>>, %arg9: memref<1x256xf32, #tpu.memory_space<vmem>>, %arg10: memref<256x256xbf16, #tpu.memory_space<vmem>>, %arg11: memref<1x256xf32, #tpu.memory_space<vmem>>, %arg12: memref<1x256xf32, #tpu.memory_space<vmem>>, %arg13: memref<256x256xbf16, #tpu.memory_space<vmem>>, %arg14: memref<1x256xf32, #tpu.memory_space<vmem>>, %arg15: memref<1x256xf32, #tpu.memory_space<vmem>>, %arg16: memref<256x128xbf16, #tpu.memory_space<vmem>>, %arg17: memref<1x128xf32, #tpu.memory_space<vmem>>, %arg18: memref<1x128xf32, #tpu.memory_space<vmem>>, %arg19: memref<8x128xf32, #tpu.memory_space<vmem>>) attributes {dimension_semantics = [], scalar_prefetch = 0 : i64, scratch_operands = 0 : i64, tpu.core_type = #tpu.core_type<tc>} {
    %c0 = arith.constant 0 : index
    %c0_0 = arith.constant 0 : index
    %0 = vector.load %arg0[%c0, %c0_0] : memref<8x896xbf16, #tpu.memory_space<vmem>>, vector<8x896xbf16>
    %c0_1 = arith.constant 0 : index
    %c0_2 = arith.constant 0 : index
    %1 = vector.load %arg1[%c0_1, %c0_2] : memref<896x1024xbf16, #tpu.memory_space<vmem>>, vector<896x1024xbf16>
    %c0_3 = arith.constant 0 : index
    %c0_4 = arith.constant 0 : index
    %2 = vector.load %arg2[%c0_3, %c0_4] : memref<1x1024xf32, #tpu.memory_space<vmem>>, vector<1x1024xf32>
    %c0_5 = arith.constant 0 : index
    %c0_6 = arith.constant 0 : index
    %3 = vector.load %arg3[%c0_5, %c0_6] : memref<1x1024xf32, #tpu.memory_space<vmem>>, vector<1x1024xf32>
    %cst = arith.constant dense<0.000000e+00> : vector<8x1024xf32>
    %4 = tpu.matmul %0, %1, %cst {dimension_numbers = #tpu.dot_dimension_numbers<[1], [0], [0], [1], [0, 0, 1, 1], [], []>} : vector<8x896xbf16>, vector<896x1024xbf16>, vector<8x1024xf32> -> vector<8x1024xf32>
    %5 = vector.broadcast %2 : vector<1x1024xf32> to vector<8x1024xf32>
    %6 = arith.mulf %4, %5 : vector<8x1024xf32>
    %7 = vector.broadcast %3 : vector<1x1024xf32> to vector<8x1024xf32>
    %8 = arith.addf %6, %7 : vector<8x1024xf32>
    %cst_7 = arith.constant 0.000000e+00 : f32
    %9 = vector.broadcast %cst_7 : f32 to vector<8x1024xf32>
    %10 = arith.maximumf %8, %9 : vector<8x1024xf32>
    %11 = arith.truncf %10 : vector<8x1024xf32> to vector<8x1024xbf16>
    %c0_8 = arith.constant 0 : index
    %c0_9 = arith.constant 0 : index
    %12 = vector.load %arg4[%c0_8, %c0_9] : memref<1024x512xbf16, #tpu.memory_space<vmem>>, vector<1024x512xbf16>
    %c0_10 = arith.constant 0 : index
    %c0_11 = arith.constant 0 : index
    %13 = vector.load %arg5[%c0_10, %c0_11] : memref<1x512xf32, #tpu.memory_space<vmem>>, vector<1x512xf32>
    %c0_12 = arith.constant 0 : index
    %c0_13 = arith.constant 0 : index
    %14 = vector.load %arg6[%c0_12, %c0_13] : memref<1x512xf32, #tpu.memory_space<vmem>>, vector<1x512xf32>
    %cst_14 = arith.constant dense<0.000000e+00> : vector<8x512xf32>
    %15 = tpu.matmul %11, %12, %cst_14 {dimension_numbers = #tpu.dot_dimension_numbers<[1], [0], [0], [1], [0, 0, 1, 1], [], []>} : vector<8x1024xbf16>, vector<1024x512xbf16>, vector<8x512xf32> -> vector<8x512xf32>
    %16 = vector.broadcast %13 : vector<1x512xf32> to vector<8x512xf32>
    %17 = arith.mulf %15, %16 : vector<8x512xf32>
    %18 = vector.broadcast %14 : vector<1x512xf32> to vector<8x512xf32>
    %19 = arith.addf %17, %18 : vector<8x512xf32>
    %cst_15 = arith.constant 0.000000e+00 : f32
    %20 = vector.broadcast %cst_15 : f32 to vector<8x512xf32>
    %21 = arith.maximumf %19, %20 : vector<8x512xf32>
    %22 = arith.truncf %21 : vector<8x512xf32> to vector<8x512xbf16>
    %c0_16 = arith.constant 0 : index
    %c0_17 = arith.constant 0 : index
    %23 = vector.load %arg7[%c0_16, %c0_17] : memref<512x256xbf16, #tpu.memory_space<vmem>>, vector<512x256xbf16>
    %c0_18 = arith.constant 0 : index
    %c0_19 = arith.constant 0 : index
    %24 = vector.load %arg8[%c0_18, %c0_19] : memref<1x256xf32, #tpu.memory_space<vmem>>, vector<1x256xf32>
    %c0_20 = arith.constant 0 : index
    %c0_21 = arith.constant 0 : index
    %25 = vector.load %arg9[%c0_20, %c0_21] : memref<1x256xf32, #tpu.memory_space<vmem>>, vector<1x256xf32>
    %cst_22 = arith.constant dense<0.000000e+00> : vector<8x256xf32>
    %26 = tpu.matmul %22, %23, %cst_22 {dimension_numbers = #tpu.dot_dimension_numbers<[1], [0], [0], [1], [0, 0, 1, 1], [], []>} : vector<8x512xbf16>, vector<512x256xbf16>, vector<8x256xf32> -> vector<8x256xf32>
    %27 = vector.broadcast %24 : vector<1x256xf32> to vector<8x256xf32>
    %28 = arith.mulf %26, %27 : vector<8x256xf32>
    %29 = vector.broadcast %25 : vector<1x256xf32> to vector<8x256xf32>
    %30 = arith.addf %28, %29 : vector<8x256xf32>
    %cst_23 = arith.constant 0.000000e+00 : f32
    %31 = vector.broadcast %cst_23 : f32 to vector<8x256xf32>
    %32 = arith.maximumf %30, %31 : vector<8x256xf32>
    %33 = arith.truncf %32 : vector<8x256xf32> to vector<8x256xbf16>
    %c0_24 = arith.constant 0 : index
    %c0_25 = arith.constant 0 : index
    %34 = vector.load %arg10[%c0_24, %c0_25] : memref<256x256xbf16, #tpu.memory_space<vmem>>, vector<256x256xbf16>
    %c0_26 = arith.constant 0 : index
    %c0_27 = arith.constant 0 : index
    %35 = vector.load %arg11[%c0_26, %c0_27] : memref<1x256xf32, #tpu.memory_space<vmem>>, vector<1x256xf32>
    %c0_28 = arith.constant 0 : index
    %c0_29 = arith.constant 0 : index
    %36 = vector.load %arg12[%c0_28, %c0_29] : memref<1x256xf32, #tpu.memory_space<vmem>>, vector<1x256xf32>
    %cst_30 = arith.constant dense<0.000000e+00> : vector<8x256xf32>
    %37 = tpu.matmul %33, %34, %cst_30 {dimension_numbers = #tpu.dot_dimension_numbers<[1], [0], [0], [1], [0, 0, 1, 1], [], []>} : vector<8x256xbf16>, vector<256x256xbf16>, vector<8x256xf32> -> vector<8x256xf32>
    %38 = vector.broadcast %35 : vector<1x256xf32> to vector<8x256xf32>
    %39 = arith.mulf %37, %38 : vector<8x256xf32>
    %40 = vector.broadcast %36 : vector<1x256xf32> to vector<8x256xf32>
    %41 = arith.addf %39, %40 : vector<8x256xf32>
    %cst_31 = arith.constant 0.000000e+00 : f32
    %42 = vector.broadcast %cst_31 : f32 to vector<8x256xf32>
    %43 = arith.maximumf %41, %42 : vector<8x256xf32>
    %44 = arith.truncf %43 : vector<8x256xf32> to vector<8x256xbf16>
    %c0_32 = arith.constant 0 : index
    %c0_33 = arith.constant 0 : index
    %45 = vector.load %arg13[%c0_32, %c0_33] : memref<256x256xbf16, #tpu.memory_space<vmem>>, vector<256x256xbf16>
    %c0_34 = arith.constant 0 : index
    %c0_35 = arith.constant 0 : index
    %46 = vector.load %arg14[%c0_34, %c0_35] : memref<1x256xf32, #tpu.memory_space<vmem>>, vector<1x256xf32>
    %c0_36 = arith.constant 0 : index
    %c0_37 = arith.constant 0 : index
    %47 = vector.load %arg15[%c0_36, %c0_37] : memref<1x256xf32, #tpu.memory_space<vmem>>, vector<1x256xf32>
    %cst_38 = arith.constant dense<0.000000e+00> : vector<8x256xf32>
    %48 = tpu.matmul %44, %45, %cst_38 {dimension_numbers = #tpu.dot_dimension_numbers<[1], [0], [0], [1], [0, 0, 1, 1], [], []>} : vector<8x256xbf16>, vector<256x256xbf16>, vector<8x256xf32> -> vector<8x256xf32>
    %49 = vector.broadcast %46 : vector<1x256xf32> to vector<8x256xf32>
    %50 = arith.mulf %48, %49 : vector<8x256xf32>
    %51 = vector.broadcast %47 : vector<1x256xf32> to vector<8x256xf32>
    %52 = arith.addf %50, %51 : vector<8x256xf32>
    %cst_39 = arith.constant 0.000000e+00 : f32
    %53 = vector.broadcast %cst_39 : f32 to vector<8x256xf32>
    %54 = arith.maximumf %52, %53 : vector<8x256xf32>
    %55 = arith.truncf %54 : vector<8x256xf32> to vector<8x256xbf16>
    %c0_40 = arith.constant 0 : index
    %c0_41 = arith.constant 0 : index
    %56 = vector.load %arg16[%c0_40, %c0_41] : memref<256x128xbf16, #tpu.memory_space<vmem>>, vector<256x128xbf16>
    %c0_42 = arith.constant 0 : index
    %c0_43 = arith.constant 0 : index
    %57 = vector.load %arg17[%c0_42, %c0_43] : memref<1x128xf32, #tpu.memory_space<vmem>>, vector<1x128xf32>
    %c0_44 = arith.constant 0 : index
    %c0_45 = arith.constant 0 : index
    %58 = vector.load %arg18[%c0_44, %c0_45] : memref<1x128xf32, #tpu.memory_space<vmem>>, vector<1x128xf32>
    %cst_46 = arith.constant dense<0.000000e+00> : vector<8x128xf32>
    %59 = tpu.matmul %55, %56, %cst_46 {dimension_numbers = #tpu.dot_dimension_numbers<[1], [0], [0], [1], [0, 0, 1, 1], [], []>} : vector<8x256xbf16>, vector<256x128xbf16>, vector<8x128xf32> -> vector<8x128xf32>
    %60 = vector.broadcast %57 : vector<1x128xf32> to vector<8x128xf32>
    %61 = arith.mulf %59, %60 : vector<8x128xf32>
    %62 = vector.broadcast %58 : vector<1x128xf32> to vector<8x128xf32>
    %63 = arith.addf %61, %62 : vector<8x128xf32>
    %c0_47 = arith.constant 0 : index
    %c0_48 = arith.constant 0 : index
    %64 = vector.load %arg19[%c0_47, %c0_48] : memref<8x128xf32, #tpu.memory_space<vmem>>, vector<8x128xf32>
    tpu.vector_store %arg19[%c0_47, %c0_48], %63 {strides = array<i32>} : memref<8x128xf32, #tpu.memory_space<vmem>>, vector<8x128xf32>,
    return
  }
}

</mosaic_0001>

<llo_original>
// kernel: discriminator_forward.1
$region0: #{discriminator_forward.1}
  #allocation0 [shape = 'u32[]', space=smem, size = 0x4, offset = 0x4, fixed_abs, tag = 'smem constant byte address 0x4 - core index']
  #allocation1 [shape = 'u32[144,128]{1,0:T(1,128)}', space=vmem, size = 0x12000, scoped, tag = 'internal scratch']
  %s0 = inlined_call_operand.vmem [shape: bf16[8,896], index: 0, kind: input, shape index: {}]
  %s1 = inlined_call_operand.hbm [shape: bf16[896,1024], index: 1, kind: input, shape index: {}]
  %s2 = inlined_call_operand.hbm [shape: f32[1,1024], index: 2, kind: input, shape index: {}]
  %s3 = inlined_call_operand.hbm [shape: f32[1,1024], index: 3, kind: input, shape index: {}]
  %s4 = inlined_call_operand.hbm [shape: bf16[1024,512], index: 4, kind: input, shape index: {}]
  %s5 = inlined_call_operand.hbm [shape: f32[1,512], index: 5, kind: input, shape index: {}]
  %s6 = inlined_call_operand.hbm [shape: f32[1,512], index: 6, kind: input, shape index: {}]
  %s7 = inlined_call_operand.hbm [shape: bf16[512,256], index: 7, kind: input, shape index: {}]
  %s8 = inlined_call_operand.hbm [shape: f32[1,256], index: 8, kind: input, shape index: {}]
  %s9 = inlined_call_operand.hbm [shape: f32[1,256], index: 9, kind: input, shape index: {}]
  %s10 = inlined_call_operand.hbm [shape: bf16[256,256], index: 10, kind: input, shape index: {}]
  %s11 = inlined_call_operand.hbm [shape: f32[1,256], index: 11, kind: input, shape index: {}]
  %s12 = inlined_call_operand.hbm [shape: f32[1,256], index: 12, kind: input, shape index: {}]
  %s13 = inlined_call_operand.hbm [shape: bf16[256,256], index: 13, kind: input, shape index: {}]
  %s14 = inlined_call_operand.hbm [shape: f32[1,256], index: 14, kind: input, shape index: {}]
  %s15 = inlined_call_operand.hbm [shape: f32[1,256], index: 15, kind: input, shape index: {}]
  %s16 = inlined_call_operand.hbm [shape: bf16[256,128], index: 16, kind: input, shape index: {}]
  %s17 = inlined_call_operand.hbm [shape: f32[1,128], index: 17, kind: input, shape index: {}]
  %s18 = inlined_call_operand.hbm [shape: f32[1,128], index: 18, kind: input, shape index: {}]
  %s19 = inlined_call_operand.hbm [shape: f32[8,128], index: 19, kind: output, shape index: {}]
  %s20 = sld [smem:[#allocation0]]
  $region158: #{discriminator_forward.1} parent=0
    _
  %s22 = ssub.s32 1, %s20
  %s23 = scalar_select 0, %s22, %s20
  $region1: #{discriminator_forward.1} parent=0
    #allocation2 [shape = 'u8[1835008]{0}', space=vmem, size = 0x1c0000, scoped, tag = 'input window, operand 1, single buffered']
    #allocation3 [shape = 's32[1]{0}', space=sflag, size = 0x4, scoped, tag = 'scoped memory for discriminator_forward.1']
    #allocation4 [shape = 's32[1]{0}', space=sflag, size = 0x4, scoped, tag = 'scoped memory for discriminator_forward.1']
    #allocation5 [shape = 'u8[4096]{0}', space=vmem, size = 0x1000, scoped, tag = 'input window, operand 2, single buffered']
    #allocation6 [shape = 's32[1]{0}', space=sflag, size = 0x4, scoped, tag = 'scoped memory for discriminator_forward.1']
    #allocation7 [shape = 'u8[4096]{0}', space=vmem, size = 0x1000, scoped, tag = 'input window, operand 3, single buffered']
    #allocation8 [shape = 'u8[1048576]{0}', space=vmem, size = 0x100000, scoped, tag = 'input window, operand 4, single buffered']
    #allocation9 [shape = 's32[1]{0}', space=sflag, size = 0x4, scoped, tag = 'scoped memory for discriminator_forward.1']
    #allocation10 [shape = 'u8[2048]{0}', space=vmem, size = 0x800, scoped, tag = 'input window, operand 5, single buffered']
    #allocation11 [shape = 'u8[2048]{0}', space=vmem, size = 0x800, scoped, tag = 'input window, operand 6, single buffered']
    #allocation12 [shape = 's32[1]{0}', space=sflag, size = 0x4, scoped, tag = 'scoped memory for discriminator_forward.1']
    #allocation13 [shape = 'u8[262144]{0}', space=vmem, size = 0x40000, scoped, tag = 'input window, operand 7, single buffered']
    #allocation14 [shape = 'u8[1024]{0}', space=vmem, size = 0x400, scoped, tag = 'input window, operand 8, single buffered']
    #allocation15 [shape = 's32[1]{0}', space=sflag, size = 0x4, scoped, tag = 'scoped memory for discriminator_forward.1']
    #allocation16 [shape = 'u8[1024]{0}', space=vmem, size = 0x400, scoped, tag = 'input window, operand 9, single buffered']
    #allocation17 [shape = 'u8[131072]{0}', space=vmem, size = 0x20000, scoped, tag = 'input window, operand 10, single buffered']
    #allocation18 [shape = 's32[1]{0}', space=sflag, size = 0x4, scoped, tag = 'scoped memory for discriminator_forward.1']
    #allocation19 [shape = 'u8[1024]{0}', space=vmem, size = 0x400, scoped, tag = 'input window, operand 11, single buffered']
    #allocation20 [shape = 'u8[1024]{0}', space=vmem, size = 0x400, scoped, tag = 'input window, operand 12, single buffered']
    #allocation21 [shape = 's32[1]{0}', space=sflag, size = 0x4, scoped, tag = 'scoped memory for discriminator_forward.1']
    #allocation22 [shape = 'u8[131072]{0}', space=vmem, size = 0x20000, scoped, tag = 'input window, operand 13, single buffered']
    #allocation23 [shape = 'u8[1024]{0}', space=vmem, size = 0x400, scoped, tag = 'input window, operand 14, single buffered']
    #allocation24 [shape = 's32[1]{0}', space=sflag, size = 0x4, scoped, tag = 'scoped memory for discriminator_forward.1']
    #allocation25 [shape = 'u8[1024]{0}', space=vmem, size = 0x400, scoped, tag = 'input window, operand 15, single buffered']
    #allocation26 [shape = 'u8[65536]{0}', space=vmem, size = 0x10000, scoped, tag = 'input window, operand 16, single buffered']
    #allocation27 [shape = 's32[1]{0}', space=sflag, size = 0x4, scoped, tag = 'scoped memory for discriminator_forward.1']
    #allocation28 [shape = 'u8[512]{0}', space=vmem, size = 0x400, scoped, tag = 'input window, operand 17, single buffered']
    #allocation29 [shape = 'u8[512]{0}', space=vmem, size = 0x400, scoped, tag = 'input window, operand 18, single buffered']
    #allocation30 [shape = 's32[1]{0}', space=sflag, size = 0x4, scoped, tag = 'scoped memory for discriminator_forward.1']
    #allocation31 [shape = 'u8[4096]{0}', space=vmem, size = 0x1000, scoped, tag = 'output window, operand 0, single buffered']
    %24 = vsyncpa [#allocation3], 0
    %25 = vsyncpa [#allocation6], 0
    %26 = vsyncpa [#allocation9], 0
    %27 = vsyncpa [#allocation12], 0
    %28 = vsyncpa [#allocation15], 0
    %29 = vsyncpa [#allocation18], 0
    %30 = vsyncpa [#allocation21], 0
    %31 = vsyncpa [#allocation24], 0
    %32 = vsyncpa [#allocation27], 0
    %33 = vsyncpa [#allocation30], 0
    %34 = vsyncpa [#allocation4], 0
    // Predicated region
    $region2: #{discriminator_forward.1} parent=1 // pred_check
      _
    $region3: #{discriminator_forward.1} parent=1 // pred_check_branch
      %36 = sbr.rel (0) target = $region5
    $region4: #{discriminator_forward.1} parent=1 // pred_region
      _
    $region5: #{discriminator_forward.1} parent=1 // pred_fallthru
      _
    // Predicated region
    $region6: #{discriminator_forward.1} parent=1 // pred_check
      _
    $region7: #{discriminator_forward.1} parent=1 // pred_check_branch
      %38 = sbr.rel (0) target = $region9
    $region8: #{discriminator_forward.1} parent=1 // pred_region
      %s40 = ssub.s32 57344, 57344
      %41 = vsyncadd [#allocation3], %s40
      %s42 = sshll.u32 [#allocation2], 4
      %s43 = int_to_ptr.vmem [resolvable:$true] %s42
      %48 = dma.hbm_to_vmem [thread:$0]  %s1, 57344, %s43, [#allocation3], 512, 512, 32
    $region9: #{discriminator_forward.1} parent=1 // pred_fallthru
      _
    // Predicated region
    $region10: #{discriminator_forward.1} parent=1 // pred_check
      _
    $region11: #{discriminator_forward.1} parent=1 // pred_check_branch
      %50 = sbr.rel (0) target = $region13
    $region12: #{discriminator_forward.1} parent=1 // pred_region
      %s52 = ssub.s32 128, 128
      %53 = vsyncadd [#allocation6], %s52
      %s55 = sshll.u32 [#allocation5], 4
      %s56 = int_to_ptr.vmem [resolvable:$true] %s55
      %58 = dma.hbm_to_vmem [thread:$0]  %s2, 128, %s56, [#allocation6]
    $region13: #{discriminator_forward.1} parent=1 // pred_fallthru
      _
    // Predicated region
    $region14: #{discriminator_forward.1} parent=1 // pred_check
      _
    $region15: #{discriminator_forward.1} parent=1 // pred_check_branch
      %60 = sbr.rel (0) target = $region17
    $region16: #{discriminator_forward.1} parent=1 // pred_region
      %s62 = ssub.s32 128, 128
      %63 = vsyncadd [#allocation6], %s62
      %s65 = sshll.u32 [#allocation7], 4
      %s66 = int_to_ptr.vmem [resolvable:$true] %s65
      %68 = dma.hbm_to_vmem [thread:$0]  %s3, 128, %s66, [#allocation6]
    $region17: #{discriminator_forward.1} parent=1 // pred_fallthru
      _
    // Predicated region
    $region18: #{discriminator_forward.1} parent=1 // pred_check
      _
    $region19: #{discriminator_forward.1} parent=1 // pred_check_branch
      %70 = sbr.rel (0) target = $region21
    $region20: #{discriminator_forward.1} parent=1 // pred_region
      %s72 = ssub.s32 32768, 32768
      %73 = vsyncadd [#allocation9], %s72
      %s74 = sshll.u32 [#allocation8], 4
      %s75 = int_to_ptr.vmem [resolvable:$true] %s74
      %80 = dma.hbm_to_vmem [thread:$0]  %s4, 32768, %s75, [#allocation9], 256, 256, 16
    $region21: #{discriminator_forward.1} parent=1 // pred_fallthru
      _
    // Predicated region
    $region22: #{discriminator_forward.1} parent=1 // pred_check
      _
    $region23: #{discriminator_forward.1} parent=1 // pred_check_branch
      %82 = sbr.rel (0) target = $region25
    $region24: #{discriminator_forward.1} parent=1 // pred_region
      %s84 = ssub.s32 64, 64
      %85 = vsyncadd [#allocation9], %s84
      %s87 = sshll.u32 [#allocation10], 4
      %s88 = int_to_ptr.vmem [resolvable:$true] %s87
      %90 = dma.hbm_to_vmem [thread:$0]  %s5, 64, %s88, [#allocation9]
    $region25: #{discriminator_forward.1} parent=1 // pred_fallthru
      _
    // Predicated region
    $region26: #{discriminator_forward.1} parent=1 // pred_check
      _
    $region27: #{discriminator_forward.1} parent=1 // pred_check_branch
      %92 = sbr.rel (0) target = $region29
    $region28: #{discriminator_forward.1} parent=1 // pred_region
      %s94 = ssub.s32 64, 64
      %95 = vsyncadd [#allocation12], %s94
      %s97 = sshll.u32 [#allocation11], 4
      %s98 = int_to_ptr.vmem [resolvable:$true] %s97
      %100 = dma.hbm_to_vmem [thread:$0]  %s6, 64, %s98, [#allocation12]
    $region29: #{discriminator_forward.1} parent=1 // pred_fallthru
      _
    // Predicated region
    $region30: #{discriminator_forward.1} parent=1 // pred_check
      _
    $region31: #{discriminator_forward.1} parent=1 // pred_check_branch
      %102 = sbr.rel (0) target = $region33
    $region32: #{discriminator_forward.1} parent=1 // pred_region
      %s104 = ssub.s32 8192, 8192
      %105 = vsyncadd [#allocation12], %s104
      %s106 = sshll.u32 [#allocation13], 4
      %s107 = int_to_ptr.vmem [resolvable:$true] %s106
      %112 = dma.hbm_to_vmem [thread:$0]  %s7, 8192, %s107, [#allocation12], 128, 128, 8
    $region33: #{discriminator_forward.1} parent=1 // pred_fallthru
      _
    // Predicated region
    $region34: #{discriminator_forward.1} parent=1 // pred_check
      _
    $region35: #{discriminator_forward.1} parent=1 // pred_check_branch
      %114 = sbr.rel (0) target = $region37
    $region36: #{discriminator_forward.1} parent=1 // pred_region
      %s116 = ssub.s32 32, 32
      %117 = vsyncadd [#allocation15], %s116
      %s119 = sshll.u32 [#allocation14], 4
      %s120 = int_to_ptr.vmem [resolvable:$true] %s119
      %122 = dma.hbm_to_vmem [thread:$0]  %s8, 32, %s120, [#allocation15]
    $region37: #{discriminator_forward.1} parent=1 // pred_fallthru
      _
    // Predicated region
    $region38: #{discriminator_forward.1} parent=1 // pred_check
      _
    $region39: #{discriminator_forward.1} parent=1 // pred_check_branch
      %124 = sbr.rel (0) target = $region41
    $region40: #{discriminator_forward.1} parent=1 // pred_region
      %s126 = ssub.s32 32, 32
      %127 = vsyncadd [#allocation15], %s126
      %s129 = sshll.u32 [#allocation16], 4
      %s130 = int_to_ptr.vmem [resolvable:$true] %s129
      %132 = dma.hbm_to_vmem [thread:$0]  %s9, 32, %s130, [#allocation15]
    $region41: #{discriminator_forward.1} parent=1 // pred_fallthru
      _
    // Predicated region
    $region42: #{discriminator_forward.1} parent=1 // pred_check
      _
    $region43: #{discriminator_forward.1} parent=1 // pred_check_branch
      %134 = sbr.rel (0) target = $region45
    $region44: #{discriminator_forward.1} parent=1 // pred_region
      %s136 = ssub.s32 4096, 4096
      %137 = vsyncadd [#allocation18], %s136
      %s138 = sshll.u32 [#allocation17], 4
      %s139 = int_to_ptr.vmem [resolvable:$true] %s138
      %144 = dma.hbm_to_vmem [thread:$0]  %s10, 4096, %s139, [#allocation18], 128, 128, 8
    $region45: #{discriminator_forward.1} parent=1 // pred_fallthru
      _
    // Predicated region
    $region46: #{discriminator_forward.1} parent=1 // pred_check
      _
    $region47: #{discriminator_forward.1} parent=1 // pred_check_branch
      %146 = sbr.rel (0) target = $region49
    $region48: #{discriminator_forward.1} parent=1 // pred_region
      %s148 = ssub.s32 32, 32
      %149 = vsyncadd [#allocation18], %s148
      %s151 = sshll.u32 [#allocation19], 4
      %s152 = int_to_ptr.vmem [resolvable:$true] %s151
      %154 = dma.hbm_to_vmem [thread:$0]  %s11, 32, %s152, [#allocation18]
    $region49: #{discriminator_forward.1} parent=1 // pred_fallthru
      _
    // Predicated region
    $region50: #{discriminator_forward.1} parent=1 // pred_check
      _
    $region51: #{discriminator_forward.1} parent=1 // pred_check_branch
      %156 = sbr.rel (0) target = $region53
    $region52: #{discriminator_forward.1} parent=1 // pred_region
      %s158 = ssub.s32 32, 32
      %159 = vsyncadd [#allocation21], %s158
      %s161 = sshll.u32 [#allocation20], 4
      %s162 = int_to_ptr.vmem [resolvable:$true] %s161
      %164 = dma.hbm_to_vmem [thread:$0]  %s12, 32, %s162, [#allocation21]
    $region53: #{discriminator_forward.1} parent=1 // pred_fallthru
      _
    // Predicated region
    $region54: #{discriminator_forward.1} parent=1 // pred_check
      _
    $region55: #{discriminator_forward.1} parent=1 // pred_check_branch
      %166 = sbr.rel (0) target = $region57
    $region56: #{discriminator_forward.1} parent=1 // pred_region
      %s168 = ssub.s32 4096, 4096
      %169 = vsyncadd [#allocation21], %s168
      %s170 = sshll.u32 [#allocation22], 4
      %s171 = int_to_ptr.vmem [resolvable:$true] %s170
      %176 = dma.hbm_to_vmem [thread:$0]  %s13, 4096, %s171, [#allocation21], 128, 128, 8
    $region57: #{discriminator_forward.1} parent=1 // pred_fallthru
      _
    // Predicated region
    $region58: #{discriminator_forward.1} parent=1 // pred_check
      _
    $region59: #{discriminator_forward.1} parent=1 // pred_check_branch
      %178 = sbr.rel (0) target = $region61
    $region60: #{discriminator_forward.1} parent=1 // pred_region
      %s180 = ssub.s32 32, 32
      %181 = vsyncadd [#allocation24], %s180
      %s183 = sshll.u32 [#allocation23], 4
      %s184 = int_to_ptr.vmem [resolvable:$true] %s183
      %186 = dma.hbm_to_vmem [thread:$0]  %s14, 32, %s184, [#allocation24]
    $region61: #{discriminator_forward.1} parent=1 // pred_fallthru
      _
    // Predicated region
    $region62: #{discriminator_forward.1} parent=1 // pred_check
      _
    $region63: #{discriminator_forward.1} parent=1 // pred_check_branch
      %188 = sbr.rel (0) target = $region65
    $region64: #{discriminator_forward.1} parent=1 // pred_region
      %s190 = ssub.s32 32, 32
      %191 = vsyncadd [#allocation24], %s190
      %s193 = sshll.u32 [#allocation25], 4
      %s194 = int_to_ptr.vmem [resolvable:$true] %s193
      %196 = dma.hbm_to_vmem [thread:$0]  %s15, 32, %s194, [#allocation24]
    $region65: #{discriminator_forward.1} parent=1 // pred_fallthru
      _
    // Predicated region
    $region66: #{discriminator_forward.1} parent=1 // pred_check
      _
    $region67: #{discriminator_forward.1} parent=1 // pred_check_branch
      %198 = sbr.rel (0) target = $region69
    $region68: #{discriminator_forward.1} parent=1 // pred_region
      %s200 = ssub.s32 2048, 2048
      %201 = vsyncadd [#allocation27], %s200
      %s202 = sshll.u32 [#allocation26], 4
      %s203 = int_to_ptr.vmem [resolvable:$true] %s202
      %208 = dma.hbm_to_vmem [thread:$0]  %s16, 2048, %s203, [#allocation27], 64, 64, 4
    $region69: #{discriminator_forward.1} parent=1 // pred_fallthru
      _
    // Predicated region
    $region70: #{discriminator_forward.1} parent=1 // pred_check
      _
    $region71: #{discriminator_forward.1} parent=1 // pred_check_branch
      %210 = sbr.rel (0) target = $region73
    $region72: #{discriminator_forward.1} parent=1 // pred_region
      %s212 = ssub.s32 16, 16
      %213 = vsyncadd [#allocation27], %s212
      %s215 = sshll.u32 [#allocation28], 4
      %s216 = int_to_ptr.vmem [resolvable:$true] %s215
      %218 = dma.hbm_to_vmem [thread:$0]  %s17, 16, %s216, [#allocation27]
    $region73: #{discriminator_forward.1} parent=1 // pred_fallthru
      _
    // Predicated region
    $region74: #{discriminator_forward.1} parent=1 // pred_check
      _
    $region75: #{discriminator_forward.1} parent=1 // pred_check_branch
      %220 = sbr.rel (0) target = $region77
    $region76: #{discriminator_forward.1} parent=1 // pred_region
      %s222 = ssub.s32 16, 16
      %223 = vsyncadd [#allocation30], %s222
      %s225 = sshll.u32 [#allocation29], 4
      %s226 = int_to_ptr.vmem [resolvable:$true] %s225
      %228 = dma.hbm_to_vmem [thread:$0]  %s18, 16, %s226, [#allocation30]
    $region77: #{discriminator_forward.1} parent=1 // pred_fallthru
      _
    // Predicated region
    $region78: #{discriminator_forward.1} parent=1 // pred_check
      _
    $region79: #{discriminator_forward.1} parent=1 // pred_check_branch
      %230 = sbr.rel (0) target = $region81
    $region80: #{discriminator_forward.1} parent=1 // pred_region
      %231 = dma.done [#allocation3], 57344
    $region81: #{discriminator_forward.1} parent=1 // pred_fallthru
      _
    // Predicated region
    $region82: #{discriminator_forward.1} parent=1 // pred_check
      _
    $region83: #{discriminator_forward.1} parent=1 // pred_check_branch
      %233 = sbr.rel (0) target = $region85
    $region84: #{discriminator_forward.1} parent=1 // pred_region
      %234 = dma.done [#allocation6], 128
    $region85: #{discriminator_forward.1} parent=1 // pred_fallthru
      _
    // Predicated region
    $region86: #{discriminator_forward.1} parent=1 // pred_check
      _
    $region87: #{discriminator_forward.1} parent=1 // pred_check_branch
      %236 = sbr.rel (0) target = $region89
    $region88: #{discriminator_forward.1} parent=1 // pred_region
      %237 = dma.done [#allocation6], 128
    $region89: #{discriminator_forward.1} parent=1 // pred_fallthru
      _
    // Predicated region
    $region90: #{discriminator_forward.1} parent=1 // pred_check
      _
    $region91: #{discriminator_forward.1} parent=1 // pred_check_branch
      %239 = sbr.rel (0) target = $region93
    $region92: #{discriminator_forward.1} parent=1 // pred_region
      %240 = dma.done [#allocation9], 32768
    $region93: #{discriminator_forward.1} parent=1 // pred_fallthru
      _
    // Predicated region
    $region94: #{discriminator_forward.1} parent=1 // pred_check
      _
    $region95: #{discriminator_forward.1} parent=1 // pred_check_branch
      %242 = sbr.rel (0) target = $region97
    $region96: #{discriminator_forward.1} parent=1 // pred_region
      %243 = dma.done [#allocation9], 64
    $region97: #{discriminator_forward.1} parent=1 // pred_fallthru
      _
    // Predicated region
    $region98: #{discriminator_forward.1} parent=1 // pred_check
      _
    $region99: #{discriminator_forward.1} parent=1 // pred_check_branch
      %245 = sbr.rel (0) target = $region101
    $region100: #{discriminator_forward.1} parent=1 // pred_region
      %246 = dma.done [#allocation12], 64
    $region101: #{discriminator_forward.1} parent=1 // pred_fallthru
      _
    // Predicated region
    $region102: #{discriminator_forward.1} parent=1 // pred_check
      _
    $region103: #{discriminator_forward.1} parent=1 // pred_check_branch
      %248 = sbr.rel (0) target = $region105
    $region104: #{discriminator_forward.1} parent=1 // pred_region
      %249 = dma.done [#allocation12], 8192
    $region105: #{discriminator_forward.1} parent=1 // pred_fallthru
      _
    // Predicated region
    $region106: #{discriminator_forward.1} parent=1 // pred_check
      _
    $region107: #{discriminator_forward.1} parent=1 // pred_check_branch
      %251 = sbr.rel (0) target = $region109
    $region108: #{discriminator_forward.1} parent=1 // pred_region
      %252 = dma.done [#allocation15], 32
    $region109: #{discriminator_forward.1} parent=1 // pred_fallthru
      _
    // Predicated region
    $region110: #{discriminator_forward.1} parent=1 // pred_check
      _
    $region111: #{discriminator_forward.1} parent=1 // pred_check_branch
      %254 = sbr.rel (0) target = $region113
    $region112: #{discriminator_forward.1} parent=1 // pred_region
      %255 = dma.done [#allocation15], 32
    $region113: #{discriminator_forward.1} parent=1 // pred_fallthru
      _
    // Predicated region
    $region114: #{discriminator_forward.1} parent=1 // pred_check
      _
    $region115: #{discriminator_forward.1} parent=1 // pred_check_branch
      %257 = sbr.rel (0) target = $region117
    $region116: #{discriminator_forward.1} parent=1 // pred_region
      %258 = dma.done [#allocation18], 4096
    $region117: #{discriminator_forward.1} parent=1 // pred_fallthru
      _
    // Predicated region
    $region118: #{discriminator_forward.1} parent=1 // pred_check
      _
    $region119: #{discriminator_forward.1} parent=1 // pred_check_branch
      %260 = sbr.rel (0) target = $region121
    $region120: #{discriminator_forward.1} parent=1 // pred_region
      %261 = dma.done [#allocation18], 32
    $region121: #{discriminator_forward.1} parent=1 // pred_fallthru
      _
    // Predicated region
    $region122: #{discriminator_forward.1} parent=1 // pred_check
      _
    $region123: #{discriminator_forward.1} parent=1 // pred_check_branch
      %263 = sbr.rel (0) target = $region125
    $region124: #{discriminator_forward.1} parent=1 // pred_region
      %264 = dma.done [#allocation21], 32
    $region125: #{discriminator_forward.1} parent=1 // pred_fallthru
      _
    // Predicated region
    $region126: #{discriminator_forward.1} parent=1 // pred_check
      _
    $region127: #{discriminator_forward.1} parent=1 // pred_check_branch
      %266 = sbr.rel (0) target = $region129
    $region128: #{discriminator_forward.1} parent=1 // pred_region
      %267 = dma.done [#allocation21], 4096
    $region129: #{discriminator_forward.1} parent=1 // pred_fallthru
      _
    // Predicated region
    $region130: #{discriminator_forward.1} parent=1 // pred_check
      _
    $region131: #{discriminator_forward.1} parent=1 // pred_check_branch
      %269 = sbr.rel (0) target = $region133
    $region132: #{discriminator_forward.1} parent=1 // pred_region
      %270 = dma.done [#allocation24], 32
    $region133: #{discriminator_forward.1} parent=1 // pred_fallthru
      _
    // Predicated region
    $region134: #{discriminator_forward.1} parent=1 // pred_check
      _
    $region135: #{discriminator_forward.1} parent=1 // pred_check_branch
      %272 = sbr.rel (0) target = $region137
    $region136: #{discriminator_forward.1} parent=1 // pred_region
      %273 = dma.done [#allocation24], 32
    $region137: #{discriminator_forward.1} parent=1 // pred_fallthru
      _
    // Predicated region
    $region138: #{discriminator_forward.1} parent=1 // pred_check
      _
    $region139: #{discriminator_forward.1} parent=1 // pred_check_branch
      %275 = sbr.rel (0) target = $region141
    $region140: #{discriminator_forward.1} parent=1 // pred_region
      %276 = dma.done [#allocation27], 2048
    $region141: #{discriminator_forward.1} parent=1 // pred_fallthru
      _
    // Predicated region
    $region142: #{discriminator_forward.1} parent=1 // pred_check
      _
    $region143: #{discriminator_forward.1} parent=1 // pred_check_branch
      %278 = sbr.rel (0) target = $region145
    $region144: #{discriminator_forward.1} parent=1 // pred_region
      %279 = dma.done [#allocation27], 16
    $region145: #{discriminator_forward.1} parent=1 // pred_fallthru
      _
    // Predicated region
    $region146: #{discriminator_forward.1} parent=1 // pred_check
      _
    $region147: #{discriminator_forward.1} parent=1 // pred_check_branch
      %281 = sbr.rel (0) target = $region149
    $region148: #{discriminator_forward.1} parent=1 // pred_region
      %282 = dma.done [#allocation30], 16
    $region149: #{discriminator_forward.1} parent=1 // pred_fallthru
      _
    %v284 = vld [vmem:[%s0] sm:$0xff]
    %v285 = vld [vmem:[%s0 + $0x8] sm:$0xff]
    %v286 = vld [vmem:[%s0 + $0x10] sm:$0xff]
    %v287 = vld [vmem:[%s0 + $0x18] sm:$0xf]
    %v288 = vld [vmem:[#allocation2] sm:$0xff]
    %v289 = vld [vmem:[#allocation2 + $0x8] sm:$0xff]
    %v290 = vld [vmem:[#allocation2 + $0x10] sm:$0xff]
    %v291 = vld [vmem:[#allocation2 + $0x18] sm:$0xff]
    %v292 = vld [vmem:[#allocation2 + $0x20] sm:$0xff]
    %v293 = vld [vmem:[#allocation2 + $0x28] sm:$0xff]
    %v294 = vld [vmem:[#allocation2 + $0x30] sm:$0xff]
    %v295 = vld [vmem:[#allocation2 + $0x38] sm:$0xff]
    %v296 = vld [vmem:[#allocation2 + $0x40] sm:$0xff]
    %v297 = vld [vmem:[#allocation2 + $0x48] sm:$0xff]
    %v298 = vld [vmem:[#allocation2 + $0x50] sm:$0xff]
    %v299 = vld [vmem:[#allocation2 + $0x58] sm:$0xff]
    %v300 = vld [vmem:[#allocation2 + $0x60] sm:$0xff]
    %v301 = vld [vmem:[#allocation2 + $0x68] sm:$0xff]
    %v302 = vld [vmem:[#allocation2 + $0x70] sm:$0xff]
    %v303 = vld [vmem:[#allocation2 + $0x78] sm:$0xff]
    %v304 = vld [vmem:[#allocation2 + $0x80] sm:$0xff]
    %v305 = vld [vmem:[#allocation2 + $0x88] sm:$0xff]
    %v306 = vld [vmem:[#allocation2 + $0x90] sm:$0xff]
    %v307 = vld [vmem:[#allocation2 + $0x98] sm:$0xff]
    %v308 = vld [vmem:[#allocation2 + $0xa0] sm:$0xff]
    %v309 = vld [vmem:[#allocation2 + $0xa8] sm:$0xff]
    %v310 = vld [vmem:[#allocation2 + $0xb0] sm:$0xff]
    %v311 = vld [vmem:[#allocation2 + $0xb8] sm:$0xff]
    %v312 = vld [vmem:[#allocation2 + $0xc0] sm:$0xff]
    %v313 = vld [vmem:[#allocation2 + $0xc8] sm:$0xff]
    %v314 = vld [vmem:[#allocation2 + $0xd0] sm:$0xff]
    %v315 = vld [vmem:[#allocation2 + $0xd8] sm:$0xff]
    %v316 = vld [vmem:[#allocation2 + $0xe0] sm:$0xff]
    %v317 = vld [vmem:[#allocation2 + $0xe8] sm:$0xff]
    %v318 = vld [vmem:[#allocation2 + $0xf0] sm:$0xff]
    %v319 = vld [vmem:[#allocation2 + $0xf8] sm:$0xff]
    %v320 = vld [vmem:[#allocation2 + $0x100] sm:$0xff]
    %v321 = vld [vmem:[#allocation2 + $0x108] sm:$0xff]
    %v322 = vld [vmem:[#allocation2 + $0x110] sm:$0xff]
    %v323 = vld [vmem:[#allocation2 + $0x118] sm:$0xff]
    %v324 = vld [vmem:[#allocation2 + $0x120] sm:$0xff]
    %v325 = vld [vmem:[#allocation2 + $0x128] sm:$0xff]
    %v326 = vld [vmem:[#allocation2 + $0x130] sm:$0xff]
    %v327 = vld [vmem:[#allocation2 + $0x138] sm:$0xff]
    %v328 = vld [vmem:[#allocation2 + $0x140] sm:$0xff]
    %v329 = vld [vmem:[#allocation2 + $0x148] sm:$0xff]
    %v330 = vld [vmem:[#allocation2 + $0x150] sm:$0xff]
    %v331 = vld [vmem:[#allocation2 + $0x158] sm:$0xff]
    %v332 = vld [vmem:[#allocation2 + $0x160] sm:$0xff]
    %v333 = vld [vmem:[#allocation2 + $0x168] sm:$0xff]
    %v334 = vld [vmem:[#allocation2 + $0x170] sm:$0xff]
    %v335 = vld [vmem:[#allocation2 + $0x178] sm:$0xff]
    %v336 = vld [vmem:[#allocation2 + $0x180] sm:$0xff]
    %v337 = vld [vmem:[#allocation2 + $0x188] sm:$0xff]
    %v338 = vld [vmem:[#allocation2 + $0x190] sm:$0xff]
    %v339 = vld [vmem:[#allocation2 + $0x198] sm:$0xff]
    %v340 = vld [vmem:[#allocation2 + $0x1a0] sm:$0xff]
    %v341 = vld [vmem:[#allocation2 + $0x1a8] sm:$0xff]
    %v342 = vld [vmem:[#allocation2 + $0x1b0] sm:$0xff]
    %v343 = vld [vmem:[#allocation2 + $0x1b8] sm:$0xff]
    %v344 = vld [vmem:[#allocation2 + $0x1c0] sm:$0xff]
    %v345 = vld [vmem:[#allocation2 + $0x1c8] sm:$0xff]
    %v346 = vld [vmem:[#allocation2 + $0x1d0] sm:$0xff]
    %v347 = vld [vmem:[#allocation2 + $0x1d8] sm:$0xff]
    %v348 = vld [vmem:[#allocation2 + $0x1e0] sm:$0xff]
    %v349 = vld [vmem:[#allocation2 + $0x1e8] sm:$0xff]
    %v350 = vld [vmem:[#allocation2 + $0x1f0] sm:$0xff]
    %v351 = vld [vmem:[#allocation2 + $0x1f8] sm:$0xff]
    %v352 = vld [vmem:[#allocation2 + $0x200] sm:$0xff]
    %v353 = vld [vmem:[#allocation2 + $0x208] sm:$0xff]
    %v354 = vld [vmem:[#allocation2 + $0x210] sm:$0xff]
    %v355 = vld [vmem:[#allocation2 + $0x218] sm:$0xff]
    %v356 = vld [vmem:[#allocation2 + $0x220] sm:$0xff]
    %v357 = vld [vmem:[#allocation2 + $0x228] sm:$0xff]
    %v358 = vld [vmem:[#allocation2 + $0x230] sm:$0xff]
    %v359 = vld [vmem:[#allocation2 + $0x238] sm:$0xff]
    %v360 = vld [vmem:[#allocation2 + $0x240] sm:$0xff]
    %v361 = vld [vmem:[#allocation2 + $0x248] sm:$0xff]
    %v362 = vld [vmem:[#allocation2 + $0x250] sm:$0xff]
    %v363 = vld [vmem:[#allocation2 + $0x258] sm:$0xff]
    %v364 = vld [vmem:[#allocation2 + $0x260] sm:$0xff]
    %v365 = vld [vmem:[#allocation2 + $0x268] sm:$0xff]
    %v366 = vld [vmem:[#allocation2 + $0x270] sm:$0xff]
    %v367 = vld [vmem:[#allocation2 + $0x278] sm:$0xff]
    %v368 = vld [vmem:[#allocation2 + $0x280] sm:$0xff]
    %v369 = vld [vmem:[#allocation2 + $0x288] sm:$0xff]
    %v370 = vld [vmem:[#allocation2 + $0x290] sm:$0xff]
    %v371 = vld [vmem:[#allocation2 + $0x298] sm:$0xff]
    %v372 = vld [vmem:[#allocation2 + $0x2a0] sm:$0xff]
    %v373 = vld [vmem:[#allocation2 + $0x2a8] sm:$0xff]
    %v374 = vld [vmem:[#allocation2 + $0x2b0] sm:$0xff]
    %v375 = vld [vmem:[#allocation2 + $0x2b8] sm:$0xff]
    %v376 = vld [vmem:[#allocation2 + $0x2c0] sm:$0xff]
    %v377 = vld [vmem:[#allocation2 + $0x2c8] sm:$0xff]
    %v378 = vld [vmem:[#allocation2 + $0x2d0] sm:$0xff]
    %v379 = vld [vmem:[#allocation2 + $0x2d8] sm:$0xff]
    %v380 = vld [vmem:[#allocation2 + $0x2e0] sm:$0xff]
    %v381 = vld [vmem:[#allocation2 + $0x2e8] sm:$0xff]
    %v382 = vld [vmem:[#allocation2 + $0x2f0] sm:$0xff]
    %v383 = vld [vmem:[#allocation2 + $0x2f8] sm:$0xff]
    %v384 = vld [vmem:[#allocation2 + $0x300] sm:$0xff]
    %v385 = vld [vmem:[#allocation2 + $0x308] sm:$0xff]
    %v386 = vld [vmem:[#allocation2 + $0x310] sm:$0xff]
    %v387 = vld [vmem:[#allocation2 + $0x318] sm:$0xff]
    %v388 = vld [vmem:[#allocation2 + $0x320] sm:$0xff]
    %v389 = vld [vmem:[#allocation2 + $0x328] sm:$0xff]
    %v390 = vld [vmem:[#allocation2 + $0x330] sm:$0xff]
    %v391 = vld [vmem:[#allocation2 + $0x338] sm:$0xff]
    %v392 = vld [vmem:[#allocation2 + $0x340] sm:$0xff]
    %v393 = vld [vmem:[#allocation2 + $0x348] sm:$0xff]
    %v394 = vld [vmem:[#allocation2 + $0x350] sm:$0xff]
    %v395 = vld [vmem:[#allocation2 + $0x358] sm:$0xff]
    %v396 = vld [vmem:[#allocation2 + $0x360] sm:$0xff]
    %v397 = vld [vmem:[#allocation2 + $0x368] sm:$0xff]
    %v398 = vld [vmem:[#allocation2 + $0x370] sm:$0xff]
    %v399 = vld [vmem:[#allocation2 + $0x378] sm:$0xff]
    %v400 = vld [vmem:[#allocation2 + $0x380] sm:$0xff]
    %v401 = vld [vmem:[#allocation2 + $0x388] sm:$0xff]
    %v402 = vld [vmem:[#allocation2 + $0x390] sm:$0xff]
    %v403 = vld [vmem:[#allocation2 + $0x398] sm:$0xff]
    %v404 = vld [vmem:[#allocation2 + $0x3a0] sm:$0xff]
    %v405 = vld [vmem:[#allocation2 + $0x3a8] sm:$0xff]
    %v406 = vld [vmem:[#allocation2 + $0x3b0] sm:$0xff]
    %v407 = vld [vmem:[#allocation2 + $0x3b8] sm:$0xff]
    %v408 = vld [vmem:[#allocation2 + $0x3c0] sm:$0xff]
    %v409 = vld [vmem:[#allocation2 + $0x3c8] sm:$0xff]
    %v410 = vld [vmem:[#allocation2 + $0x3d0] sm:$0xff]
    %v411 = vld [vmem:[#allocation2 + $0x3d8] sm:$0xff]
    %v412 = vld [vmem:[#allocation2 + $0x3e0] sm:$0xff]
    %v413 = vld [vmem:[#allocation2 + $0x3e8] sm:$0xff]
    %v414 = vld [vmem:[#allocation2 + $0x3f0] sm:$0xff]
    %v415 = vld [vmem:[#allocation2 + $0x3f8] sm:$0xff]
    %v416 = vld [vmem:[#allocation2 + $0x400] sm:$0xff]
    %v417 = vld [vmem:[#allocation2 + $0x408] sm:$0xff]
    %v418 = vld [vmem:[#allocation2 + $0x410] sm:$0xff]
    %v419 = vld [vmem:[#allocation2 + $0x418] sm:$0xff]
    %v420 = vld [vmem:[#allocation2 + $0x420] sm:$0xff]
    %v421 = vld [vmem:[#allocation2 + $0x428] sm:$0xff]
    %v422 = vld [vmem:[#allocation2 + $0x430] sm:$0xff]
    %v423 = vld [vmem:[#allocation2 + $0x438] sm:$0xff]
    %v424 = vld [vmem:[#allocation2 + $0x440] sm:$0xff]
    %v425 = vld [vmem:[#allocation2 + $0x448] sm:$0xff]
    %v426 = vld [vmem:[#allocation2 + $0x450] sm:$0xff]
    %v427 = vld [vmem:[#allocation2 + $0x458] sm:$0xff]
    %v428 = vld [vmem:[#allocation2 + $0x460] sm:$0xff]
    %v429 = vld [vmem:[#allocation2 + $0x468] sm:$0xff]
    %v430 = vld [vmem:[#allocation2 + $0x470] sm:$0xff]
    %v431 = vld [vmem:[#allocation2 + $0x478] sm:$0xff]
    %v432 = vld [vmem:[#allocation2 + $0x480] sm:$0xff]
    %v433 = vld [vmem:[#allocation2 + $0x488] sm:$0xff]
    %v434 = vld [vmem:[#allocation2 + $0x490] sm:$0xff]
    %v435 = vld [vmem:[#allocation2 + $0x498] sm:$0xff]
    %v436 = vld [vmem:[#allocation2 + $0x4a0] sm:$0xff]
    %v437 = vld [vmem:[#allocation2 + $0x4a8] sm:$0xff]
    %v438 = vld [vmem:[#allocation2 + $0x4b0] sm:$0xff]
    %v439 = vld [vmem:[#allocation2 + $0x4b8] sm:$0xff]
    %v440 = vld [vmem:[#allocation2 + $0x4c0] sm:$0xff]
    %v441 = vld [vmem:[#allocation2 + $0x4c8] sm:$0xff]
    %v442 = vld [vmem:[#allocation2 + $0x4d0] sm:$0xff]
    %v443 = vld [vmem:[#allocation2 + $0x4d8] sm:$0xff]
    %v444 = vld [vmem:[#allocation2 + $0x4e0] sm:$0xff]
    %v445 = vld [vmem:[#allocation2 + $0x4e8] sm:$0xff]
    %v446 = vld [vmem:[#allocation2 + $0x4f0] sm:$0xff]
    %v447 = vld [vmem:[#allocation2 + $0x4f8] sm:$0xff]
    %v448 = vld [vmem:[#allocation2 + $0x500] sm:$0xff]
    %v449 = vld [vmem:[#allocation2 + $0x508] sm:$0xff]
    %v450 = vld [vmem:[#allocation2 + $0x510] sm:$0xff]
    %v451 = vld [vmem:[#allocation2 + $0x518] sm:$0xff]
    %v452 = vld [vmem:[#allocation2 + $0x520] sm:$0xff]
    %v453 = vld [vmem:[#allocation2 + $0x528] sm:$0xff]
    %v454 = vld [vmem:[#allocation2 + $0x530] sm:$0xff]
    %v455 = vld [vmem:[#allocation2 + $0x538] sm:$0xff]
    %v456 = vld [vmem:[#allocation2 + $0x540] sm:$0xff]
    %v457 = vld [vmem:[#allocation2 + $0x548] sm:$0xff]
    %v458 = vld [vmem:[#allocation2 + $0x550] sm:$0xff]
    %v459 = vld [vmem:[#allocation2 + $0x558] sm:$0xff]
    %v460 = vld [vmem:[#allocation2 + $0x560] sm:$0xff]
    %v461 = vld [vmem:[#allocation2 + $0x568] sm:$0xff]
    %v462 = vld [vmem:[#allocation2 + $0x570] sm:$0xff]
    %v463 = vld [vmem:[#allocation2 + $0x578] sm:$0xff]
    %v464 = vld [vmem:[#allocation2 + $0x580] sm:$0xff]
    %v465 = vld [vmem:[#allocation2 + $0x588] sm:$0xff]
    %v466 = vld [vmem:[#allocation2 + $0x590] sm:$0xff]
    %v467 = vld [vmem:[#allocation2 + $0x598] sm:$0xff]
    %v468 = vld [vmem:[#allocation2 + $0x5a0] sm:$0xff]
    %v469 = vld [vmem:[#allocation2 + $0x5a8] sm:$0xff]
    %v470 = vld [vmem:[#allocation2 + $0x5b0] sm:$0xff]
    %v471 = vld [vmem:[#allocation2 + $0x5b8] sm:$0xff]
    %v472 = vld [vmem:[#allocation2 + $0x5c0] sm:$0xff]
    %v473 = vld [vmem:[#allocation2 + $0x5c8] sm:$0xff]
    %v474 = vld [vmem:[#allocation2 + $0x5d0] sm:$0xff]
    %v475 = vld [vmem:[#allocation2 + $0x5d8] sm:$0xff]
    %v476 = vld [vmem:[#allocation2 + $0x5e0] sm:$0xff]
    %v477 = vld [vmem:[#allocation2 + $0x5e8] sm:$0xff]
    %v478 = vld [vmem:[#allocation2 + $0x5f0] sm:$0xff]
    %v479 = vld [vmem:[#allocation2 + $0x5f8] sm:$0xff]
    %v480 = vld [vmem:[#allocation2 + $0x600] sm:$0xff]
    %v481 = vld [vmem:[#allocation2 + $0x608] sm:$0xff]
    %v482 = vld [vmem:[#allocation2 + $0x610] sm:$0xff]
    %v483 = vld [vmem:[#allocation2 + $0x618] sm:$0xff]
    %v484 = vld [vmem:[#allocation2 + $0x620] sm:$0xff]
    %v485 = vld [vmem:[#allocation2 + $0x628] sm:$0xff]
    %v486 = vld [vmem:[#allocation2 + $0x630] sm:$0xff]
    %v487 = vld [vmem:[#allocation2 + $0x638] sm:$0xff]
    %v488 = vld [vmem:[#allocation2 + $0x640] sm:$0xff]
    %v489 = vld [vmem:[#allocation2 + $0x648] sm:$0xff]
    %v490 = vld [vmem:[#allocation2 + $0x650] sm:$0xff]
    %v491 = vld [vmem:[#allocation2 + $0x658] sm:$0xff]
    %v492 = vld [vmem:[#allocation2 + $0x660] sm:$0xff]
    %v493 = vld [vmem:[#allocation2 + $0x668] sm:$0xff]
    %v494 = vld [vmem:[#allocation2 + $0x670] sm:$0xff]
    %v495 = vld [vmem:[#allocation2 + $0x678] sm:$0xff]
    %v496 = vld [vmem:[#allocation2 + $0x680] sm:$0xff]
    %v497 = vld [vmem:[#allocation2 + $0x688] sm:$0xff]
    %v498 = vld [vmem:[#allocation2 + $0x690] sm:$0xff]
    %v499 = vld [vmem:[#allocation2 + $0x698] sm:$0xff]
    %v500 = vld [vmem:[#allocation2 + $0x6a0] sm:$0xff]
    %v501 = vld [vmem:[#allocation2 + $0x6a8] sm:$0xff]
    %v502 = vld [vmem:[#allocation2 + $0x6b0] sm:$0xff]
    %v503 = vld [vmem:[#allocation2 + $0x6b8] sm:$0xff]
    %v504 = vld [vmem:[#allocation2 + $0x6c0] sm:$0xff]
    %v505 = vld [vmem:[#allocation2 + $0x6c8] sm:$0xff]
    %v506 = vld [vmem:[#allocation2 + $0x6d0] sm:$0xff]
    %v507 = vld [vmem:[#allocation2 + $0x6d8] sm:$0xff]
    %v508 = vld [vmem:[#allocation2 + $0x6e0] sm:$0xff]
    %v509 = vld [vmem:[#allocation2 + $0x6e8] sm:$0xff]
    %v510 = vld [vmem:[#allocation2 + $0x6f0] sm:$0xff]
    %v511 = vld [vmem:[#allocation2 + $0x6f8] sm:$0xff]
    %v512 = vld [vmem:[#allocation2 + $0x700] sm:$0xff]
    %v513 = vld [vmem:[#allocation2 + $0x708] sm:$0xff]
    %v514 = vld [vmem:[#allocation2 + $0x710] sm:$0xff]
    %v515 = vld [vmem:[#allocation2 + $0x718] sm:$0xff]
    %v516 = vld [vmem:[#allocation2 + $0x720] sm:$0xff]
    %v517 = vld [vmem:[#allocation2 + $0x728] sm:$0xff]
    %v518 = vld [vmem:[#allocation2 + $0x730] sm:$0xff]
    %v519 = vld [vmem:[#allocation2 + $0x738] sm:$0xff]
    %v520 = vld [vmem:[#allocation2 + $0x740] sm:$0xff]
    %v521 = vld [vmem:[#allocation2 + $0x748] sm:$0xff]
    %v522 = vld [vmem:[#allocation2 + $0x750] sm:$0xff]
    %v523 = vld [vmem:[#allocation2 + $0x758] sm:$0xff]
    %v524 = vld [vmem:[#allocation2 + $0x760] sm:$0xff]
    %v525 = vld [vmem:[#allocation2 + $0x768] sm:$0xff]
    %v526 = vld [vmem:[#allocation2 + $0x770] sm:$0xff]
    %v527 = vld [vmem:[#allocation2 + $0x778] sm:$0xff]
    %v528 = vld [vmem:[#allocation2 + $0x780] sm:$0xff]
    %v529 = vld [vmem:[#allocation2 + $0x788] sm:$0xff]
    %v530 = vld [vmem:[#allocation2 + $0x790] sm:$0xff]
    %v531 = vld [vmem:[#allocation2 + $0x798] sm:$0xff]
    %v532 = vld [vmem:[#allocation2 + $0x7a0] sm:$0xff]
    %v533 = vld [vmem:[#allocation2 + $0x7a8] sm:$0xff]
    %v534 = vld [vmem:[#allocation2 + $0x7b0] sm:$0xff]
    %v535 = vld [vmem:[#allocation2 + $0x7b8] sm:$0xff]
    %v536 = vld [vmem:[#allocation2 + $0x7c0] sm:$0xff]
    %v537 = vld [vmem:[#allocation2 + $0x7c8] sm:$0xff]
    %v538 = vld [vmem:[#allocation2 + $0x7d0] sm:$0xff]
    %v539 = vld [vmem:[#allocation2 + $0x7d8] sm:$0xff]
    %v540 = vld [vmem:[#allocation2 + $0x7e0] sm:$0xff]
    %v541 = vld [vmem:[#allocation2 + $0x7e8] sm:$0xff]
    %v542 = vld [vmem:[#allocation2 + $0x7f0] sm:$0xff]
    %v543 = vld [vmem:[#allocation2 + $0x7f8] sm:$0xff]
    %v544 = vld [vmem:[#allocation2 + $0x800] sm:$0xff]
    %v545 = vld [vmem:[#allocation2 + $0x808] sm:$0xff]
    %v546 = vld [vmem:[#allocation2 + $0x810] sm:$0xff]
    %v547 = vld [vmem:[#allocation2 + $0x818] sm:$0xff]
    %v548 = vld [vmem:[#allocation2 + $0x820] sm:$0xff]
    %v549 = vld [vmem:[#allocation2 + $0x828] sm:$0xff]
    %v550 = vld [vmem:[#allocation2 + $0x830] sm:$0xff]
    %v551 = vld [vmem:[#allocation2 + $0x838] sm:$0xff]
    %v552 = vld [vmem:[#allocation2 + $0x840] sm:$0xff]
    %v553 = vld [vmem:[#allocation2 + $0x848] sm:$0xff]
    %v554 = vld [vmem:[#allocation2 + $0x850] sm:$0xff]
    %v555 = vld [vmem:[#allocation2 + $0x858] sm:$0xff]
    %v556 = vld [vmem:[#allocation2 + $0x860] sm:$0xff]
    %v557 = vld [vmem:[#allocation2 + $0x868] sm:$0xff]
    %v558 = vld [vmem:[#allocation2 + $0x870] sm:$0xff]
    %v559 = vld [vmem:[#allocation2 + $0x878] sm:$0xff]
    %v560 = vld [vmem:[#allocation2 + $0x880] sm:$0xff]
    %v561 = vld [vmem:[#allocation2 + $0x888] sm:$0xff]
    %v562 = vld [vmem:[#allocation2 + $0x890] sm:$0xff]
    %v563 = vld [vmem:[#allocation2 + $0x898] sm:$0xff]
    %v564 = vld [vmem:[#allocation2 + $0x8a0] sm:$0xff]
    %v565 = vld [vmem:[#allocation2 + $0x8a8] sm:$0xff]
    %v566 = vld [vmem:[#allocation2 + $0x8b0] sm:$0xff]
    %v567 = vld [vmem:[#allocation2 + $0x8b8] sm:$0xff]
    %v568 = vld [vmem:[#allocation2 + $0x8c0] sm:$0xff]
    %v569 = vld [vmem:[#allocation2 + $0x8c8] sm:$0xff]
    %v570 = vld [vmem:[#allocation2 + $0x8d0] sm:$0xff]
    %v571 = vld [vmem:[#allocation2 + $0x8d8] sm:$0xff]
    %v572 = vld [vmem:[#allocation2 + $0x8e0] sm:$0xff]
    %v573 = vld [vmem:[#allocation2 + $0x8e8] sm:$0xff]
    %v574 = vld [vmem:[#allocation2 + $0x8f0] sm:$0xff]
    %v575 = vld [vmem:[#allocation2 + $0x8f8] sm:$0xff]
    %v576 = vld [vmem:[#allocation2 + $0x900] sm:$0xff]
    %v577 = vld [vmem:[#allocation2 + $0x908] sm:$0xff]
    %v578 = vld [vmem:[#allocation2 + $0x910] sm:$0xff]
    %v579 = vld [vmem:[#allocation2 + $0x918] sm:$0xff]
    %v580 = vld [vmem:[#allocation2 + $0x920] sm:$0xff]
    %v581 = vld [vmem:[#allocation2 + $0x928] sm:$0xff]
    %v582 = vld [vmem:[#allocation2 + $0x930] sm:$0xff]
    %v583 = vld [vmem:[#allocation2 + $0x938] sm:$0xff]
    %v584 = vld [vmem:[#allocation2 + $0x940] sm:$0xff]
    %v585 = vld [vmem:[#allocation2 + $0x948] sm:$0xff]
    %v586 = vld [vmem:[#allocation2 + $0x950] sm:$0xff]
    %v587 = vld [vmem:[#allocation2 + $0x958] sm:$0xff]
    %v588 = vld [vmem:[#allocation2 + $0x960] sm:$0xff]
    %v589 = vld [vmem:[#allocation2 + $0x968] sm:$0xff]
    %v590 = vld [vmem:[#allocation2 + $0x970] sm:$0xff]
    %v591 = vld [vmem:[#allocation2 + $0x978] sm:$0xff]
    %v592 = vld [vmem:[#allocation2 + $0x980] sm:$0xff]
    %v593 = vld [vmem:[#allocation2 + $0x988] sm:$0xff]
    %v594 = vld [vmem:[#allocation2 + $0x990] sm:$0xff]
    %v595 = vld [vmem:[#allocation2 + $0x998] sm:$0xff]
    %v596 = vld [vmem:[#allocation2 + $0x9a0] sm:$0xff]
    %v597 = vld [vmem:[#allocation2 + $0x9a8] sm:$0xff]
    %v598 = vld [vmem:[#allocation2 + $0x9b0] sm:$0xff]
    %v599 = vld [vmem:[#allocation2 + $0x9b8] sm:$0xff]
    %v600 = vld [vmem:[#allocation2 + $0x9c0] sm:$0xff]
    %v601 = vld [vmem:[#allocation2 + $0x9c8] sm:$0xff]
    %v602 = vld [vmem:[#allocation2 + $0x9d0] sm:$0xff]
    %v603 = vld [vmem:[#allocation2 + $0x9d8] sm:$0xff]
    %v604 = vld [vmem:[#allocation2 + $0x9e0] sm:$0xff]
    %v605 = vld [vmem:[#allocation2 + $0x9e8] sm:$0xff]
    %v606 = vld [vmem:[#allocation2 + $0x9f0] sm:$0xff]
    %v607 = vld [vmem:[#allocation2 + $0x9f8] sm:$0xff]
    %v608 = vld [vmem:[#allocation2 + $0xa00] sm:$0xff]
    %v609 = vld [vmem:[#allocation2 + $0xa08] sm:$0xff]
    %v610 = vld [vmem:[#allocation2 + $0xa10] sm:$0xff]
    %v611 = vld [vmem:[#allocation2 + $0xa18] sm:$0xff]
    %v612 = vld [vmem:[#allocation2 + $0xa20] sm:$0xff]
    %v613 = vld [vmem:[#allocation2 + $0xa28] sm:$0xff]
    %v614 = vld [vmem:[#allocation2 + $0xa30] sm:$0xff]
    %v615 = vld [vmem:[#allocation2 + $0xa38] sm:$0xff]
    %v616 = vld [vmem:[#allocation2 + $0xa40] sm:$0xff]
    %v617 = vld [vmem:[#allocation2 + $0xa48] sm:$0xff]
    %v618 = vld [vmem:[#allocation2 + $0xa50] sm:$0xff]
    %v619 = vld [vmem:[#allocation2 + $0xa58] sm:$0xff]
    %v620 = vld [vmem:[#allocation2 + $0xa60] sm:$0xff]
    %v621 = vld [vmem:[#allocation2 + $0xa68] sm:$0xff]
    %v622 = vld [vmem:[#allocation2 + $0xa70] sm:$0xff]
    %v623 = vld [vmem:[#allocation2 + $0xa78] sm:$0xff]
    %v624 = vld [vmem:[#allocation2 + $0xa80] sm:$0xff]
    %v625 = vld [vmem:[#allocation2 + $0xa88] sm:$0xff]
    %v626 = vld [vmem:[#allocation2 + $0xa90] sm:$0xff]
    %v627 = vld [vmem:[#allocation2 + $0xa98] sm:$0xff]
    %v628 = vld [vmem:[#allocation2 + $0xaa0] sm:$0xff]
    %v629 = vld [vmem:[#allocation2 + $0xaa8] sm:$0xff]
    %v630 = vld [vmem:[#allocation2 + $0xab0] sm:$0xff]
    %v631 = vld [vmem:[#allocation2 + $0xab8] sm:$0xff]
    %v632 = vld [vmem:[#allocation2 + $0xac0] sm:$0xff]
    %v633 = vld [vmem:[#allocation2 + $0xac8] sm:$0xff]
    %v634 = vld [vmem:[#allocation2 + $0xad0] sm:$0xff]
    %v635 = vld [vmem:[#allocation2 + $0xad8] sm:$0xff]
    %v636 = vld [vmem:[#allocation2 + $0xae0] sm:$0xff]
    %v637 = vld [vmem:[#allocation2 + $0xae8] sm:$0xff]
    %v638 = vld [vmem:[#allocation2 + $0xaf0] sm:$0xff]
    %v639 = vld [vmem:[#allocation2 + $0xaf8] sm:$0xff]
    %v640 = vld [vmem:[#allocation2 + $0xb00] sm:$0xff]
    %v641 = vld [vmem:[#allocation2 + $0xb08] sm:$0xff]
    %v642 = vld [vmem:[#allocation2 + $0xb10] sm:$0xff]
    %v643 = vld [vmem:[#allocation2 + $0xb18] sm:$0xff]
    %v644 = vld [vmem:[#allocation2 + $0xb20] sm:$0xff]
    %v645 = vld [vmem:[#allocation2 + $0xb28] sm:$0xff]
    %v646 = vld [vmem:[#allocation2 + $0xb30] sm:$0xff]
    %v647 = vld [vmem:[#allocation2 + $0xb38] sm:$0xff]
    %v648 = vld [vmem:[#allocation2 + $0xb40] sm:$0xff]
    %v649 = vld [vmem:[#allocation2 + $0xb48] sm:$0xff]
    %v650 = vld [vmem:[#allocation2 + $0xb50] sm:$0xff]
    %v651 = vld [vmem:[#allocation2 + $0xb58] sm:$0xff]
    %v652 = vld [vmem:[#allocation2 + $0xb60] sm:$0xff]
    %v653 = vld [vmem:[#allocation2 + $0xb68] sm:$0xff]
    %v654 = vld [vmem:[#allocation2 + $0xb70] sm:$0xff]
    %v655 = vld [vmem:[#allocation2 + $0xb78] sm:$0xff]
    %v656 = vld [vmem:[#allocation2 + $0xb80] sm:$0xff]
    %v657 = vld [vmem:[#allocation2 + $0xb88] sm:$0xff]
    %v658 = vld [vmem:[#allocation2 + $0xb90] sm:$0xff]
    %v659 = vld [vmem:[#allocation2 + $0xb98] sm:$0xff]
    %v660 = vld [vmem:[#allocation2 + $0xba0] sm:$0xff]
    %v661 = vld [vmem:[#allocation2 + $0xba8] sm:$0xff]
    %v662 = vld [vmem:[#allocation2 + $0xbb0] sm:$0xff]
    %v663 = vld [vmem:[#allocation2 + $0xbb8] sm:$0xff]
    %v664 = vld [vmem:[#allocation2 + $0xbc0] sm:$0xff]
    %v665 = vld [vmem:[#allocation2 + $0xbc8] sm:$0xff]
    %v666 = vld [vmem:[#allocation2 + $0xbd0] sm:$0xff]
    %v667 = vld [vmem:[#allocation2 + $0xbd8] sm:$0xff]
    %v668 = vld [vmem:[#allocation2 + $0xbe0] sm:$0xff]
    %v669 = vld [vmem:[#allocation2 + $0xbe8] sm:$0xff]
    %v670 = vld [vmem:[#allocation2 + $0xbf0] sm:$0xff]
    %v671 = vld [vmem:[#allocation2 + $0xbf8] sm:$0xff]
    %v672 = vld [vmem:[#allocation2 + $0xc00] sm:$0xff]
    %v673 = vld [vmem:[#allocation2 + $0xc08] sm:$0xff]
    %v674 = vld [vmem:[#allocation2 + $0xc10] sm:$0xff]
    %v675 = vld [vmem:[#allocation2 + $0xc18] sm:$0xff]
    %v676 = vld [vmem:[#allocation2 + $0xc20] sm:$0xff]
    %v677 = vld [vmem:[#allocation2 + $0xc28] sm:$0xff]
    %v678 = vld [vmem:[#allocation2 + $0xc30] sm:$0xff]
    %v679 = vld [vmem:[#allocation2 + $0xc38] sm:$0xff]
    %v680 = vld [vmem:[#allocation2 + $0xc40] sm:$0xff]
    %v681 = vld [vmem:[#allocation2 + $0xc48] sm:$0xff]
    %v682 = vld [vmem:[#allocation2 + $0xc50] sm:$0xff]
    %v683 = vld [vmem:[#allocation2 + $0xc58] sm:$0xff]
    %v684 = vld [vmem:[#allocation2 + $0xc60] sm:$0xff]
    %v685 = vld [vmem:[#allocation2 + $0xc68] sm:$0xff]
    %v686 = vld [vmem:[#allocation2 + $0xc70] sm:$0xff]
    %v687 = vld [vmem:[#allocation2 + $0xc78] sm:$0xff]
    %v688 = vld [vmem:[#allocation2 + $0xc80] sm:$0xff]
    %v689 = vld [vmem:[#allocation2 + $0xc88] sm:$0xff]
    %v690 = vld [vmem:[#allocation2 + $0xc90] sm:$0xff]
    %v691 = vld [vmem:[#allocation2 + $0xc98] sm:$0xff]
    %v692 = vld [vmem:[#allocation2 + $0xca0] sm:$0xff]
    %v693 = vld [vmem:[#allocation2 + $0xca8] sm:$0xff]
    %v694 = vld [vmem:[#allocation2 + $0xcb0] sm:$0xff]
    %v695 = vld [vmem:[#allocation2 + $0xcb8] sm:$0xff]
    %v696 = vld [vmem:[#allocation2 + $0xcc0] sm:$0xff]
    %v697 = vld [vmem:[#allocation2 + $0xcc8] sm:$0xff]
    %v698 = vld [vmem:[#allocation2 + $0xcd0] sm:$0xff]
    %v699 = vld [vmem:[#allocation2 + $0xcd8] sm:$0xff]
    %v700 = vld [vmem:[#allocation2 + $0xce0] sm:$0xff]
    %v701 = vld [vmem:[#allocation2 + $0xce8] sm:$0xff]
    %v702 = vld [vmem:[#allocation2 + $0xcf0] sm:$0xff]
    %v703 = vld [vmem:[#allocation2 + $0xcf8] sm:$0xff]
    %v704 = vld [vmem:[#allocation2 + $0xd00] sm:$0xff]
    %v705 = vld [vmem:[#allocation2 + $0xd08] sm:$0xff]
    %v706 = vld [vmem:[#allocation2 + $0xd10] sm:$0xff]
    %v707 = vld [vmem:[#allocation2 + $0xd18] sm:$0xff]
    %v708 = vld [vmem:[#allocation2 + $0xd20] sm:$0xff]
    %v709 = vld [vmem:[#allocation2 + $0xd28] sm:$0xff]
    %v710 = vld [vmem:[#allocation2 + $0xd30] sm:$0xff]
    %v711 = vld [vmem:[#allocation2 + $0xd38] sm:$0xff]
    %v712 = vld [vmem:[#allocation2 + $0xd40] sm:$0xff]
    %v713 = vld [vmem:[#allocation2 + $0xd48] sm:$0xff]
    %v714 = vld [vmem:[#allocation2 + $0xd50] sm:$0xff]
    %v715 = vld [vmem:[#allocation2 + $0xd58] sm:$0xff]
    %v716 = vld [vmem:[#allocation2 + $0xd60] sm:$0xff]
    %v717 = vld [vmem:[#allocation2 + $0xd68] sm:$0xff]
    %v718 = vld [vmem:[#allocation2 + $0xd70] sm:$0xff]
    %v719 = vld [vmem:[#allocation2 + $0xd78] sm:$0xff]
    %v720 = vld [vmem:[#allocation2 + $0xd80] sm:$0xff]
    %v721 = vld [vmem:[#allocation2 + $0xd88] sm:$0xff]
    %v722 = vld [vmem:[#allocation2 + $0xd90] sm:$0xff]
    %v723 = vld [vmem:[#allocation2 + $0xd98] sm:$0xff]
    %v724 = vld [vmem:[#allocation2 + $0xda0] sm:$0xff]
    %v725 = vld [vmem:[#allocation2 + $0xda8] sm:$0xff]
    %v726 = vld [vmem:[#allocation2 + $0xdb0] sm:$0xff]
    %v727 = vld [vmem:[#allocation2 + $0xdb8] sm:$0xff]
    %v728 = vld [vmem:[#allocation2 + $0xdc0] sm:$0xff]
    %v729 = vld [vmem:[#allocation2 + $0xdc8] sm:$0xff]
    %v730 = vld [vmem:[#allocation2 + $0xdd0] sm:$0xff]
    %v731 = vld [vmem:[#allocation2 + $0xdd8] sm:$0xff]
    %v732 = vld [vmem:[#allocation2 + $0xde0] sm:$0xff]
    %v733 = vld [vmem:[#allocation2 + $0xde8] sm:$0xff]
    %v734 = vld [vmem:[#allocation2 + $0xdf0] sm:$0xff]
    %v735 = vld [vmem:[#allocation2 + $0xdf8] sm:$0xff]
    %v736 = vld [vmem:[#allocation5] sm:$0xff]
    %v737 = vld [vmem:[#allocation7] sm:$0xff]
    %v742 = vunpack.c.l.b16 %v284
    %v743 = vunpack.c.h.b16 %v284
    %v744 = vunpack.c.l.b16 %v285
    %v745 = vunpack.c.h.b16 %v285
    %v746 = vunpack.c.l.b16 %v286
    %v747 = vunpack.c.h.b16 %v286
    %v748 = vunpack.c.l.b16 %v287
    %v749 = vpack.c.b16 %v742, %v742
    %v750 = vpack.c.b16 %v743, %v743
    %v751 = vpack.c.b16 %v744, %v744
    %v752 = vpack.c.b16 %v745, %v745
    %v753 = vpack.c.b16 %v746, %v746
    %v754 = vpack.c.b16 %v747, %v747
    %v755 = vpack.c.b16 %v748, %v748
    %v1211 = vunpack.c.l.b16 %v288
    %v1212 = vunpack.c.h.b16 %v288
    %v1213 = vunpack.c.l.b16 %v289
    %v1214 = vunpack.c.h.b16 %v289
    %v1215 = vunpack.c.l.b16 %v290
    %v1216 = vunpack.c.h.b16 %v290
    %v1217 = vunpack.c.l.b16 %v291
    %v1218 = vunpack.c.h.b16 %v291
    %v1219 = vunpack.c.l.b16 %v292
    %v1220 = vunpack.c.h.b16 %v292
    %v1221 = vunpack.c.l.b16 %v293
    %v1222 = vunpack.c.h.b16 %v293
    %v1223 = vunpack.c.l.b16 %v294
    %v1224 = vunpack.c.h.b16 %v294
    %v1225 = vunpack.c.l.b16 %v295
    %v1226 = vunpack.c.h.b16 %v295
    %v1227 = vunpack.c.l.b16 %v296
    %v1228 = vunpack.c.h.b16 %v296
    %v1229 = vunpack.c.l.b16 %v297
    %v1230 = vunpack.c.h.b16 %v297
    %v1231 = vunpack.c.l.b16 %v298
    %v1232 = vunpack.c.h.b16 %v298
    %v1233 = vunpack.c.l.b16 %v299
    %v1234 = vunpack.c.h.b16 %v299
    %v1235 = vunpack.c.l.b16 %v300
    %v1236 = vunpack.c.h.b16 %v300
    %v1237 = vunpack.c.l.b16 %v301
    %v1238 = vunpack.c.h.b16 %v301
    %v1239 = vunpack.c.l.b16 %v302
    %v1240 = vunpack.c.h.b16 %v302
    %v1241 = vunpack.c.l.b16 %v303
    %v1242 = vunpack.c.h.b16 %v303
    %v1243 = vunpack.c.l.b16 %v304
    %v1244 = vunpack.c.h.b16 %v304
    %v1245 = vunpack.c.l.b16 %v305
    %v1246 = vunpack.c.h.b16 %v305
    %v1247 = vunpack.c.l.b16 %v306
    %v1248 = vunpack.c.h.b16 %v306
    %v1249 = vunpack.c.l.b16 %v307
    %v1250 = vunpack.c.h.b16 %v307
    %v1251 = vunpack.c.l.b16 %v308
    %v1252 = vunpack.c.h.b16 %v308
    %v1253 = vunpack.c.l.b16 %v309
    %v1254 = vunpack.c.h.b16 %v309
    %v1255 = vunpack.c.l.b16 %v310
    %v1256 = vunpack.c.h.b16 %v310
    %v1257 = vunpack.c.l.b16 %v311
    %v1258 = vunpack.c.h.b16 %v311
    %v1259 = vunpack.c.l.b16 %v312
    %v1260 = vunpack.c.h.b16 %v312
    %v1261 = vunpack.c.l.b16 %v313
    %v1262 = vunpack.c.h.b16 %v313
    %v1263 = vunpack.c.l.b16 %v314
    %v1264 = vunpack.c.h.b16 %v314
    %v1265 = vunpack.c.l.b16 %v315
    %v1266 = vunpack.c.h.b16 %v315
    %v1267 = vunpack.c.l.b16 %v316
    %v1268 = vunpack.c.h.b16 %v316
    %v1269 = vunpack.c.l.b16 %v317
    %v1270 = vunpack.c.h.b16 %v317
    %v1271 = vunpack.c.l.b16 %v318
    %v1272 = vunpack.c.h.b16 %v318
    %v1273 = vunpack.c.l.b16 %v319
    %v1274 = vunpack.c.h.b16 %v319
    %v1275 = vunpack.c.l.b16 %v320
    %v1276 = vunpack.c.h.b16 %v320
    %v1277 = vunpack.c.l.b16 %v321
    %v1278 = vunpack.c.h.b16 %v321
    %v1279 = vunpack.c.l.b16 %v322
    %v1280 = vunpack.c.h.b16 %v322
    %v1281 = vunpack.c.l.b16 %v323
    %v1282 = vunpack.c.h.b16 %v323
    %v1283 = vunpack.c.l.b16 %v324
    %v1284 = vunpack.c.h.b16 %v324
    %v1285 = vunpack.c.l.b16 %v325
    %v1286 = vunpack.c.h.b16 %v325
    %v1287 = vunpack.c.l.b16 %v326
    %v1288 = vunpack.c.h.b16 %v326
    %v1289 = vunpack.c.l.b16 %v327
    %v1290 = vunpack.c.h.b16 %v327
    %v1291 = vunpack.c.l.b16 %v328
    %v1292 = vunpack.c.h.b16 %v328
    %v1293 = vunpack.c.l.b16 %v329
    %v1294 = vunpack.c.h.b16 %v329
    %v1295 = vunpack.c.l.b16 %v330
    %v1296 = vunpack.c.h.b16 %v330
    %v1297 = vunpack.c.l.b16 %v331
    %v1298 = vunpack.c.h.b16 %v331
    %v1299 = vunpack.c.l.b16 %v332
    %v1300 = vunpack.c.h.b16 %v332
    %v1301 = vunpack.c.l.b16 %v333
    %v1302 = vunpack.c.h.b16 %v333
    %v1303 = vunpack.c.l.b16 %v334
    %v1304 = vunpack.c.h.b16 %v334
    %v1305 = vunpack.c.l.b16 %v335
    %v1306 = vunpack.c.h.b16 %v335
    %v1307 = vunpack.c.l.b16 %v336
    %v1308 = vunpack.c.h.b16 %v336
    %v1309 = vunpack.c.l.b16 %v337
    %v1310 = vunpack.c.h.b16 %v337
    %v1311 = vunpack.c.l.b16 %v338
    %v1312 = vunpack.c.h.b16 %v338
    %v1313 = vunpack.c.l.b16 %v339
    %v1314 = vunpack.c.h.b16 %v339
    %v1315 = vunpack.c.l.b16 %v340
    %v1316 = vunpack.c.h.b16 %v340
    %v1317 = vunpack.c.l.b16 %v341
    %v1318 = vunpack.c.h.b16 %v341
    %v1319 = vunpack.c.l.b16 %v342
    %v1320 = vunpack.c.h.b16 %v342
    %v1321 = vunpack.c.l.b16 %v343
    %v1322 = vunpack.c.h.b16 %v343
    %v1323 = vunpack.c.l.b16 %v344
    %v1324 = vunpack.c.h.b16 %v344
    %v1325 = vunpack.c.l.b16 %v345
    %v1326 = vunpack.c.h.b16 %v345
    %v1327 = vunpack.c.l.b16 %v346
    %v1328 = vunpack.c.h.b16 %v346
    %v1329 = vunpack.c.l.b16 %v347
    %v1330 = vunpack.c.h.b16 %v347
    %v1331 = vunpack.c.l.b16 %v348
    %v1332 = vunpack.c.h.b16 %v348
    %v1333 = vunpack.c.l.b16 %v349
    %v1334 = vunpack.c.h.b16 %v349
    %v1335 = vunpack.c.l.b16 %v350
    %v1336 = vunpack.c.h.b16 %v350
    %v1337 = vunpack.c.l.b16 %v351
    %v1338 = vunpack.c.h.b16 %v351
    %v1339 = vunpack.c.l.b16 %v352
    %v1340 = vunpack.c.h.b16 %v352
    %v1341 = vunpack.c.l.b16 %v353
    %v1342 = vunpack.c.h.b16 %v353
    %v1343 = vunpack.c.l.b16 %v354
    %v1344 = vunpack.c.h.b16 %v354
    %v1345 = vunpack.c.l.b16 %v355
    %v1346 = vunpack.c.h.b16 %v355
    %v1347 = vunpack.c.l.b16 %v356
    %v1348 = vunpack.c.h.b16 %v356
    %v1349 = vunpack.c.l.b16 %v357
    %v1350 = vunpack.c.h.b16 %v357
    %v1351 = vunpack.c.l.b16 %v358
    %v1352 = vunpack.c.h.b16 %v358
    %v1353 = vunpack.c.l.b16 %v359
    %v1354 = vunpack.c.h.b16 %v359
    %v1355 = vunpack.c.l.b16 %v360
    %v1356 = vunpack.c.h.b16 %v360
    %v1357 = vunpack.c.l.b16 %v361
    %v1358 = vunpack.c.h.b16 %v361
    %v1359 = vunpack.c.l.b16 %v362
    %v1360 = vunpack.c.h.b16 %v362
    %v1361 = vunpack.c.l.b16 %v363
    %v1362 = vunpack.c.h.b16 %v363
    %v1363 = vunpack.c.l.b16 %v364
    %v1364 = vunpack.c.h.b16 %v364
    %v1365 = vunpack.c.l.b16 %v365
    %v1366 = vunpack.c.h.b16 %v365
    %v1367 = vunpack.c.l.b16 %v366
    %v1368 = vunpack.c.h.b16 %v366
    %v1369 = vunpack.c.l.b16 %v367
    %v1370 = vunpack.c.h.b16 %v367
    %v1371 = vunpack.c.l.b16 %v368
    %v1372 = vunpack.c.h.b16 %v368
    %v1373 = vunpack.c.l.b16 %v369
    %v1374 = vunpack.c.h.b16 %v369
    %v1375 = vunpack.c.l.b16 %v370
    %v1376 = vunpack.c.h.b16 %v370
    %v1377 = vunpack.c.l.b16 %v371
    %v1378 = vunpack.c.h.b16 %v371
    %v1379 = vunpack.c.l.b16 %v372
    %v1380 = vunpack.c.h.b16 %v372
    %v1381 = vunpack.c.l.b16 %v373
    %v1382 = vunpack.c.h.b16 %v373
    %v1383 = vunpack.c.l.b16 %v374
    %v1384 = vunpack.c.h.b16 %v374
    %v1385 = vunpack.c.l.b16 %v375
    %v1386 = vunpack.c.h.b16 %v375
    %v1387 = vunpack.c.l.b16 %v376
    %v1388 = vunpack.c.h.b16 %v376
    %v1389 = vunpack.c.l.b16 %v377
    %v1390 = vunpack.c.h.b16 %v377
    %v1391 = vunpack.c.l.b16 %v378
    %v1392 = vunpack.c.h.b16 %v378
    %v1393 = vunpack.c.l.b16 %v379
    %v1394 = vunpack.c.h.b16 %v379
    %v1395 = vunpack.c.l.b16 %v380
    %v1396 = vunpack.c.h.b16 %v380
    %v1397 = vunpack.c.l.b16 %v381
    %v1398 = vunpack.c.h.b16 %v381
    %v1399 = vunpack.c.l.b16 %v382
    %v1400 = vunpack.c.h.b16 %v382
    %v1401 = vunpack.c.l.b16 %v383
    %v1402 = vunpack.c.h.b16 %v383
    %v1403 = vunpack.c.l.b16 %v384
    %v1404 = vunpack.c.h.b16 %v384
    %v1405 = vunpack.c.l.b16 %v385
    %v1406 = vunpack.c.h.b16 %v385
    %v1407 = vunpack.c.l.b16 %v386
    %v1408 = vunpack.c.h.b16 %v386
    %v1409 = vunpack.c.l.b16 %v387
    %v1410 = vunpack.c.h.b16 %v387
    %v1411 = vunpack.c.l.b16 %v388
    %v1412 = vunpack.c.h.b16 %v388
    %v1413 = vunpack.c.l.b16 %v389
    %v1414 = vunpack.c.h.b16 %v389
    %v1415 = vunpack.c.l.b16 %v390
    %v1416 = vunpack.c.h.b16 %v390
    %v1417 = vunpack.c.l.b16 %v391
    %v1418 = vunpack.c.h.b16 %v391
    %v1419 = vunpack.c.l.b16 %v392
    %v1420 = vunpack.c.h.b16 %v392
    %v1421 = vunpack.c.l.b16 %v393
    %v1422 = vunpack.c.h.b16 %v393
    %v1423 = vunpack.c.l.b16 %v394
    %v1424 = vunpack.c.h.b16 %v394
    %v1425 = vunpack.c.l.b16 %v395
    %v1426 = vunpack.c.h.b16 %v395
    %v1427 = vunpack.c.l.b16 %v396
    %v1428 = vunpack.c.h.b16 %v396
    %v1429 = vunpack.c.l.b16 %v397
    %v1430 = vunpack.c.h.b16 %v397
    %v1431 = vunpack.c.l.b16 %v398
    %v1432 = vunpack.c.h.b16 %v398
    %v1433 = vunpack.c.l.b16 %v399
    %v1434 = vunpack.c.h.b16 %v399
    %v1435 = vunpack.c.l.b16 %v400
    %v1436 = vunpack.c.h.b16 %v400
    %v1437 = vunpack.c.l.b16 %v401
    %v1438 = vunpack.c.h.b16 %v401
    %v1439 = vunpack.c.l.b16 %v402
    %v1440 = vunpack.c.h.b16 %v402
    %v1441 = vunpack.c.l.b16 %v403
    %v1442 = vunpack.c.h.b16 %v403
    %v1443 = vunpack.c.l.b16 %v404
    %v1444 = vunpack.c.h.b16 %v404
    %v1445 = vunpack.c.l.b16 %v405
    %v1446 = vunpack.c.h.b16 %v405
    %v1447 = vunpack.c.l.b16 %v406
    %v1448 = vunpack.c.h.b16 %v406
    %v1449 = vunpack.c.l.b16 %v407
    %v1450 = vunpack.c.h.b16 %v407
    %v1451 = vunpack.c.l.b16 %v408
    %v1452 = vunpack.c.h.b16 %v408
    %v1453 = vunpack.c.l.b16 %v409
    %v1454 = vunpack.c.h.b16 %v409
    %v1455 = vunpack.c.l.b16 %v410
    %v1456 = vunpack.c.h.b16 %v410
    %v1457 = vunpack.c.l.b16 %v411
    %v1458 = vunpack.c.h.b16 %v411
    %v1459 = vunpack.c.l.b16 %v412
    %v1460 = vunpack.c.h.b16 %v412
    %v1461 = vunpack.c.l.b16 %v413
    %v1462 = vunpack.c.h.b16 %v413
    %v1463 = vunpack.c.l.b16 %v414
    %v1464 = vunpack.c.h.b16 %v414
    %v1465 = vunpack.c.l.b16 %v415
    %v1466 = vunpack.c.h.b16 %v415
    %v1467 = vunpack.c.l.b16 %v416
    %v1468 = vunpack.c.h.b16 %v416
    %v1469 = vunpack.c.l.b16 %v417
    %v1470 = vunpack.c.h.b16 %v417
    %v1471 = vunpack.c.l.b16 %v418
    %v1472 = vunpack.c.h.b16 %v418
    %v1473 = vunpack.c.l.b16 %v419
    %v1474 = vunpack.c.h.b16 %v419
    %v1475 = vunpack.c.l.b16 %v420
    %v1476 = vunpack.c.h.b16 %v420
    %v1477 = vunpack.c.l.b16 %v421
    %v1478 = vunpack.c.h.b16 %v421
    %v1479 = vunpack.c.l.b16 %v422
    %v1480 = vunpack.c.h.b16 %v422
    %v1481 = vunpack.c.l.b16 %v423
    %v1482 = vunpack.c.h.b16 %v423
    %v1483 = vunpack.c.l.b16 %v424
    %v1484 = vunpack.c.h.b16 %v424
    %v1485 = vunpack.c.l.b16 %v425
    %v1486 = vunpack.c.h.b16 %v425
    %v1487 = vunpack.c.l.b16 %v426
    %v1488 = vunpack.c.h.b16 %v426
    %v1489 = vunpack.c.l.b16 %v427
    %v1490 = vunpack.c.h.b16 %v427
    %v1491 = vunpack.c.l.b16 %v428
    %v1492 = vunpack.c.h.b16 %v428
    %v1493 = vunpack.c.l.b16 %v429
    %v1494 = vunpack.c.h.b16 %v429
    %v1495 = vunpack.c.l.b16 %v430
    %v1496 = vunpack.c.h.b16 %v430
    %v1497 = vunpack.c.l.b16 %v431
    %v1498 = vunpack.c.h.b16 %v431
    %v1499 = vunpack.c.l.b16 %v432
    %v1500 = vunpack.c.h.b16 %v432
    %v1501 = vunpack.c.l.b16 %v433
    %v1502 = vunpack.c.h.b16 %v433
    %v1503 = vunpack.c.l.b16 %v434
    %v1504 = vunpack.c.h.b16 %v434
    %v1505 = vunpack.c.l.b16 %v435
    %v1506 = vunpack.c.h.b16 %v435
    %v1507 = vunpack.c.l.b16 %v436
    %v1508 = vunpack.c.h.b16 %v436
    %v1509 = vunpack.c.l.b16 %v437
    %v1510 = vunpack.c.h.b16 %v437
    %v1511 = vunpack.c.l.b16 %v438
    %v1512 = vunpack.c.h.b16 %v438
    %v1513 = vunpack.c.l.b16 %v439
    %v1514 = vunpack.c.h.b16 %v439
    %v1515 = vunpack.c.l.b16 %v440
    %v1516 = vunpack.c.h.b16 %v440
    %v1517 = vunpack.c.l.b16 %v441
    %v1518 = vunpack.c.h.b16 %v441
    %v1519 = vunpack.c.l.b16 %v442
    %v1520 = vunpack.c.h.b16 %v442
    %v1521 = vunpack.c.l.b16 %v443
    %v1522 = vunpack.c.h.b16 %v443
    %v1523 = vunpack.c.l.b16 %v444
    %v1524 = vunpack.c.h.b16 %v444
    %v1525 = vunpack.c.l.b16 %v445
    %v1526 = vunpack.c.h.b16 %v445
    %v1527 = vunpack.c.l.b16 %v446
    %v1528 = vunpack.c.h.b16 %v446
    %v1529 = vunpack.c.l.b16 %v447
    %v1530 = vunpack.c.h.b16 %v447
    %v1531 = vunpack.c.l.b16 %v448
    %v1532 = vunpack.c.h.b16 %v448
    %v1533 = vunpack.c.l.b16 %v449
    %v1534 = vunpack.c.h.b16 %v449
    %v1535 = vunpack.c.l.b16 %v450
    %v1536 = vunpack.c.h.b16 %v450
    %v1537 = vunpack.c.l.b16 %v451
    %v1538 = vunpack.c.h.b16 %v451
    %v1539 = vunpack.c.l.b16 %v452
    %v1540 = vunpack.c.h.b16 %v452
    %v1541 = vunpack.c.l.b16 %v453
    %v1542 = vunpack.c.h.b16 %v453
    %v1543 = vunpack.c.l.b16 %v454
    %v1544 = vunpack.c.h.b16 %v454
    %v1545 = vunpack.c.l.b16 %v455
    %v1546 = vunpack.c.h.b16 %v455
    %v1547 = vunpack.c.l.b16 %v456
    %v1548 = vunpack.c.h.b16 %v456
    %v1549 = vunpack.c.l.b16 %v457
    %v1550 = vunpack.c.h.b16 %v457
    %v1551 = vunpack.c.l.b16 %v458
    %v1552 = vunpack.c.h.b16 %v458
    %v1553 = vunpack.c.l.b16 %v459
    %v1554 = vunpack.c.h.b16 %v459
    %v1555 = vunpack.c.l.b16 %v460
    %v1556 = vunpack.c.h.b16 %v460
    %v1557 = vunpack.c.l.b16 %v461
    %v1558 = vunpack.c.h.b16 %v461
    %v1559 = vunpack.c.l.b16 %v462
    %v1560 = vunpack.c.h.b16 %v462
    %v1561 = vunpack.c.l.b16 %v463
    %v1562 = vunpack.c.h.b16 %v463
    %v1563 = vunpack.c.l.b16 %v464
    %v1564 = vunpack.c.h.b16 %v464
    %v1565 = vunpack.c.l.b16 %v465
    %v1566 = vunpack.c.h.b16 %v465
    %v1567 = vunpack.c.l.b16 %v466
    %v1568 = vunpack.c.h.b16 %v466
    %v1569 = vunpack.c.l.b16 %v467
    %v1570 = vunpack.c.h.b16 %v467
    %v1571 = vunpack.c.l.b16 %v468
    %v1572 = vunpack.c.h.b16 %v468
    %v1573 = vunpack.c.l.b16 %v469
    %v1574 = vunpack.c.h.b16 %v469
    %v1575 = vunpack.c.l.b16 %v470
    %v1576 = vunpack.c.h.b16 %v470
    %v1577 = vunpack.c.l.b16 %v471
    %v1578 = vunpack.c.h.b16 %v471
    %v1579 = vunpack.c.l.b16 %v472
    %v1580 = vunpack.c.h.b16 %v472
    %v1581 = vunpack.c.l.b16 %v473
    %v1582 = vunpack.c.h.b16 %v473
    %v1583 = vunpack.c.l.b16 %v474
    %v1584 = vunpack.c.h.b16 %v474
    %v1585 = vunpack.c.l.b16 %v475
    %v1586 = vunpack.c.h.b16 %v475
    %v1587 = vunpack.c.l.b16 %v476
    %v1588 = vunpack.c.h.b16 %v476
    %v1589 = vunpack.c.l.b16 %v477
    %v1590 = vunpack.c.h.b16 %v477
    %v1591 = vunpack.c.l.b16 %v478
    %v1592 = vunpack.c.h.b16 %v478
    %v1593 = vunpack.c.l.b16 %v479
    %v1594 = vunpack.c.h.b16 %v479
    %v1595 = vunpack.c.l.b16 %v480
    %v1596 = vunpack.c.h.b16 %v480
    %v1597 = vunpack.c.l.b16 %v481
    %v1598 = vunpack.c.h.b16 %v481
    %v1599 = vunpack.c.l.b16 %v482
    %v1600 = vunpack.c.h.b16 %v482
    %v1601 = vunpack.c.l.b16 %v483
    %v1602 = vunpack.c.h.b16 %v483
    %v1603 = vunpack.c.l.b16 %v484
    %v1604 = vunpack.c.h.b16 %v484
    %v1605 = vunpack.c.l.b16 %v485
    %v1606 = vunpack.c.h.b16 %v485
    %v1607 = vunpack.c.l.b16 %v486
    %v1608 = vunpack.c.h.b16 %v486
    %v1609 = vunpack.c.l.b16 %v487
    %v1610 = vunpack.c.h.b16 %v487
    %v1611 = vunpack.c.l.b16 %v488
    %v1612 = vunpack.c.h.b16 %v488
    %v1613 = vunpack.c.l.b16 %v489
    %v1614 = vunpack.c.h.b16 %v489
    %v1615 = vunpack.c.l.b16 %v490
    %v1616 = vunpack.c.h.b16 %v490
    %v1617 = vunpack.c.l.b16 %v491
    %v1618 = vunpack.c.h.b16 %v491
    %v1619 = vunpack.c.l.b16 %v492
    %v1620 = vunpack.c.h.b16 %v492
    %v1621 = vunpack.c.l.b16 %v493
    %v1622 = vunpack.c.h.b16 %v493
    %v1623 = vunpack.c.l.b16 %v494
    %v1624 = vunpack.c.h.b16 %v494
    %v1625 = vunpack.c.l.b16 %v495
    %v1626 = vunpack.c.h.b16 %v495
    %v1627 = vunpack.c.l.b16 %v496
    %v1628 = vunpack.c.h.b16 %v496
    %v1629 = vunpack.c.l.b16 %v497
    %v1630 = vunpack.c.h.b16 %v497
    %v1631 = vunpack.c.l.b16 %v498
    %v1632 = vunpack.c.h.b16 %v498
    %v1633 = vunpack.c.l.b16 %v499
    %v1634 = vunpack.c.h.b16 %v499
    %v1635 = vunpack.c.l.b16 %v500
    %v1636 = vunpack.c.h.b16 %v500
    %v1637 = vunpack.c.l.b16 %v501
    %v1638 = vunpack.c.h.b16 %v501
    %v1639 = vunpack.c.l.b16 %v502
    %v1640 = vunpack.c.h.b16 %v502
    %v1641 = vunpack.c.l.b16 %v503
    %v1642 = vunpack.c.h.b16 %v503
    %v1643 = vunpack.c.l.b16 %v504
    %v1644 = vunpack.c.h.b16 %v504
    %v1645 = vunpack.c.l.b16 %v505
    %v1646 = vunpack.c.h.b16 %v505
    %v1647 = vunpack.c.l.b16 %v506
    %v1648 = vunpack.c.h.b16 %v506
    %v1649 = vunpack.c.l.b16 %v507
    %v1650 = vunpack.c.h.b16 %v507
    %v1651 = vunpack.c.l.b16 %v508
    %v1652 = vunpack.c.h.b16 %v508
    %v1653 = vunpack.c.l.b16 %v509
    %v1654 = vunpack.c.h.b16 %v509
    %v1655 = vunpack.c.l.b16 %v510
    %v1656 = vunpack.c.h.b16 %v510
    %v1657 = vunpack.c.l.b16 %v511
    %v1658 = vunpack.c.h.b16 %v511
    %v1659 = vunpack.c.l.b16 %v512
    %v1660 = vunpack.c.h.b16 %v512
    %v1661 = vunpack.c.l.b16 %v513
    %v1662 = vunpack.c.h.b16 %v513
    %v1663 = vunpack.c.l.b16 %v514
    %v1664 = vunpack.c.h.b16 %v514
    %v1665 = vunpack.c.l.b16 %v515
    %v1666 = vunpack.c.h.b16 %v515
    %v1667 = vunpack.c.l.b16 %v516
    %v1668 = vunpack.c.h.b16 %v516
    %v1669 = vunpack.c.l.b16 %v517
    %v1670 = vunpack.c.h.b16 %v517
    %v1671 = vunpack.c.l.b16 %v518
    %v1672 = vunpack.c.h.b16 %v518
    %v1673 = vunpack.c.l.b16 %v519
    %v1674 = vunpack.c.h.b16 %v519
    %v1675 = vunpack.c.l.b16 %v520
    %v1676 = vunpack.c.h.b16 %v520
    %v1677 = vunpack.c.l.b16 %v521
    %v1678 = vunpack.c.h.b16 %v521
    %v1679 = vunpack.c.l.b16 %v522
    %v1680 = vunpack.c.h.b16 %v522
    %v1681 = vunpack.c.l.b16 %v523
    %v1682 = vunpack.c.h.b16 %v523
    %v1683 = vunpack.c.l.b16 %v524
    %v1684 = vunpack.c.h.b16 %v524
    %v1685 = vunpack.c.l.b16 %v525
    %v1686 = vunpack.c.h.b16 %v525
    %v1687 = vunpack.c.l.b16 %v526
    %v1688 = vunpack.c.h.b16 %v526
    %v1689 = vunpack.c.l.b16 %v527
    %v1690 = vunpack.c.h.b16 %v527
    %v1691 = vunpack.c.l.b16 %v528
    %v1692 = vunpack.c.h.b16 %v528
    %v1693 = vunpack.c.l.b16 %v529
    %v1694 = vunpack.c.h.b16 %v529
    %v1695 = vunpack.c.l.b16 %v530
    %v1696 = vunpack.c.h.b16 %v530
    %v1697 = vunpack.c.l.b16 %v531
    %v1698 = vunpack.c.h.b16 %v531
    %v1699 = vunpack.c.l.b16 %v532
    %v1700 = vunpack.c.h.b16 %v532
    %v1701 = vunpack.c.l.b16 %v533
    %v1702 = vunpack.c.h.b16 %v533
    %v1703 = vunpack.c.l.b16 %v534
    %v1704 = vunpack.c.h.b16 %v534
    %v1705 = vunpack.c.l.b16 %v535
    %v1706 = vunpack.c.h.b16 %v535
    %v1707 = vunpack.c.l.b16 %v536
    %v1708 = vunpack.c.h.b16 %v536
    %v1709 = vunpack.c.l.b16 %v537
    %v1710 = vunpack.c.h.b16 %v537
    %v1711 = vunpack.c.l.b16 %v538
    %v1712 = vunpack.c.h.b16 %v538
    %v1713 = vunpack.c.l.b16 %v539
    %v1714 = vunpack.c.h.b16 %v539
    %v1715 = vunpack.c.l.b16 %v540
    %v1716 = vunpack.c.h.b16 %v540
    %v1717 = vunpack.c.l.b16 %v541
    %v1718 = vunpack.c.h.b16 %v541
    %v1719 = vunpack.c.l.b16 %v542
    %v1720 = vunpack.c.h.b16 %v542
    %v1721 = vunpack.c.l.b16 %v543
    %v1722 = vunpack.c.h.b16 %v543
    %v1723 = vunpack.c.l.b16 %v544
    %v1724 = vunpack.c.h.b16 %v544
    %v1725 = vunpack.c.l.b16 %v545
    %v1726 = vunpack.c.h.b16 %v545
    %v1727 = vunpack.c.l.b16 %v546
    %v1728 = vunpack.c.h.b16 %v546
    %v1729 = vunpack.c.l.b16 %v547
    %v1730 = vunpack.c.h.b16 %v547
    %v1731 = vunpack.c.l.b16 %v548
    %v1732 = vunpack.c.h.b16 %v548
    %v1733 = vunpack.c.l.b16 %v549
    %v1734 = vunpack.c.h.b16 %v549
    %v1735 = vunpack.c.l.b16 %v550
    %v1736 = vunpack.c.h.b16 %v550
    %v1737 = vunpack.c.l.b16 %v551
    %v1738 = vunpack.c.h.b16 %v551
    %v1739 = vunpack.c.l.b16 %v552
    %v1740 = vunpack.c.h.b16 %v552
    %v1741 = vunpack.c.l.b16 %v553
    %v1742 = vunpack.c.h.b16 %v553
    %v1743 = vunpack.c.l.b16 %v554
    %v1744 = vunpack.c.h.b16 %v554
    %v1745 = vunpack.c.l.b16 %v555
    %v1746 = vunpack.c.h.b16 %v555
    %v1747 = vunpack.c.l.b16 %v556
    %v1748 = vunpack.c.h.b16 %v556
    %v1749 = vunpack.c.l.b16 %v557
    %v1750 = vunpack.c.h.b16 %v557
    %v1751 = vunpack.c.l.b16 %v558
    %v1752 = vunpack.c.h.b16 %v558
    %v1753 = vunpack.c.l.b16 %v559
    %v1754 = vunpack.c.h.b16 %v559
    %v1755 = vunpack.c.l.b16 %v560
    %v1756 = vunpack.c.h.b16 %v560
    %v1757 = vunpack.c.l.b16 %v561
    %v1758 = vunpack.c.h.b16 %v561
    %v1759 = vunpack.c.l.b16 %v562
    %v1760 = vunpack.c.h.b16 %v562
    %v1761 = vunpack.c.l.b16 %v563
    %v1762 = vunpack.c.h.b16 %v563
    %v1763 = vunpack.c.l.b16 %v564
    %v1764 = vunpack.c.h.b16 %v564
    %v1765 = vunpack.c.l.b16 %v565
    %v1766 = vunpack.c.h.b16 %v565
    %v1767 = vunpack.c.l.b16 %v566
    %v1768 = vunpack.c.h.b16 %v566
    %v1769 = vunpack.c.l.b16 %v567
    %v1770 = vunpack.c.h.b16 %v567
    %v1771 = vunpack.c.l.b16 %v568
    %v1772 = vunpack.c.h.b16 %v568
    %v1773 = vunpack.c.l.b16 %v569
    %v1774 = vunpack.c.h.b16 %v569
    %v1775 = vunpack.c.l.b16 %v570
    %v1776 = vunpack.c.h.b16 %v570
    %v1777 = vunpack.c.l.b16 %v571
    %v1778 = vunpack.c.h.b16 %v571
    %v1779 = vunpack.c.l.b16 %v572
    %v1780 = vunpack.c.h.b16 %v572
    %v1781 = vunpack.c.l.b16 %v573
    %v1782 = vunpack.c.h.b16 %v573
    %v1783 = vunpack.c.l.b16 %v574
    %v1784 = vunpack.c.h.b16 %v574
    %v1785 = vunpack.c.l.b16 %v575
    %v1786 = vunpack.c.h.b16 %v575
    %v1787 = vunpack.c.l.b16 %v576
    %v1788 = vunpack.c.h.b16 %v576
    %v1789 = vunpack.c.l.b16 %v577
    %v1790 = vunpack.c.h.b16 %v577
    %v1791 = vunpack.c.l.b16 %v578
    %v1792 = vunpack.c.h.b16 %v578
    %v1793 = vunpack.c.l.b16 %v579
    %v1794 = vunpack.c.h.b16 %v579
    %v1795 = vunpack.c.l.b16 %v580
    %v1796 = vunpack.c.h.b16 %v580
    %v1797 = vunpack.c.l.b16 %v581
    %v1798 = vunpack.c.h.b16 %v581
    %v1799 = vunpack.c.l.b16 %v582
    %v1800 = vunpack.c.h.b16 %v582
    %v1801 = vunpack.c.l.b16 %v583
    %v1802 = vunpack.c.h.b16 %v583
    %v1803 = vunpack.c.l.b16 %v584
    %v1804 = vunpack.c.h.b16 %v584
    %v1805 = vunpack.c.l.b16 %v585
    %v1806 = vunpack.c.h.b16 %v585
    %v1807 = vunpack.c.l.b16 %v586
    %v1808 = vunpack.c.h.b16 %v586
    %v1809 = vunpack.c.l.b16 %v587
    %v1810 = vunpack.c.h.b16 %v587
    %v1811 = vunpack.c.l.b16 %v588
    %v1812 = vunpack.c.h.b16 %v588
    %v1813 = vunpack.c.l.b16 %v589
    %v1814 = vunpack.c.h.b16 %v589
    %v1815 = vunpack.c.l.b16 %v590
    %v1816 = vunpack.c.h.b16 %v590
    %v1817 = vunpack.c.l.b16 %v591
    %v1818 = vunpack.c.h.b16 %v591
    %v1819 = vunpack.c.l.b16 %v592
    %v1820 = vunpack.c.h.b16 %v592
    %v1821 = vunpack.c.l.b16 %v593
    %v1822 = vunpack.c.h.b16 %v593
    %v1823 = vunpack.c.l.b16 %v594
    %v1824 = vunpack.c.h.b16 %v594
    %v1825 = vunpack.c.l.b16 %v595
    %v1826 = vunpack.c.h.b16 %v595
    %v1827 = vunpack.c.l.b16 %v596
    %v1828 = vunpack.c.h.b16 %v596
    %v1829 = vunpack.c.l.b16 %v597
    %v1830 = vunpack.c.h.b16 %v597
    %v1831 = vunpack.c.l.b16 %v598
    %v1832 = vunpack.c.h.b16 %v598
    %v1833 = vunpack.c.l.b16 %v599
    %v1834 = vunpack.c.h.b16 %v599
    %v1835 = vunpack.c.l.b16 %v600
    %v1836 = vunpack.c.h.b16 %v600
    %v1837 = vunpack.c.l.b16 %v601
    %v1838 = vunpack.c.h.b16 %v601
    %v1839 = vunpack.c.l.b16 %v602
    %v1840 = vunpack.c.h.b16 %v602
    %v1841 = vunpack.c.l.b16 %v603
    %v1842 = vunpack.c.h.b16 %v603
    %v1843 = vunpack.c.l.b16 %v604
    %v1844 = vunpack.c.h.b16 %v604
    %v1845 = vunpack.c.l.b16 %v605
    %v1846 = vunpack.c.h.b16 %v605
    %v1847 = vunpack.c.l.b16 %v606
    %v1848 = vunpack.c.h.b16 %v606
    %v1849 = vunpack.c.l.b16 %v607
    %v1850 = vunpack.c.h.b16 %v607
    %v1851 = vunpack.c.l.b16 %v608
    %v1852 = vunpack.c.h.b16 %v608
    %v1853 = vunpack.c.l.b16 %v609
    %v1854 = vunpack.c.h.b16 %v609
    %v1855 = vunpack.c.l.b16 %v610
    %v1856 = vunpack.c.h.b16 %v610
    %v1857 = vunpack.c.l.b16 %v611
    %v1858 = vunpack.c.h.b16 %v611
    %v1859 = vunpack.c.l.b16 %v612
    %v1860 = vunpack.c.h.b16 %v612
    %v1861 = vunpack.c.l.b16 %v613
    %v1862 = vunpack.c.h.b16 %v613
    %v1863 = vunpack.c.l.b16 %v614
    %v1864 = vunpack.c.h.b16 %v614
    %v1865 = vunpack.c.l.b16 %v615
    %v1866 = vunpack.c.h.b16 %v615
    %v1867 = vunpack.c.l.b16 %v616
    %v1868 = vunpack.c.h.b16 %v616
    %v1869 = vunpack.c.l.b16 %v617
    %v1870 = vunpack.c.h.b16 %v617
    %v1871 = vunpack.c.l.b16 %v618
    %v1872 = vunpack.c.h.b16 %v618
    %v1873 = vunpack.c.l.b16 %v619
    %v1874 = vunpack.c.h.b16 %v619
    %v1875 = vunpack.c.l.b16 %v620
    %v1876 = vunpack.c.h.b16 %v620
    %v1877 = vunpack.c.l.b16 %v621
    %v1878 = vunpack.c.h.b16 %v621
    %v1879 = vunpack.c.l.b16 %v622
    %v1880 = vunpack.c.h.b16 %v622
    %v1881 = vunpack.c.l.b16 %v623
    %v1882 = vunpack.c.h.b16 %v623
    %v1883 = vunpack.c.l.b16 %v624
    %v1884 = vunpack.c.h.b16 %v624
    %v1885 = vunpack.c.l.b16 %v625
    %v1886 = vunpack.c.h.b16 %v625
    %v1887 = vunpack.c.l.b16 %v626
    %v1888 = vunpack.c.h.b16 %v626
    %v1889 = vunpack.c.l.b16 %v627
    %v1890 = vunpack.c.h.b16 %v627
    %v1891 = vunpack.c.l.b16 %v628
    %v1892 = vunpack.c.h.b16 %v628
    %v1893 = vunpack.c.l.b16 %v629
    %v1894 = vunpack.c.h.b16 %v629
    %v1895 = vunpack.c.l.b16 %v630
    %v1896 = vunpack.c.h.b16 %v630
    %v1897 = vunpack.c.l.b16 %v631
    %v1898 = vunpack.c.h.b16 %v631
    %v1899 = vunpack.c.l.b16 %v632
    %v1900 = vunpack.c.h.b16 %v632
    %v1901 = vunpack.c.l.b16 %v633
    %v1902 = vunpack.c.h.b16 %v633
    %v1903 = vunpack.c.l.b16 %v634
    %v1904 = vunpack.c.h.b16 %v634
    %v1905 = vunpack.c.l.b16 %v635
    %v1906 = vunpack.c.h.b16 %v635
    %v1907 = vunpack.c.l.b16 %v636
    %v1908 = vunpack.c.h.b16 %v636
    %v1909 = vunpack.c.l.b16 %v637
    %v1910 = vunpack.c.h.b16 %v637
    %v1911 = vunpack.c.l.b16 %v638
    %v1912 = vunpack.c.h.b16 %v638
    %v1913 = vunpack.c.l.b16 %v639
    %v1914 = vunpack.c.h.b16 %v639
    %v1915 = vunpack.c.l.b16 %v640
    %v1916 = vunpack.c.h.b16 %v640
    %v1917 = vunpack.c.l.b16 %v641
    %v1918 = vunpack.c.h.b16 %v641
    %v1919 = vunpack.c.l.b16 %v642
    %v1920 = vunpack.c.h.b16 %v642
    %v1921 = vunpack.c.l.b16 %v643
    %v1922 = vunpack.c.h.b16 %v643
    %v1923 = vunpack.c.l.b16 %v644
    %v1924 = vunpack.c.h.b16 %v644
    %v1925 = vunpack.c.l.b16 %v645
    %v1926 = vunpack.c.h.b16 %v645
    %v1927 = vunpack.c.l.b16 %v646
    %v1928 = vunpack.c.h.b16 %v646
    %v1929 = vunpack.c.l.b16 %v647
    %v1930 = vunpack.c.h.b16 %v647
    %v1931 = vunpack.c.l.b16 %v648
    %v1932 = vunpack.c.h.b16 %v648
    %v1933 = vunpack.c.l.b16 %v649
    %v1934 = vunpack.c.h.b16 %v649
    %v1935 = vunpack.c.l.b16 %v650
    %v1936 = vunpack.c.h.b16 %v650
    %v1937 = vunpack.c.l.b16 %v651
    %v1938 = vunpack.c.h.b16 %v651
    %v1939 = vunpack.c.l.b16 %v652
    %v1940 = vunpack.c.h.b16 %v652
    %v1941 = vunpack.c.l.b16 %v653
    %v1942 = vunpack.c.h.b16 %v653
    %v1943 = vunpack.c.l.b16 %v654
    %v1944 = vunpack.c.h.b16 %v654
    %v1945 = vunpack.c.l.b16 %v655
    %v1946 = vunpack.c.h.b16 %v655
    %v1947 = vunpack.c.l.b16 %v656
    %v1948 = vunpack.c.h.b16 %v656
    %v1949 = vunpack.c.l.b16 %v657
    %v1950 = vunpack.c.h.b16 %v657
    %v1951 = vunpack.c.l.b16 %v658
    %v1952 = vunpack.c.h.b16 %v658
    %v1953 = vunpack.c.l.b16 %v659
    %v1954 = vunpack.c.h.b16 %v659
    %v1955 = vunpack.c.l.b16 %v660
    %v1956 = vunpack.c.h.b16 %v660
    %v1957 = vunpack.c.l.b16 %v661
    %v1958 = vunpack.c.h.b16 %v661
    %v1959 = vunpack.c.l.b16 %v662
    %v1960 = vunpack.c.h.b16 %v662
    %v1961 = vunpack.c.l.b16 %v663
    %v1962 = vunpack.c.h.b16 %v663
    %v1963 = vunpack.c.l.b16 %v664
    %v1964 = vunpack.c.h.b16 %v664
    %v1965 = vunpack.c.l.b16 %v665
    %v1966 = vunpack.c.h.b16 %v665
    %v1967 = vunpack.c.l.b16 %v666
    %v1968 = vunpack.c.h.b16 %v666
    %v1969 = vunpack.c.l.b16 %v667
    %v1970 = vunpack.c.h.b16 %v667
    %v1971 = vunpack.c.l.b16 %v668
    %v1972 = vunpack.c.h.b16 %v668
    %v1973 = vunpack.c.l.b16 %v669
    %v1974 = vunpack.c.h.b16 %v669
    %v1975 = vunpack.c.l.b16 %v670
    %v1976 = vunpack.c.h.b16 %v670
    %v1977 = vunpack.c.l.b16 %v671
    %v1978 = vunpack.c.h.b16 %v671
    %v1979 = vunpack.c.l.b16 %v672
    %v1980 = vunpack.c.h.b16 %v672
    %v1981 = vunpack.c.l.b16 %v673
    %v1982 = vunpack.c.h.b16 %v673
    %v1983 = vunpack.c.l.b16 %v674
    %v1984 = vunpack.c.h.b16 %v674
    %v1985 = vunpack.c.l.b16 %v675
    %v1986 = vunpack.c.h.b16 %v675
    %v1987 = vunpack.c.l.b16 %v676
    %v1988 = vunpack.c.h.b16 %v676
    %v1989 = vunpack.c.l.b16 %v677
    %v1990 = vunpack.c.h.b16 %v677
    %v1991 = vunpack.c.l.b16 %v678
    %v1992 = vunpack.c.h.b16 %v678
    %v1993 = vunpack.c.l.b16 %v679
    %v1994 = vunpack.c.h.b16 %v679
    %v1995 = vunpack.c.l.b16 %v680
    %v1996 = vunpack.c.h.b16 %v680
    %v1997 = vunpack.c.l.b16 %v681
    %v1998 = vunpack.c.h.b16 %v681
    %v1999 = vunpack.c.l.b16 %v682
    %v2000 = vunpack.c.h.b16 %v682
    %v2001 = vunpack.c.l.b16 %v683
    %v2002 = vunpack.c.h.b16 %v683
    %v2003 = vunpack.c.l.b16 %v684
    %v2004 = vunpack.c.h.b16 %v684
    %v2005 = vunpack.c.l.b16 %v685
    %v2006 = vunpack.c.h.b16 %v685
    %v2007 = vunpack.c.l.b16 %v686
    %v2008 = vunpack.c.h.b16 %v686
    %v2009 = vunpack.c.l.b16 %v687
    %v2010 = vunpack.c.h.b16 %v687
    %v2011 = vunpack.c.l.b16 %v688
    %v2012 = vunpack.c.h.b16 %v688
    %v2013 = vunpack.c.l.b16 %v689
    %v2014 = vunpack.c.h.b16 %v689
    %v2015 = vunpack.c.l.b16 %v690
    %v2016 = vunpack.c.h.b16 %v690
    %v2017 = vunpack.c.l.b16 %v691
    %v2018 = vunpack.c.h.b16 %v691
    %v2019 = vunpack.c.l.b16 %v692
    %v2020 = vunpack.c.h.b16 %v692
    %v2021 = vunpack.c.l.b16 %v693
    %v2022 = vunpack.c.h.b16 %v693
    %v2023 = vunpack.c.l.b16 %v694
    %v2024 = vunpack.c.h.b16 %v694
    %v2025 = vunpack.c.l.b16 %v695
    %v2026 = vunpack.c.h.b16 %v695
    %v2027 = vunpack.c.l.b16 %v696
    %v2028 = vunpack.c.h.b16 %v696
    %v2029 = vunpack.c.l.b16 %v697
    %v2030 = vunpack.c.h.b16 %v697
    %v2031 = vunpack.c.l.b16 %v698
    %v2032 = vunpack.c.h.b16 %v698
    %v2033 = vunpack.c.l.b16 %v699
    %v2034 = vunpack.c.h.b16 %v699
    %v2035 = vunpack.c.l.b16 %v700
    %v2036 = vunpack.c.h.b16 %v700
    %v2037 = vunpack.c.l.b16 %v701
    %v2038 = vunpack.c.h.b16 %v701
    %v2039 = vunpack.c.l.b16 %v702
    %v2040 = vunpack.c.h.b16 %v702
    %v2041 = vunpack.c.l.b16 %v703
    %v2042 = vunpack.c.h.b16 %v703
    %v2043 = vunpack.c.l.b16 %v704
    %v2044 = vunpack.c.h.b16 %v704
    %v2045 = vunpack.c.l.b16 %v705
    %v2046 = vunpack.c.h.b16 %v705
    %v2047 = vunpack.c.l.b16 %v706
    %v2048 = vunpack.c.h.b16 %v706
    %v2049 = vunpack.c.l.b16 %v707
    %v2050 = vunpack.c.h.b16 %v707
    %v2051 = vunpack.c.l.b16 %v708
    %v2052 = vunpack.c.h.b16 %v708
    %v2053 = vunpack.c.l.b16 %v709
    %v2054 = vunpack.c.h.b16 %v709
    %v2055 = vunpack.c.l.b16 %v710
    %v2056 = vunpack.c.h.b16 %v710
    %v2057 = vunpack.c.l.b16 %v711
    %v2058 = vunpack.c.h.b16 %v711
    %v2059 = vunpack.c.l.b16 %v712
    %v2060 = vunpack.c.h.b16 %v712
    %v2061 = vunpack.c.l.b16 %v713
    %v2062 = vunpack.c.h.b16 %v713
    %v2063 = vunpack.c.l.b16 %v714
    %v2064 = vunpack.c.h.b16 %v714
    %v2065 = vunpack.c.l.b16 %v715
    %v2066 = vunpack.c.h.b16 %v715
    %v2067 = vunpack.c.l.b16 %v716
    %v2068 = vunpack.c.h.b16 %v716
    %v2069 = vunpack.c.l.b16 %v717
    %v2070 = vunpack.c.h.b16 %v717
    %v2071 = vunpack.c.l.b16 %v718
    %v2072 = vunpack.c.h.b16 %v718
    %v2073 = vunpack.c.l.b16 %v719
    %v2074 = vunpack.c.h.b16 %v719
    %v2075 = vunpack.c.l.b16 %v720
    %v2076 = vunpack.c.h.b16 %v720
    %v2077 = vunpack.c.l.b16 %v721
    %v2078 = vunpack.c.h.b16 %v721
    %v2079 = vunpack.c.l.b16 %v722
    %v2080 = vunpack.c.h.b16 %v722
    %v2081 = vunpack.c.l.b16 %v723
    %v2082 = vunpack.c.h.b16 %v723
    %v2083 = vunpack.c.l.b16 %v724
    %v2084 = vunpack.c.h.b16 %v724
    %v2085 = vunpack.c.l.b16 %v725
    %v2086 = vunpack.c.h.b16 %v725
    %v2087 = vunpack.c.l.b16 %v726
    %v2088 = vunpack.c.h.b16 %v726
    %v2089 = vunpack.c.l.b16 %v727
    %v2090 = vunpack.c.h.b16 %v727
    %v2091 = vunpack.c.l.b16 %v728
    %v2092 = vunpack.c.h.b16 %v728
    %v2093 = vunpack.c.l.b16 %v729
    %v2094 = vunpack.c.h.b16 %v729
    %v2095 = vunpack.c.l.b16 %v730
    %v2096 = vunpack.c.h.b16 %v730
    %v2097 = vunpack.c.l.b16 %v731
    %v2098 = vunpack.c.h.b16 %v731
    %v2099 = vunpack.c.l.b16 %v732
    %v2100 = vunpack.c.h.b16 %v732
    %v2101 = vunpack.c.l.b16 %v733
    %v2102 = vunpack.c.h.b16 %v733
    %v2103 = vunpack.c.l.b16 %v734
    %v2104 = vunpack.c.h.b16 %v734
    %v2105 = vunpack.c.l.b16 %v735
    %v2106 = vunpack.c.h.b16 %v735
    %v2107 = vpack.c.b16 %v1219, %v1211
    %v2108 = vpack.c.b16 %v1220, %v1212
    %v2109 = vpack.c.b16 %v1221, %v1213
    %v2110 = vpack.c.b16 %v1222, %v1214
    %v2111 = vpack.c.b16 %v1223, %v1215
    %v2112 = vpack.c.b16 %v1224, %v1216
    %v2113 = vpack.c.b16 %v1225, %v1217
    %v2114 = vpack.c.b16 %v1226, %v1218
    %v2115 = vpack.c.b16 %v1235, %v1227
    %v2116 = vpack.c.b16 %v1236, %v1228
    %v2117 = vpack.c.b16 %v1237, %v1229
    %v2118 = vpack.c.b16 %v1238, %v1230
    %v2119 = vpack.c.b16 %v1239, %v1231
    %v2120 = vpack.c.b16 %v1240, %v1232
    %v2121 = vpack.c.b16 %v1241, %v1233
    %v2122 = vpack.c.b16 %v1242, %v1234
    %v2123 = vpack.c.b16 %v1251, %v1243
    %v2124 = vpack.c.b16 %v1252, %v1244
    %v2125 = vpack.c.b16 %v1253, %v1245
    %v2126 = vpack.c.b16 %v1254, %v1246
    %v2127 = vpack.c.b16 %v1255, %v1247
    %v2128 = vpack.c.b16 %v1256, %v1248
    %v2129 = vpack.c.b16 %v1257, %v1249
    %v2130 = vpack.c.b16 %v1258, %v1250
    %v2131 = vpack.c.b16 %v1267, %v1259
    %v2132 = vpack.c.b16 %v1268, %v1260
    %v2133 = vpack.c.b16 %v1269, %v1261
    %v2134 = vpack.c.b16 %v1270, %v1262
    %v2135 = vpack.c.b16 %v1271, %v1263
    %v2136 = vpack.c.b16 %v1272, %v1264
    %v2137 = vpack.c.b16 %v1273, %v1265
    %v2138 = vpack.c.b16 %v1274, %v1266
    %v2139 = vpack.c.b16 %v1283, %v1275
    %v2140 = vpack.c.b16 %v1284, %v1276
    %v2141 = vpack.c.b16 %v1285, %v1277
    %v2142 = vpack.c.b16 %v1286, %v1278
    %v2143 = vpack.c.b16 %v1287, %v1279
    %v2144 = vpack.c.b16 %v1288, %v1280
    %v2145 = vpack.c.b16 %v1289, %v1281
    %v2146 = vpack.c.b16 %v1290, %v1282
    %v2147 = vpack.c.b16 %v1299, %v1291
    %v2148 = vpack.c.b16 %v1300, %v1292
    %v2149 = vpack.c.b16 %v1301, %v1293
    %v2150 = vpack.c.b16 %v1302, %v1294
    %v2151 = vpack.c.b16 %v1303, %v1295
    %v2152 = vpack.c.b16 %v1304, %v1296
    %v2153 = vpack.c.b16 %v1305, %v1297
    %v2154 = vpack.c.b16 %v1306, %v1298
    %v2155 = vpack.c.b16 %v1315, %v1307
    %v2156 = vpack.c.b16 %v1316, %v1308
    %v2157 = vpack.c.b16 %v1317, %v1309
    %v2158 = vpack.c.b16 %v1318, %v1310
    %v2159 = vpack.c.b16 %v1319, %v1311
    %v2160 = vpack.c.b16 %v1320, %v1312
    %v2161 = vpack.c.b16 %v1321, %v1313
    %v2162 = vpack.c.b16 %v1322, %v1314
    %v2163 = vpack.c.b16 %v1331, %v1323
    %v2164 = vpack.c.b16 %v1332, %v1324
    %v2165 = vpack.c.b16 %v1333, %v1325
    %v2166 = vpack.c.b16 %v1334, %v1326
    %v2167 = vpack.c.b16 %v1335, %v1327
    %v2168 = vpack.c.b16 %v1336, %v1328
    %v2169 = vpack.c.b16 %v1337, %v1329
    %v2170 = vpack.c.b16 %v1338, %v1330
    %v2171 = vpack.c.b16 %v1347, %v1339
    %v2172 = vpack.c.b16 %v1348, %v1340
    %v2173 = vpack.c.b16 %v1349, %v1341
    %v2174 = vpack.c.b16 %v1350, %v1342
    %v2175 = vpack.c.b16 %v1351, %v1343
    %v2176 = vpack.c.b16 %v1352, %v1344
    %v2177 = vpack.c.b16 %v1353, %v1345
    %v2178 = vpack.c.b16 %v1354, %v1346
    %v2179 = vpack.c.b16 %v1363, %v1355
    %v2180 = vpack.c.b16 %v1364, %v1356
    %v2181 = vpack.c.b16 %v1365, %v1357
    %v2182 = vpack.c.b16 %v1366, %v1358
    %v2183 = vpack.c.b16 %v1367, %v1359
    %v2184 = vpack.c.b16 %v1368, %v1360
    %v2185 = vpack.c.b16 %v1369, %v1361
    %v2186 = vpack.c.b16 %v1370, %v1362
    %v2187 = vpack.c.b16 %v1379, %v1371
    %v2188 = vpack.c.b16 %v1380, %v1372
    %v2189 = vpack.c.b16 %v1381, %v1373
    %v2190 = vpack.c.b16 %v1382, %v1374
    %v2191 = vpack.c.b16 %v1383, %v1375
    %v2192 = vpack.c.b16 %v1384, %v1376
    %v2193 = vpack.c.b16 %v1385, %v1377
    %v2194 = vpack.c.b16 %v1386, %v1378
    %v2195 = vpack.c.b16 %v1395, %v1387
    %v2196 = vpack.c.b16 %v1396, %v1388
    %v2197 = vpack.c.b16 %v1397, %v1389
    %v2198 = vpack.c.b16 %v1398, %v1390
    %v2199 = vpack.c.b16 %v1399, %v1391
    %v2200 = vpack.c.b16 %v1400, %v1392
    %v2201 = vpack.c.b16 %v1401, %v1393
    %v2202 = vpack.c.b16 %v1402, %v1394
    %v2203 = vpack.c.b16 %v1411, %v1403
    %v2204 = vpack.c.b16 %v1412, %v1404
    %v2205 = vpack.c.b16 %v1413, %v1405
    %v2206 = vpack.c.b16 %v1414, %v1406
    %v2207 = vpack.c.b16 %v1415, %v1407
    %v2208 = vpack.c.b16 %v1416, %v1408
    %v2209 = vpack.c.b16 %v1417, %v1409
    %v2210 = vpack.c.b16 %v1418, %v1410
    %v2211 = vpack.c.b16 %v1427, %v1419
    %v2212 = vpack.c.b16 %v1428, %v1420
    %v2213 = vpack.c.b16 %v1429, %v1421
    %v2214 = vpack.c.b16 %v1430, %v1422
    %v2215 = vpack.c.b16 %v1431, %v1423
    %v2216 = vpack.c.b16 %v1432, %v1424
    %v2217 = vpack.c.b16 %v1433, %v1425
    %v2218 = vpack.c.b16 %v1434, %v1426
    %v2219 = vpack.c.b16 %v1443, %v1435
    %v2220 = vpack.c.b16 %v1444, %v1436
    %v2221 = vpack.c.b16 %v1445, %v1437
    %v2222 = vpack.c.b16 %v1446, %v1438
    %v2223 = vpack.c.b16 %v1447, %v1439
    %v2224 = vpack.c.b16 %v1448, %v1440
    %v2225 = vpack.c.b16 %v1449, %v1441
    %v2226 = vpack.c.b16 %v1450, %v1442
    %v2227 = vpack.c.b16 %v1459, %v1451
    %v2228 = vpack.c.b16 %v1460, %v1452
    %v2229 = vpack.c.b16 %v1461, %v1453
    %v2230 = vpack.c.b16 %v1462, %v1454
    %v2231 = vpack.c.b16 %v1463, %v1455
    %v2232 = vpack.c.b16 %v1464, %v1456
    %v2233 = vpack.c.b16 %v1465, %v1457
    %v2234 = vpack.c.b16 %v1466, %v1458
    %v2235 = vpack.c.b16 %v1475, %v1467
    %v2236 = vpack.c.b16 %v1476, %v1468
    %v2237 = vpack.c.b16 %v1477, %v1469
    %v2238 = vpack.c.b16 %v1478, %v1470
    %v2239 = vpack.c.b16 %v1479, %v1471
    %v2240 = vpack.c.b16 %v1480, %v1472
    %v2241 = vpack.c.b16 %v1481, %v1473
    %v2242 = vpack.c.b16 %v1482, %v1474
    %v2243 = vpack.c.b16 %v1491, %v1483
    %v2244 = vpack.c.b16 %v1492, %v1484
    %v2245 = vpack.c.b16 %v1493, %v1485
    %v2246 = vpack.c.b16 %v1494, %v1486
    %v2247 = vpack.c.b16 %v1495, %v1487
    %v2248 = vpack.c.b16 %v1496, %v1488
    %v2249 = vpack.c.b16 %v1497, %v1489
    %v2250 = vpack.c.b16 %v1498, %v1490
    %v2251 = vpack.c.b16 %v1507, %v1499
    %v2252 = vpack.c.b16 %v1508, %v1500
    %v2253 = vpack.c.b16 %v1509, %v1501
    %v2254 = vpack.c.b16 %v1510, %v1502
    %v2255 = vpack.c.b16 %v1511, %v1503
    %v2256 = vpack.c.b16 %v1512, %v1504
    %v2257 = vpack.c.b16 %v1513, %v1505
    %v2258 = vpack.c.b16 %v1514, %v1506
    %v2259 = vpack.c.b16 %v1523, %v1515
    %v2260 = vpack.c.b16 %v1524, %v1516
    %v2261 = vpack.c.b16 %v1525, %v1517
    %v2262 = vpack.c.b16 %v1526, %v1518
    %v2263 = vpack.c.b16 %v1527, %v1519
    %v2264 = vpack.c.b16 %v1528, %v1520
    %v2265 = vpack.c.b16 %v1529, %v1521
    %v2266 = vpack.c.b16 %v1530, %v1522
    %v2267 = vpack.c.b16 %v1539, %v1531
    %v2268 = vpack.c.b16 %v1540, %v1532
    %v2269 = vpack.c.b16 %v1541, %v1533
    %v2270 = vpack.c.b16 %v1542, %v1534
    %v2271 = vpack.c.b16 %v1543, %v1535
    %v2272 = vpack.c.b16 %v1544, %v1536
    %v2273 = vpack.c.b16 %v1545, %v1537
    %v2274 = vpack.c.b16 %v1546, %v1538
    %v2275 = vpack.c.b16 %v1555, %v1547
    %v2276 = vpack.c.b16 %v1556, %v1548
    %v2277 = vpack.c.b16 %v1557, %v1549
    %v2278 = vpack.c.b16 %v1558, %v1550
    %v2279 = vpack.c.b16 %v1559, %v1551
    %v2280 = vpack.c.b16 %v1560, %v1552
    %v2281 = vpack.c.b16 %v1561, %v1553
    %v2282 = vpack.c.b16 %v1562, %v1554
    %v2283 = vpack.c.b16 %v1571, %v1563
    %v2284 = vpack.c.b16 %v1572, %v1564
    %v2285 = vpack.c.b16 %v1573, %v1565
    %v2286 = vpack.c.b16 %v1574, %v1566
    %v2287 = vpack.c.b16 %v1575, %v1567
    %v2288 = vpack.c.b16 %v1576, %v1568
    %v2289 = vpack.c.b16 %v1577, %v1569
    %v2290 = vpack.c.b16 %v1578, %v1570
    %v2291 = vpack.c.b16 %v1587, %v1579
    %v2292 = vpack.c.b16 %v1588, %v1580
    %v2293 = vpack.c.b16 %v1589, %v1581
    %v2294 = vpack.c.b16 %v1590, %v1582
    %v2295 = vpack.c.b16 %v1591, %v1583
    %v2296 = vpack.c.b16 %v1592, %v1584
    %v2297 = vpack.c.b16 %v1593, %v1585
    %v2298 = vpack.c.b16 %v1594, %v1586
    %v2299 = vpack.c.b16 %v1603, %v1595
    %v2300 = vpack.c.b16 %v1604, %v1596
    %v2301 = vpack.c.b16 %v1605, %v1597
    %v2302 = vpack.c.b16 %v1606, %v1598
    %v2303 = vpack.c.b16 %v1607, %v1599
    %v2304 = vpack.c.b16 %v1608, %v1600
    %v2305 = vpack.c.b16 %v1609, %v1601
    %v2306 = vpack.c.b16 %v1610, %v1602
    %v2307 = vpack.c.b16 %v1619, %v1611
    %v2308 = vpack.c.b16 %v1620, %v1612
    %v2309 = vpack.c.b16 %v1621, %v1613
    %v2310 = vpack.c.b16 %v1622, %v1614
    %v2311 = vpack.c.b16 %v1623, %v1615
    %v2312 = vpack.c.b16 %v1624, %v1616
    %v2313 = vpack.c.b16 %v1625, %v1617
    %v2314 = vpack.c.b16 %v1626, %v1618
    %v2315 = vpack.c.b16 %v1635, %v1627
    %v2316 = vpack.c.b16 %v1636, %v1628
    %v2317 = vpack.c.b16 %v1637, %v1629
    %v2318 = vpack.c.b16 %v1638, %v1630
    %v2319 = vpack.c.b16 %v1639, %v1631
    %v2320 = vpack.c.b16 %v1640, %v1632
    %v2321 = vpack.c.b16 %v1641, %v1633
    %v2322 = vpack.c.b16 %v1642, %v1634
    %v2323 = vpack.c.b16 %v1651, %v1643
    %v2324 = vpack.c.b16 %v1652, %v1644
    %v2325 = vpack.c.b16 %v1653, %v1645
    %v2326 = vpack.c.b16 %v1654, %v1646
    %v2327 = vpack.c.b16 %v1655, %v1647
    %v2328 = vpack.c.b16 %v1656, %v1648
    %v2329 = vpack.c.b16 %v1657, %v1649
    %v2330 = vpack.c.b16 %v1658, %v1650
    %v2331 = vpack.c.b16 %v1667, %v1659
    %v2332 = vpack.c.b16 %v1668, %v1660
    %v2333 = vpack.c.b16 %v1669, %v1661
    %v2334 = vpack.c.b16 %v1670, %v1662
    %v2335 = vpack.c.b16 %v1671, %v1663
    %v2336 = vpack.c.b16 %v1672, %v1664
    %v2337 = vpack.c.b16 %v1673, %v1665
    %v2338 = vpack.c.b16 %v1674, %v1666
    %v2339 = vpack.c.b16 %v1683, %v1675
    %v2340 = vpack.c.b16 %v1684, %v1676
    %v2341 = vpack.c.b16 %v1685, %v1677
    %v2342 = vpack.c.b16 %v1686, %v1678
    %v2343 = vpack.c.b16 %v1687, %v1679
    %v2344 = vpack.c.b16 %v1688, %v1680
    %v2345 = vpack.c.b16 %v1689, %v1681
    %v2346 = vpack.c.b16 %v1690, %v1682
    %v2347 = vpack.c.b16 %v1699, %v1691
    %v2348 = vpack.c.b16 %v1700, %v1692
    %v2349 = vpack.c.b16 %v1701, %v1693
    %v2350 = vpack.c.b16 %v1702, %v1694
    %v2351 = vpack.c.b16 %v1703, %v1695
    %v2352 = vpack.c.b16 %v1704, %v1696
    %v2353 = vpack.c.b16 %v1705, %v1697
    %v2354 = vpack.c.b16 %v1706, %v1698
    %v2355 = vpack.c.b16 %v1715, %v1707
    %v2356 = vpack.c.b16 %v1716, %v1708
    %v2357 = vpack.c.b16 %v1717, %v1709
    %v2358 = vpack.c.b16 %v1718, %v1710
    %v2359 = vpack.c.b16 %v1719, %v1711
    %v2360 = vpack.c.b16 %v1720, %v1712
    %v2361 = vpack.c.b16 %v1721, %v1713
    %v2362 = vpack.c.b16 %v1722, %v1714
    %v2363 = vpack.c.b16 %v1731, %v1723
    %v2364 = vpack.c.b16 %v1732, %v1724
    %v2365 = vpack.c.b16 %v1733, %v1725
    %v2366 = vpack.c.b16 %v1734, %v1726
    %v2367 = vpack.c.b16 %v1735, %v1727
    %v2368 = vpack.c.b16 %v1736, %v1728
    %v2369 = vpack.c.b16 %v1737, %v1729
    %v2370 = vpack.c.b16 %v1738, %v1730
    %v2371 = vpack.c.b16 %v1747, %v1739
    %v2372 = vpack.c.b16 %v1748, %v1740
    %v2373 = vpack.c.b16 %v1749, %v1741
    %v2374 = vpack.c.b16 %v1750, %v1742
    %v2375 = vpack.c.b16 %v1751, %v1743
    %v2376 = vpack.c.b16 %v1752, %v1744
    %v2377 = vpack.c.b16 %v1753, %v1745
    %v2378 = vpack.c.b16 %v1754, %v1746
    %v2379 = vpack.c.b16 %v1763, %v1755
    %v2380 = vpack.c.b16 %v1764, %v1756
    %v2381 = vpack.c.b16 %v1765, %v1757
    %v2382 = vpack.c.b16 %v1766, %v1758
    %v2383 = vpack.c.b16 %v1767, %v1759
    %v2384 = vpack.c.b16 %v1768, %v1760
    %v2385 = vpack.c.b16 %v1769, %v1761
    %v2386 = vpack.c.b16 %v1770, %v1762
    %v2387 = vpack.c.b16 %v1779, %v1771
    %v2388 = vpack.c.b16 %v1780, %v1772
    %v2389 = vpack.c.b16 %v1781, %v1773
    %v2390 = vpack.c.b16 %v1782, %v1774
    %v2391 = vpack.c.b16 %v1783, %v1775
    %v2392 = vpack.c.b16 %v1784, %v1776
    %v2393 = vpack.c.b16 %v1785, %v1777
    %v2394 = vpack.c.b16 %v1786, %v1778
    %v2395 = vpack.c.b16 %v1795, %v1787
    %v2396 = vpack.c.b16 %v1796, %v1788
    %v2397 = vpack.c.b16 %v1797, %v1789
    %v2398 = vpack.c.b16 %v1798, %v1790
    %v2399 = vpack.c.b16 %v1799, %v1791
    %v2400 = vpack.c.b16 %v1800, %v1792
    %v2401 = vpack.c.b16 %v1801, %v1793
    %v2402 = vpack.c.b16 %v1802, %v1794
    %v2403 = vpack.c.b16 %v1811, %v1803
    %v2404 = vpack.c.b16 %v1812, %v1804
    %v2405 = vpack.c.b16 %v1813, %v1805
    %v2406 = vpack.c.b16 %v1814, %v1806
    %v2407 = vpack.c.b16 %v1815, %v1807
    %v2408 = vpack.c.b16 %v1816, %v1808
    %v2409 = vpack.c.b16 %v1817, %v1809
    %v2410 = vpack.c.b16 %v1818, %v1810
    %v2411 = vpack.c.b16 %v1827, %v1819
    %v2412 = vpack.c.b16 %v1828, %v1820
    %v2413 = vpack.c.b16 %v1829, %v1821
    %v2414 = vpack.c.b16 %v1830, %v1822
    %v2415 = vpack.c.b16 %v1831, %v1823
    %v2416 = vpack.c.b16 %v1832, %v1824
    %v2417 = vpack.c.b16 %v1833, %v1825
    %v2418 = vpack.c.b16 %v1834, %v1826
    %v2419 = vpack.c.b16 %v1843, %v1835
    %v2420 = vpack.c.b16 %v1844, %v1836
    %v2421 = vpack.c.b16 %v1845, %v1837
    %v2422 = vpack.c.b16 %v1846, %v1838
    %v2423 = vpack.c.b16 %v1847, %v1839
    %v2424 = vpack.c.b16 %v1848, %v1840
    %v2425 = vpack.c.b16 %v1849, %v1841
    %v2426 = vpack.c.b16 %v1850, %v1842
    %v2427 = vpack.c.b16 %v1859, %v1851
    %v2428 = vpack.c.b16 %v1860, %v1852
    %v2429 = vpack.c.b16 %v1861, %v1853
    %v2430 = vpack.c.b16 %v1862, %v1854
    %v2431 = vpack.c.b16 %v1863, %v1855
    %v2432 = vpack.c.b16 %v1864, %v1856
    %v2433 = vpack.c.b16 %v1865, %v1857
    %v2434 = vpack.c.b16 %v1866, %v1858
    %v2435 = vpack.c.b16 %v1875, %v1867
    %v2436 = vpack.c.b16 %v1876, %v1868
    %v2437 = vpack.c.b16 %v1877, %v1869
    %v2438 = vpack.c.b16 %v1878, %v1870
    %v2439 = vpack.c.b16 %v1879, %v1871
    %v2440 = vpack.c.b16 %v1880, %v1872
    %v2441 = vpack.c.b16 %v1881, %v1873
    %v2442 = vpack.c.b16 %v1882, %v1874
    %v2443 = vpack.c.b16 %v1891, %v1883
    %v2444 = vpack.c.b16 %v1892, %v1884
    %v2445 = vpack.c.b16 %v1893, %v1885
    %v2446 = vpack.c.b16 %v1894, %v1886
    %v2447 = vpack.c.b16 %v1895, %v1887
    %v2448 = vpack.c.b16 %v1896, %v1888
    %v2449 = vpack.c.b16 %v1897, %v1889
    %v2450 = vpack.c.b16 %v1898, %v1890
    %v2451 = vpack.c.b16 %v1907, %v1899
    %v2452 = vpack.c.b16 %v1908, %v1900
    %v2453 = vpack.c.b16 %v1909, %v1901
    %v2454 = vpack.c.b16 %v1910, %v1902
    %v2455 = vpack.c.b16 %v1911, %v1903
    %v2456 = vpack.c.b16 %v1912, %v1904
    %v2457 = vpack.c.b16 %v1913, %v1905
    %v2458 = vpack.c.b16 %v1914, %v1906
    %v2459 = vpack.c.b16 %v1923, %v1915
    %v2460 = vpack.c.b16 %v1924, %v1916
    %v2461 = vpack.c.b16 %v1925, %v1917
    %v2462 = vpack.c.b16 %v1926, %v1918
    %v2463 = vpack.c.b16 %v1927, %v1919
    %v2464 = vpack.c.b16 %v1928, %v1920
    %v2465 = vpack.c.b16 %v1929, %v1921
    %v2466 = vpack.c.b16 %v1930, %v1922
    %v2467 = vpack.c.b16 %v1939, %v1931
    %v2468 = vpack.c.b16 %v1940, %v1932
    %v2469 = vpack.c.b16 %v1941, %v1933
    %v2470 = vpack.c.b16 %v1942, %v1934
    %v2471 = vpack.c.b16 %v1943, %v1935
    %v2472 = vpack.c.b16 %v1944, %v1936
    %v2473 = vpack.c.b16 %v1945, %v1937
    %v2474 = vpack.c.b16 %v1946, %v1938
    %v2475 = vpack.c.b16 %v1955, %v1947
    %v2476 = vpack.c.b16 %v1956, %v1948
    %v2477 = vpack.c.b16 %v1957, %v1949
    %v2478 = vpack.c.b16 %v1958, %v1950
    %v2479 = vpack.c.b16 %v1959, %v1951
    %v2480 = vpack.c.b16 %v1960, %v1952
    %v2481 = vpack.c.b16 %v1961, %v1953
    %v2482 = vpack.c.b16 %v1962, %v1954
    %v2483 = vpack.c.b16 %v1971, %v1963
    %v2484 = vpack.c.b16 %v1972, %v1964
    %v2485 = vpack.c.b16 %v1973, %v1965
    %v2486 = vpack.c.b16 %v1974, %v1966
    %v2487 = vpack.c.b16 %v1975, %v1967
    %v2488 = vpack.c.b16 %v1976, %v1968
    %v2489 = vpack.c.b16 %v1977, %v1969
    %v2490 = vpack.c.b16 %v1978, %v1970
    %v2491 = vpack.c.b16 %v1987, %v1979
    %v2492 = vpack.c.b16 %v1988, %v1980
    %v2493 = vpack.c.b16 %v1989, %v1981
    %v2494 = vpack.c.b16 %v1990, %v1982
    %v2495 = vpack.c.b16 %v1991, %v1983
    %v2496 = vpack.c.b16 %v1992, %v1984
    %v2497 = vpack.c.b16 %v1993, %v1985
    %v2498 = vpack.c.b16 %v1994, %v1986
    %v2499 = vpack.c.b16 %v2003, %v1995
    %v2500 = vpack.c.b16 %v2004, %v1996
    %v2501 = vpack.c.b16 %v2005, %v1997
    %v2502 = vpack.c.b16 %v2006, %v1998
    %v2503 = vpack.c.b16 %v2007, %v1999
    %v2504 = vpack.c.b16 %v2008, %v2000
    %v2505 = vpack.c.b16 %v2009, %v2001
    %v2506 = vpack.c.b16 %v2010, %v2002
    %v2507 = vpack.c.b16 %v2019, %v2011
    %v2508 = vpack.c.b16 %v2020, %v2012
    %v2509 = vpack.c.b16 %v2021, %v2013
    %v2510 = vpack.c.b16 %v2022, %v2014
    %v2511 = vpack.c.b16 %v2023, %v2015
    %v2512 = vpack.c.b16 %v2024, %v2016
    %v2513 = vpack.c.b16 %v2025, %v2017
    %v2514 = vpack.c.b16 %v2026, %v2018
    %v2515 = vpack.c.b16 %v2035, %v2027
    %v2516 = vpack.c.b16 %v2036, %v2028
    %v2517 = vpack.c.b16 %v2037, %v2029
    %v2518 = vpack.c.b16 %v2038, %v2030
    %v2519 = vpack.c.b16 %v2039, %v2031
    %v2520 = vpack.c.b16 %v2040, %v2032
    %v2521 = vpack.c.b16 %v2041, %v2033
    %v2522 = vpack.c.b16 %v2042, %v2034
    %v2523 = vpack.c.b16 %v2051, %v2043
    %v2524 = vpack.c.b16 %v2052, %v2044
    %v2525 = vpack.c.b16 %v2053, %v2045
    %v2526 = vpack.c.b16 %v2054, %v2046
    %v2527 = vpack.c.b16 %v2055, %v2047
    %v2528 = vpack.c.b16 %v2056, %v2048
    %v2529 = vpack.c.b16 %v2057, %v2049
    %v2530 = vpack.c.b16 %v2058, %v2050
    %v2531 = vpack.c.b16 %v2067, %v2059
    %v2532 = vpack.c.b16 %v2068, %v2060
    %v2533 = vpack.c.b16 %v2069, %v2061
    %v2534 = vpack.c.b16 %v2070, %v2062
    %v2535 = vpack.c.b16 %v2071, %v2063
    %v2536 = vpack.c.b16 %v2072, %v2064
    %v2537 = vpack.c.b16 %v2073, %v2065
    %v2538 = vpack.c.b16 %v2074, %v2066
    %v2539 = vpack.c.b16 %v2083, %v2075
    %v2540 = vpack.c.b16 %v2084, %v2076
    %v2541 = vpack.c.b16 %v2085, %v2077
    %v2542 = vpack.c.b16 %v2086, %v2078
    %v2543 = vpack.c.b16 %v2087, %v2079
    %v2544 = vpack.c.b16 %v2088, %v2080
    %v2545 = vpack.c.b16 %v2089, %v2081
    %v2546 = vpack.c.b16 %v2090, %v2082
    %v2547 = vpack.c.b16 %v2099, %v2091
    %v2548 = vpack.c.b16 %v2100, %v2092
    %v2549 = vpack.c.b16 %v2101, %v2093
    %v2550 = vpack.c.b16 %v2102, %v2094
    %v2551 = vpack.c.b16 %v2103, %v2095
    %v2552 = vpack.c.b16 %v2104, %v2096
    %v2553 = vpack.c.b16 %v2105, %v2097
    %v2554 = vpack.c.b16 %v2106, %v2098
    %3003 = vmatprep.subr.bf16.mxu0 %v2108
    %3004 = vmatpush1.bf16.msra.mxu0 %v2107
    %3005 = vmatprep.subr.bf16.mxu0 %v2116
    %3006 = vmatpush1.bf16.msra.mxu0 %v2115
    %3007 = vmatprep.subr.bf16.mxu0 %v2124
    %3008 = vmatpush1.bf16.msra.mxu0 %v2123
    %3009 = vmatprep.subr.bf16.mxu0 %v2132
    %3010 = vmatpush1.bf16.msra.mxu0 %v2131
    %3011 = vmatprep.subr.bf16.mxu0 %v2140
    %3012 = vmatpush1.bf16.msra.mxu0 %v2139
    %3013 = vmatprep.subr.bf16.mxu0 %v2148
    %3014 = vmatpush1.bf16.msra.mxu0 %v2147
    %3015 = vmatprep.subr.bf16.mxu0 %v2156
    %3016 = vmatpush1.bf16.msra.mxu0 %v2155
    %3017 = vmatprep.subr.bf16.mxu0 %v2164
    %3018 = vmatpush1.bf16.msra.mxu0 %v2163
    %3019 = vmatprep.subr.bf16.mxu0 %v2172
    %3020 = vmatpush1.bf16.msra.mxu0 %v2171
    %3021 = vmatprep.subr.bf16.mxu0 %v2180
    %3022 = vmatpush1.bf16.msra.mxu0 %v2179
    %3023 = vmatprep.subr.bf16.mxu0 %v2188
    %3024 = vmatpush1.bf16.msra.mxu0 %v2187
    %3025 = vmatprep.subr.bf16.mxu0 %v2196
    %3026 = vmatpush1.bf16.msra.mxu0 %v2195
    %3027 = vmatprep.subr.bf16.mxu0 %v2204
    %3028 = vmatpush1.bf16.msra.mxu0 %v2203
    %3029 = vmatprep.subr.bf16.mxu0 %v2212
    %3030 = vmatpush1.bf16.msra.mxu0 %v2211
    %3031 = vmatprep.subr.bf16.mxu0 %v2220
    %3032 = vmatpush1.bf16.msra.mxu0 %v2219
    %3033 = vmatprep.subr.bf16.mxu0 %v2228
    %3034 = vmatpush1.bf16.msra.mxu0 %v2227
    %3035 = vmatprep.mubr.bf16.mxu0 %v750
    %3036 = vmatmul.mubr.bf16.gmra.mrb[0].mxu0 %v749
    %v3037 = vpop.f32.mrb[0].mxu0
    %v3038 = vadd.f32 0.0, %v3037
    %v3039 = vpop.f32.mrb[0].mxu0
    %v3040 = vadd.f32 0.0, %v3039
    %v3041 = vpop.f32.mrb[0].mxu0
    %v3042 = vpop.f32.mrb[0].mxu0
    %3043 = vdwg.mxu0
    %3044 = vmatprep.subr.bf16.mxu0 %v2236
    %3045 = vmatpush1.bf16.msra.mxu0 %v2235
    %3046 = vmatprep.subr.bf16.mxu0 %v2244
    %3047 = vmatpush1.bf16.msra.mxu0 %v2243
    %3048 = vmatprep.subr.bf16.mxu0 %v2252
    %3049 = vmatpush1.bf16.msra.mxu0 %v2251
    %3050 = vmatprep.subr.bf16.mxu0 %v2260
    %3051 = vmatpush1.bf16.msra.mxu0 %v2259
    %3052 = vmatprep.subr.bf16.mxu0 %v2268
    %3053 = vmatpush1.bf16.msra.mxu0 %v2267
    %3054 = vmatprep.subr.bf16.mxu0 %v2276
    %3055 = vmatpush1.bf16.msra.mxu0 %v2275
    %3056 = vmatprep.subr.bf16.mxu0 %v2284
    %3057 = vmatpush1.bf16.msra.mxu0 %v2283
    %3058 = vmatprep.subr.bf16.mxu0 %v2292
    %3059 = vmatpush1.bf16.msra.mxu0 %v2291
    %3060 = vmatprep.subr.bf16.mxu0 %v2300
    %3061 = vmatpush1.bf16.msra.mxu0 %v2299
    %3062 = vmatprep.subr.bf16.mxu0 %v2308
    %3063 = vmatpush1.bf16.msra.mxu0 %v2307
    %3064 = vmatprep.subr.bf16.mxu0 %v2316
    %3065 = vmatpush1.bf16.msra.mxu0 %v2315
    %3066 = vmatprep.subr.bf16.mxu0 %v2324
    %3067 = vmatpush1.bf16.msra.mxu0 %v2323
    %3068 = vmatprep.subr.bf16.mxu0 %v2332
    %3069 = vmatpush1.bf16.msra.mxu0 %v2331
    %3070 = vmatprep.subr.bf16.mxu0 %v2340
    %3071 = vmatpush1.bf16.msra.mxu0 %v2339
    %3072 = vmatprep.subr.bf16.mxu0 %v2348
    %3073 = vmatpush1.bf16.msra.mxu0 %v2347
    %3074 = vmatprep.subr.bf16.mxu0 %v2356
    %3075 = vmatpush1.bf16.msra.mxu0 %v2355
    %3076 = vmatprep.mubr.bf16.mxu0 %v752
    %3077 = vmatmul.mubr.bf16.gmra.mrb[0].mxu0 %v751
    %v3078 = vpop.f32.mrb[0].mxu0
    %v3079 = vadd.f32 %v3038, %v3078
    %v3080 = vpop.f32.mrb[0].mxu0
    %v3081 = vadd.f32 %v3040, %v3080
    %v3082 = vpop.f32.mrb[0].mxu0
    %v3083 = vpop.f32.mrb[0].mxu0
    %3084 = vdwg.mxu0
    %3085 = vmatprep.subr.bf16.mxu0 %v2364
    %3086 = vmatpush1.bf16.msra.mxu0 %v2363
    %3087 = vmatprep.subr.bf16.mxu0 %v2372
    %3088 = vmatpush1.bf16.msra.mxu0 %v2371
    %3089 = vmatprep.subr.bf16.mxu0 %v2380
    %3090 = vmatpush1.bf16.msra.mxu0 %v2379
    %3091 = vmatprep.subr.bf16.mxu0 %v2388
    %3092 = vmatpush1.bf16.msra.mxu0 %v2387
    %3093 = vmatprep.subr.bf16.mxu0 %v2396
    %3094 = vmatpush1.bf16.msra.mxu0 %v2395
    %3095 = vmatprep.subr.bf16.mxu0 %v2404
    %3096 = vmatpush1.bf16.msra.mxu0 %v2403
    %3097 = vmatprep.subr.bf16.mxu0 %v2412
    %3098 = vmatpush1.bf16.msra.mxu0 %v2411
    %3099 = vmatprep.subr.bf16.mxu0 %v2420
    %3100 = vmatpush1.bf16.msra.mxu0 %v2419
    %3101 = vmatprep.subr.bf16.mxu0 %v2428
    %3102 = vmatpush1.bf16.msra.mxu0 %v2427
    %3103 = vmatprep.subr.bf16.mxu0 %v2436
    %3104 = vmatpush1.bf16.msra.mxu0 %v2435
    %3105 = vmatprep.subr.bf16.mxu0 %v2444
    %3106 = vmatpush1.bf16.msra.mxu0 %v2443
    %3107 = vmatprep.subr.bf16.mxu0 %v2452
    %3108 = vmatpush1.bf16.msra.mxu0 %v2451
    %3109 = vmatprep.subr.bf16.mxu0 %v2460
    %3110 = vmatpush1.bf16.msra.mxu0 %v2459
    %3111 = vmatprep.subr.bf16.mxu0 %v2468
    %3112 = vmatpush1.bf16.msra.mxu0 %v2467
    %3113 = vmatprep.subr.bf16.mxu0 %v2476
    %3114 = vmatpush1.bf16.msra.mxu0 %v2475
    %3115 = vmatprep.subr.bf16.mxu0 %v2484
    %3116 = vmatpush1.bf16.msra.mxu0 %v2483
    %3117 = vmatprep.mubr.bf16.mxu0 %v754
    %3118 = vmatmul.mubr.bf16.gmra.mrb[0].mxu0 %v753
    %v3119 = vpop.f32.mrb[0].mxu0
    %v3120 = vadd.f32 %v3079, %v3119
    %v3121 = vpop.f32.mrb[0].mxu0
    %v3122 = vadd.f32 %v3081, %v3121
    %v3123 = vpop.f32.mrb[0].mxu0
    %v3124 = vpop.f32.mrb[0].mxu0
    %3125 = vdwg.mxu0
    %3126 = vmatprep.subr.bf16.mxu0 %v2492
    %3127 = vmatpush1.bf16.msra.mxu0 %v2491
    %3128 = vmatprep.subr.bf16.mxu0 %v2500
    %3129 = vmatpush1.bf16.msra.mxu0 %v2499
    %3130 = vmatprep.subr.bf16.mxu0 %v2508
    %3131 = vmatpush1.bf16.msra.mxu0 %v2507
    %3132 = vmatprep.subr.bf16.mxu0 %v2516
    %3133 = vmatpush1.bf16.msra.mxu0 %v2515
    %3134 = vmatprep.subr.bf16.mxu0 %v2524
    %3135 = vmatpush1.bf16.msra.mxu0 %v2523
    %3136 = vmatprep.subr.bf16.mxu0 %v2532
    %3137 = vmatpush1.bf16.msra.mxu0 %v2531
    %3138 = vmatprep.subr.bf16.mxu0 %v2540
    %3139 = vmatpush1.bf16.msra.mxu0 %v2539
    %3140 = vmatprep.subr.bf16.mxu0 %v2548
    %3141 = vmatpush1.bf16.msra.mxu0 %v2547
    %3142 = vmatprep.subr.bf16.mxu0 0
    %3143 = vmatpush1.bf16.msra.mxu0 0
    %3144 = vmatprep.subr.bf16.mxu0 0
    %3145 = vmatpush1.bf16.msra.mxu0 0
    %3146 = vmatprep.subr.bf16.mxu0 0
    %3147 = vmatpush1.bf16.msra.mxu0 0
    %3148 = vmatprep.subr.bf16.mxu0 0
    %3149 = vmatpush1.bf16.msra.mxu0 0
    %3150 = vmatprep.subr.bf16.mxu0 0
    %3151 = vmatpush1.bf16.msra.mxu0 0
    %3152 = vmatprep.subr.bf16.mxu0 0
    %3153 = vmatpush1.bf16.msra.mxu0 0
    %3154 = vmatprep.subr.bf16.mxu0 0
    %3155 = vmatpush1.bf16.msra.mxu0 0
    %3156 = vmatprep.subr.bf16.mxu0 0
    %3157 = vmatpush1.bf16.msra.mxu0 0
    %3158 = vmatprep.mubr.bf16.mxu0 0
    %3159 = vmatmul.mubr.bf16.gmra.mrb[0].mxu0 %v755
    %v3160 = vpop.f32.mrb[0].mxu0
    %v3161 = vadd.f32 %v3120, %v3160
    %v3162 = vpop.f32.mrb[0].mxu0
    %v3163 = vadd.f32 %v3122, %v3162
    %v3164 = vpop.f32.mrb[0].mxu0
    %v3165 = vpop.f32.mrb[0].mxu0
    %3166 = vdwg.mxu0
    %3167 = vmatprep.subr.bf16.mxu0 %v2110
    %3168 = vmatpush1.bf16.msra.mxu0 %v2109
    %3169 = vmatprep.subr.bf16.mxu0 %v2118
    %3170 = vmatpush1.bf16.msra.mxu0 %v2117
    %3171 = vmatprep.subr.bf16.mxu0 %v2126
    %3172 = vmatpush1.bf16.msra.mxu0 %v2125
    %3173 = vmatprep.subr.bf16.mxu0 %v2134
    %3174 = vmatpush1.bf16.msra.mxu0 %v2133
    %3175 = vmatprep.subr.bf16.mxu0 %v2142
    %3176 = vmatpush1.bf16.msra.mxu0 %v2141
    %3177 = vmatprep.subr.bf16.mxu0 %v2150
    %3178 = vmatpush1.bf16.msra.mxu0 %v2149
    %3179 = vmatprep.subr.bf16.mxu0 %v2158
    %3180 = vmatpush1.bf16.msra.mxu0 %v2157
    %3181 = vmatprep.subr.bf16.mxu0 %v2166
    %3182 = vmatpush1.bf16.msra.mxu0 %v2165
    %3183 = vmatprep.subr.bf16.mxu0 %v2174
    %3184 = vmatpush1.bf16.msra.mxu0 %v2173
    %3185 = vmatprep.subr.bf16.mxu0 %v2182
    %3186 = vmatpush1.bf16.msra.mxu0 %v2181
    %3187 = vmatprep.subr.bf16.mxu0 %v2190
    %3188 = vmatpush1.bf16.msra.mxu0 %v2189
    %3189 = vmatprep.subr.bf16.mxu0 %v2198
    %3190 = vmatpush1.bf16.msra.mxu0 %v2197
    %3191 = vmatprep.subr.bf16.mxu0 %v2206
    %3192 = vmatpush1.bf16.msra.mxu0 %v2205
    %3193 = vmatprep.subr.bf16.mxu0 %v2214
    %3194 = vmatpush1.bf16.msra.mxu0 %v2213
    %3195 = vmatprep.subr.bf16.mxu0 %v2222
    %3196 = vmatpush1.bf16.msra.mxu0 %v2221
    %3197 = vmatprep.subr.bf16.mxu0 %v2230
    %3198 = vmatpush1.bf16.msra.mxu0 %v2229
    %3199 = vmatprep.mubr.bf16.mxu0 %v750
    %3200 = vmatmul.mubr.bf16.gmra.mrb[0].mxu0 %v749
    %v3201 = vpop.f32.mrb[0].mxu0
    %v3202 = vadd.f32 0.0, %v3201
    %v3203 = vpop.f32.mrb[0].mxu0
    %v3204 = vadd.f32 0.0, %v3203
    %v3205 = vpop.f32.mrb[0].mxu0
    %v3206 = vpop.f32.mrb[0].mxu0
    %3207 = vdwg.mxu0
    %3208 = vmatprep.subr.bf16.mxu0 %v2238
    %3209 = vmatpush1.bf16.msra.mxu0 %v2237
    %3210 = vmatprep.subr.bf16.mxu0 %v2246
    %3211 = vmatpush1.bf16.msra.mxu0 %v2245
    %3212 = vmatprep.subr.bf16.mxu0 %v2254
    %3213 = vmatpush1.bf16.msra.mxu0 %v2253
    %3214 = vmatprep.subr.bf16.mxu0 %v2262
    %3215 = vmatpush1.bf16.msra.mxu0 %v2261
    %3216 = vmatprep.subr.bf16.mxu0 %v2270
    %3217 = vmatpush1.bf16.msra.mxu0 %v2269
    %3218 = vmatprep.subr.bf16.mxu0 %v2278
    %3219 = vmatpush1.bf16.msra.mxu0 %v2277
    %3220 = vmatprep.subr.bf16.mxu0 %v2286
    %3221 = vmatpush1.bf16.msra.mxu0 %v2285
    %3222 = vmatprep.subr.bf16.mxu0 %v2294
    %3223 = vmatpush1.bf16.msra.mxu0 %v2293
    %3224 = vmatprep.subr.bf16.mxu0 %v2302
    %3225 = vmatpush1.bf16.msra.mxu0 %v2301
    %3226 = vmatprep.subr.bf16.mxu0 %v2310
    %3227 = vmatpush1.bf16.msra.mxu0 %v2309
    %3228 = vmatprep.subr.bf16.mxu0 %v2318
    %3229 = vmatpush1.bf16.msra.mxu0 %v2317
    %3230 = vmatprep.subr.bf16.mxu0 %v2326
    %3231 = vmatpush1.bf16.msra.mxu0 %v2325
    %3232 = vmatprep.subr.bf16.mxu0 %v2334
    %3233 = vmatpush1.bf16.msra.mxu0 %v2333
    %3234 = vmatprep.subr.bf16.mxu0 %v2342
    %3235 = vmatpush1.bf16.msra.mxu0 %v2341
    %3236 = vmatprep.subr.bf16.mxu0 %v2350
    %3237 = vmatpush1.bf16.msra.mxu0 %v2349
    %3238 = vmatprep.subr.bf16.mxu0 %v2358
    %3239 = vmatpush1.bf16.msra.mxu0 %v2357
    %3240 = vmatprep.mubr.bf16.mxu0 %v752
    %3241 = vmatmul.mubr.bf16.gmra.mrb[0].mxu0 %v751
    %v3242 = vpop.f32.mrb[0].mxu0
    %v3243 = vadd.f32 %v3202, %v3242
    %v3244 = vpop.f32.mrb[0].mxu0
    %v3245 = vadd.f32 %v3204, %v3244
    %v3246 = vpop.f32.mrb[0].mxu0
    %v3247 = vpop.f32.mrb[0].mxu0
    %3248 = vdwg.mxu0
    %3249 = vmatprep.subr.bf16.mxu0 %v2366
    %3250 = vmatpush1.bf16.msra.mxu0 %v2365
    %3251 = vmatprep.subr.bf16.mxu0 %v2374
    %3252 = vmatpush1.bf16.msra.mxu0 %v2373
    %3253 = vmatprep.subr.bf16.mxu0 %v2382
    %3254 = vmatpush1.bf16.msra.mxu0 %v2381
    %3255 = vmatprep.subr.bf16.mxu0 %v2390
    %3256 = vmatpush1.bf16.msra.mxu0 %v2389
    %3257 = vmatprep.subr.bf16.mxu0 %v2398
    %3258 = vmatpush1.bf16.msra.mxu0 %v2397
    %3259 = vmatprep.subr.bf16.mxu0 %v2406
    %3260 = vmatpush1.bf16.msra.mxu0 %v2405
    %3261 = vmatprep.subr.bf16.mxu0 %v2414
    %3262 = vmatpush1.bf16.msra.mxu0 %v2413
    %3263 = vmatprep.subr.bf16.mxu0 %v2422
    %3264 = vmatpush1.bf16.msra.mxu0 %v2421
    %3265 = vmatprep.subr.bf16.mxu0 %v2430
    %3266 = vmatpush1.bf16.msra.mxu0 %v2429
    %3267 = vmatprep.subr.bf16.mxu0 %v2438
    %3268 = vmatpush1.bf16.msra.mxu0 %v2437
    %3269 = vmatprep.subr.bf16.mxu0 %v2446
    %3270 = vmatpush1.bf16.msra.mxu0 %v2445
    %3271 = vmatprep.subr.bf16.mxu0 %v2454
    %3272 = vmatpush1.bf16.msra.mxu0 %v2453
    %3273 = vmatprep.subr.bf16.mxu0 %v2462
    %3274 = vmatpush1.bf16.msra.mxu0 %v2461
    %3275 = vmatprep.subr.bf16.mxu0 %v2470
    %3276 = vmatpush1.bf16.msra.mxu0 %v2469
    %3277 = vmatprep.subr.bf16.mxu0 %v2478
    %3278 = vmatpush1.bf16.msra.mxu0 %v2477
    %3279 = vmatprep.subr.bf16.mxu0 %v2486
    %3280 = vmatpush1.bf16.msra.mxu0 %v2485
    %3281 = vmatprep.mubr.bf16.mxu0 %v754
    %3282 = vmatmul.mubr.bf16.gmra.mrb[0].mxu0 %v753
    %v3283 = vpop.f32.mrb[0].mxu0
    %v3284 = vadd.f32 %v3243, %v3283
    %v3285 = vpop.f32.mrb[0].mxu0
    %v3286 = vadd.f32 %v3245, %v3285
    %v3287 = vpop.f32.mrb[0].mxu0
    %v3288 = vpop.f32.mrb[0].mxu0
    %3289 = vdwg.mxu0
    %3290 = vmatprep.subr.bf16.mxu0 %v2494
    %3291 = vmatpush1.bf16.msra.mxu0 %v2493
    %3292 = vmatprep.subr.bf16.mxu0 %v2502
    %3293 = vmatpush1.bf16.msra.mxu0 %v2501
    %3294 = vmatprep.subr.bf16.mxu0 %v2510
    %3295 = vmatpush1.bf16.msra.mxu0 %v2509
    %3296 = vmatprep.subr.bf16.mxu0 %v2518
    %3297 = vmatpush1.bf16.msra.mxu0 %v2517
    %3298 = vmatprep.subr.bf16.mxu0 %v2526
    %3299 = vmatpush1.bf16.msra.mxu0 %v2525
    %3300 = vmatprep.subr.bf16.mxu0 %v2534
    %3301 = vmatpush1.bf16.msra.mxu0 %v2533
    %3302 = vmatprep.subr.bf16.mxu0 %v2542
    %3303 = vmatpush1.bf16.msra.mxu0 %v2541
    %3304 = vmatprep.subr.bf16.mxu0 %v2550
    %3305 = vmatpush1.bf16.msra.mxu0 %v2549
    %3306 = vmatprep.subr.bf16.mxu0 0
    %3307 = vmatpush1.bf16.msra.mxu0 0
    %3308 = vmatprep.subr.bf16.mxu0 0
    %3309 = vmatpush1.bf16.msra.mxu0 0
    %3310 = vmatprep.subr.bf16.mxu0 0
    %3311 = vmatpush1.bf16.msra.mxu0 0
    %3312 = vmatprep.subr.bf16.mxu0 0
    %3313 = vmatpush1.bf16.msra.mxu0 0
    %3314 = vmatprep.subr.bf16.mxu0 0
    %3315 = vmatpush1.bf16.msra.mxu0 0
    %3316 = vmatprep.subr.bf16.mxu0 0
    %3317 = vmatpush1.bf16.msra.mxu0 0
    %3318 = vmatprep.subr.bf16.mxu0 0
    %3319 = vmatpush1.bf16.msra.mxu0 0
    %3320 = vmatprep.subr.bf16.mxu0 0
    %3321 = vmatpush1.bf16.msra.mxu0 0
    %3322 = vmatprep.mubr.bf16.mxu0 0
    %3323 = vmatmul.mubr.bf16.gmra.mrb[0].mxu0 %v755
    %v3324 = vpop.f32.mrb[0].mxu0
    %v3325 = vadd.f32 %v3284, %v3324
    %v3326 = vpop.f32.mrb[0].mxu0
    %v3327 = vadd.f32 %v3286, %v3326
    %v3328 = vpop.f32.mrb[0].mxu0
    %v3329 = vpop.f32.mrb[0].mxu0
    %3330 = vdwg.mxu0
    %3331 = vmatprep.subr.bf16.mxu0 %v2112
    %3332 = vmatpush1.bf16.msra.mxu0 %v2111
    %3333 = vmatprep.subr.bf16.mxu0 %v2120
    %3334 = vmatpush1.bf16.msra.mxu0 %v2119
    %3335 = vmatprep.subr.bf16.mxu0 %v2128
    %3336 = vmatpush1.bf16.msra.mxu0 %v2127
    %3337 = vmatprep.subr.bf16.mxu0 %v2136
    %3338 = vmatpush1.bf16.msra.mxu0 %v2135
    %3339 = vmatprep.subr.bf16.mxu0 %v2144
    %3340 = vmatpush1.bf16.msra.mxu0 %v2143
    %3341 = vmatprep.subr.bf16.mxu0 %v2152
    %3342 = vmatpush1.bf16.msra.mxu0 %v2151
    %3343 = vmatprep.subr.bf16.mxu0 %v2160
    %3344 = vmatpush1.bf16.msra.mxu0 %v2159
    %3345 = vmatprep.subr.bf16.mxu0 %v2168
    %3346 = vmatpush1.bf16.msra.mxu0 %v2167
    %3347 = vmatprep.subr.bf16.mxu0 %v2176
    %3348 = vmatpush1.bf16.msra.mxu0 %v2175
    %3349 = vmatprep.subr.bf16.mxu0 %v2184
    %3350 = vmatpush1.bf16.msra.mxu0 %v2183
    %3351 = vmatprep.subr.bf16.mxu0 %v2192
    %3352 = vmatpush1.bf16.msra.mxu0 %v2191
    %3353 = vmatprep.subr.bf16.mxu0 %v2200
    %3354 = vmatpush1.bf16.msra.mxu0 %v2199
    %3355 = vmatprep.subr.bf16.mxu0 %v2208
    %3356 = vmatpush1.bf16.msra.mxu0 %v2207
    %3357 = vmatprep.subr.bf16.mxu0 %v2216
    %3358 = vmatpush1.bf16.msra.mxu0 %v2215
    %3359 = vmatprep.subr.bf16.mxu0 %v2224
    %3360 = vmatpush1.bf16.msra.mxu0 %v2223
    %3361 = vmatprep.subr.bf16.mxu0 %v2232
    %3362 = vmatpush1.bf16.msra.mxu0 %v2231
    %3363 = vmatprep.mubr.bf16.mxu0 %v750
    %3364 = vmatmul.mubr.bf16.gmra.mrb[0].mxu0 %v749
    %v3365 = vpop.f32.mrb[0].mxu0
    %v3366 = vadd.f32 0.0, %v3365
    %v3367 = vpop.f32.mrb[0].mxu0
    %v3368 = vadd.f32 0.0, %v3367
    %v3369 = vpop.f32.mrb[0].mxu0
    %v3370 = vpop.f32.mrb[0].mxu0
    %3371 = vdwg.mxu0
    %3372 = vmatprep.subr.bf16.mxu0 %v2240
    %3373 = vmatpush1.bf16.msra.mxu0 %v2239
    %3374 = vmatprep.subr.bf16.mxu0 %v2248
    %3375 = vmatpush1.bf16.msra.mxu0 %v2247
    %3376 = vmatprep.subr.bf16.mxu0 %v2256
    %3377 = vmatpush1.bf16.msra.mxu0 %v2255
    %3378 = vmatprep.subr.bf16.mxu0 %v2264
    %3379 = vmatpush1.bf16.msra.mxu0 %v2263
    %3380 = vmatprep.subr.bf16.mxu0 %v2272
    %3381 = vmatpush1.bf16.msra.mxu0 %v2271
    %3382 = vmatprep.subr.bf16.mxu0 %v2280
    %3383 = vmatpush1.bf16.msra.mxu0 %v2279
    %3384 = vmatprep.subr.bf16.mxu0 %v2288
    %3385 = vmatpush1.bf16.msra.mxu0 %v2287
    %3386 = vmatprep.subr.bf16.mxu0 %v2296
    %3387 = vmatpush1.bf16.msra.mxu0 %v2295
    %3388 = vmatprep.subr.bf16.mxu0 %v2304
    %3389 = vmatpush1.bf16.msra.mxu0 %v2303
    %3390 = vmatprep.subr.bf16.mxu0 %v2312
    %3391 = vmatpush1.bf16.msra.mxu0 %v2311
    %3392 = vmatprep.subr.bf16.mxu0 %v2320
    %3393 = vmatpush1.bf16.msra.mxu0 %v2319
    %3394 = vmatprep.subr.bf16.mxu0 %v2328
    %3395 = vmatpush1.bf16.msra.mxu0 %v2327
    %3396 = vmatprep.subr.bf16.mxu0 %v2336
    %3397 = vmatpush1.bf16.msra.mxu0 %v2335
    %3398 = vmatprep.subr.bf16.mxu0 %v2344
    %3399 = vmatpush1.bf16.msra.mxu0 %v2343
    %3400 = vmatprep.subr.bf16.mxu0 %v2352
    %3401 = vmatpush1.bf16.msra.mxu0 %v2351
    %3402 = vmatprep.subr.bf16.mxu0 %v2360
    %3403 = vmatpush1.bf16.msra.mxu0 %v2359
    %3404 = vmatprep.mubr.bf16.mxu0 %v752
    %3405 = vmatmul.mubr.bf16.gmra.mrb[0].mxu0 %v751
    %v3406 = vpop.f32.mrb[0].mxu0
    %v3407 = vadd.f32 %v3366, %v3406
    %v3408 = vpop.f32.mrb[0].mxu0
    %v3409 = vadd.f32 %v3368, %v3408
    %v3410 = vpop.f32.mrb[0].mxu0
    %v3411 = vpop.f32.mrb[0].mxu0
    %3412 = vdwg.mxu0
    %3413 = vmatprep.subr.bf16.mxu0 %v2368
    %3414 = vmatpush1.bf16.msra.mxu0 %v2367
    %3415 = vmatprep.subr.bf16.mxu0 %v2376
    %3416 = vmatpush1.bf16.msra.mxu0 %v2375
    %3417 = vmatprep.subr.bf16.mxu0 %v2384
    %3418 = vmatpush1.bf16.msra.mxu0 %v2383
    %3419 = vmatprep.subr.bf16.mxu0 %v2392
    %3420 = vmatpush1.bf16.msra.mxu0 %v2391
    %3421 = vmatprep.subr.bf16.mxu0 %v2400
    %3422 = vmatpush1.bf16.msra.mxu0 %v2399
    %3423 = vmatprep.subr.bf16.mxu0 %v2408
    %3424 = vmatpush1.bf16.msra.mxu0 %v2407
    %3425 = vmatprep.subr.bf16.mxu0 %v2416
    %3426 = vmatpush1.bf16.msra.mxu0 %v2415
    %3427 = vmatprep.subr.bf16.mxu0 %v2424
    %3428 = vmatpush1.bf16.msra.mxu0 %v2423
    %3429 = vmatprep.subr.bf16.mxu0 %v2432
    %3430 = vmatpush1.bf16.msra.mxu0 %v2431
    %3431 = vmatprep.subr.bf16.mxu0 %v2440
    %3432 = vmatpush1.bf16.msra.mxu0 %v2439
    %3433 = vmatprep.subr.bf16.mxu0 %v2448
    %3434 = vmatpush1.bf16.msra.mxu0 %v2447
    %3435 = vmatprep.subr.bf16.mxu0 %v2456
    %3436 = vmatpush1.bf16.msra.mxu0 %v2455
    %3437 = vmatprep.subr.bf16.mxu0 %v2464
    %3438 = vmatpush1.bf16.msra.mxu0 %v2463
    %3439 = vmatprep.subr.bf16.mxu0 %v2472
    %3440 = vmatpush1.bf16.msra.mxu0 %v2471
    %3441 = vmatprep.subr.bf16.mxu0 %v2480
    %3442 = vmatpush1.bf16.msra.mxu0 %v2479
    %3443 = vmatprep.subr.bf16.mxu0 %v2488
    %3444 = vmatpush1.bf16.msra.mxu0 %v2487
    %3445 = vmatprep.mubr.bf16.mxu0 %v754
    %3446 = vmatmul.mubr.bf16.gmra.mrb[0].mxu0 %v753
    %v3447 = vpop.f32.mrb[0].mxu0
    %v3448 = vadd.f32 %v3407, %v3447
    %v3449 = vpop.f32.mrb[0].mxu0
    %v3450 = vadd.f32 %v3409, %v3449
    %v3451 = vpop.f32.mrb[0].mxu0
    %v3452 = vpop.f32.mrb[0].mxu0
    %3453 = vdwg.mxu0
    %3454 = vmatprep.subr.bf16.mxu0 %v2496
    %3455 = vmatpush1.bf16.msra.mxu0 %v2495
    %3456 = vmatprep.subr.bf16.mxu0 %v2504
    %3457 = vmatpush1.bf16.msra.mxu0 %v2503
    %3458 = vmatprep.subr.bf16.mxu0 %v2512
    %3459 = vmatpush1.bf16.msra.mxu0 %v2511
    %3460 = vmatprep.subr.bf16.mxu0 %v2520
    %3461 = vmatpush1.bf16.msra.mxu0 %v2519
    %3462 = vmatprep.subr.bf16.mxu0 %v2528
    %3463 = vmatpush1.bf16.msra.mxu0 %v2527
    %3464 = vmatprep.subr.bf16.mxu0 %v2536
    %3465 = vmatpush1.bf16.msra.mxu0 %v2535
    %3466 = vmatprep.subr.bf16.mxu0 %v2544
    %3467 = vmatpush1.bf16.msra.mxu0 %v2543
    %3468 = vmatprep.subr.bf16.mxu0 %v2552
    %3469 = vmatpush1.bf16.msra.mxu0 %v2551
    %3470 = vmatprep.subr.bf16.mxu0 0
    %3471 = vmatpush1.bf16.msra.mxu0 0
    %3472 = vmatprep.subr.bf16.mxu0 0
    %3473 = vmatpush1.bf16.msra.mxu0 0
    %3474 = vmatprep.subr.bf16.mxu0 0
    %3475 = vmatpush1.bf16.msra.mxu0 0
    %3476 = vmatprep.subr.bf16.mxu0 0
    %3477 = vmatpush1.bf16.msra.mxu0 0
    %3478 = vmatprep.subr.bf16.mxu0 0
    %3479 = vmatpush1.bf16.msra.mxu0 0
    %3480 = vmatprep.subr.bf16.mxu0 0
    %3481 = vmatpush1.bf16.msra.mxu0 0
    %3482 = vmatprep.subr.bf16.mxu0 0
    %3483 = vmatpush1.bf16.msra.mxu0 0
    %3484 = vmatprep.subr.bf16.mxu0 0
    %3485 = vmatpush1.bf16.msra.mxu0 0
    %3486 = vmatprep.mubr.bf16.mxu0 0
    %3487 = vmatmul.mubr.bf16.gmra.mrb[0].mxu0 %v755
    %v3488 = vpop.f32.mrb[0].mxu0
    %v3489 = vadd.f32 %v3448, %v3488
    %v3490 = vpop.f32.mrb[0].mxu0
    %v3491 = vadd.f32 %v3450, %v3490
    %v3492 = vpop.f32.mrb[0].mxu0
    %v3493 = vpop.f32.mrb[0].mxu0
    %3494 = vdwg.mxu0
    %3495 = vmatprep.subr.bf16.mxu0 %v2114
    %3496 = vmatpush1.bf16.msra.mxu0 %v2113
    %3497 = vmatprep.subr.bf16.mxu0 %v2122
    %3498 = vmatpush1.bf16.msra.mxu0 %v2121
    %3499 = vmatprep.subr.bf16.mxu0 %v2130
    %3500 = vmatpush1.bf16.msra.mxu0 %v2129
    %3501 = vmatprep.subr.bf16.mxu0 %v2138
    %3502 = vmatpush1.bf16.msra.mxu0 %v2137
    %3503 = vmatprep.subr.bf16.mxu0 %v2146
    %3504 = vmatpush1.bf16.msra.mxu0 %v2145
    %3505 = vmatprep.subr.bf16.mxu0 %v2154
    %3506 = vmatpush1.bf16.msra.mxu0 %v2153
    %3507 = vmatprep.subr.bf16.mxu0 %v2162
    %3508 = vmatpush1.bf16.msra.mxu0 %v2161
    %3509 = vmatprep.subr.bf16.mxu0 %v2170
    %3510 = vmatpush1.bf16.msra.mxu0 %v2169
    %3511 = vmatprep.subr.bf16.mxu0 %v2178
    %3512 = vmatpush1.bf16.msra.mxu0 %v2177
    %3513 = vmatprep.subr.bf16.mxu0 %v2186
    %3514 = vmatpush1.bf16.msra.mxu0 %v2185
    %3515 = vmatprep.subr.bf16.mxu0 %v2194
    %3516 = vmatpush1.bf16.msra.mxu0 %v2193
    %3517 = vmatprep.subr.bf16.mxu0 %v2202
    %3518 = vmatpush1.bf16.msra.mxu0 %v2201
    %3519 = vmatprep.subr.bf16.mxu0 %v2210
    %3520 = vmatpush1.bf16.msra.mxu0 %v2209
    %3521 = vmatprep.subr.bf16.mxu0 %v2218
    %3522 = vmatpush1.bf16.msra.mxu0 %v2217
    %3523 = vmatprep.subr.bf16.mxu0 %v2226
    %3524 = vmatpush1.bf16.msra.mxu0 %v2225
    %3525 = vmatprep.subr.bf16.mxu0 %v2234
    %3526 = vmatpush1.bf16.msra.mxu0 %v2233
    %3527 = vmatprep.mubr.bf16.mxu0 %v750
    %3528 = vmatmul.mubr.bf16.gmra.mrb[0].mxu0 %v749
    %v3529 = vpop.f32.mrb[0].mxu0
    %v3530 = vadd.f32 0.0, %v3529
    %v3531 = vpop.f32.mrb[0].mxu0
    %v3532 = vadd.f32 0.0, %v3531
    %v3533 = vpop.f32.mrb[0].mxu0
    %v3534 = vpop.f32.mrb[0].mxu0
    %3535 = vdwg.mxu0
    %3536 = vmatprep.subr.bf16.mxu0 %v2242
    %3537 = vmatpush1.bf16.msra.mxu0 %v2241
    %3538 = vmatprep.subr.bf16.mxu0 %v2250
    %3539 = vmatpush1.bf16.msra.mxu0 %v2249
    %3540 = vmatprep.subr.bf16.mxu0 %v2258
    %3541 = vmatpush1.bf16.msra.mxu0 %v2257
    %3542 = vmatprep.subr.bf16.mxu0 %v2266
    %3543 = vmatpush1.bf16.msra.mxu0 %v2265
    %3544 = vmatprep.subr.bf16.mxu0 %v2274
    %3545 = vmatpush1.bf16.msra.mxu0 %v2273
    %3546 = vmatprep.subr.bf16.mxu0 %v2282
    %3547 = vmatpush1.bf16.msra.mxu0 %v2281
    %3548 = vmatprep.subr.bf16.mxu0 %v2290
    %3549 = vmatpush1.bf16.msra.mxu0 %v2289
    %3550 = vmatprep.subr.bf16.mxu0 %v2298
    %3551 = vmatpush1.bf16.msra.mxu0 %v2297
    %3552 = vmatprep.subr.bf16.mxu0 %v2306
    %3553 = vmatpush1.bf16.msra.mxu0 %v2305
    %3554 = vmatprep.subr.bf16.mxu0 %v2314
    %3555 = vmatpush1.bf16.msra.mxu0 %v2313
    %3556 = vmatprep.subr.bf16.mxu0 %v2322
    %3557 = vmatpush1.bf16.msra.mxu0 %v2321
    %3558 = vmatprep.subr.bf16.mxu0 %v2330
    %3559 = vmatpush1.bf16.msra.mxu0 %v2329
    %3560 = vmatprep.subr.bf16.mxu0 %v2338
    %3561 = vmatpush1.bf16.msra.mxu0 %v2337
    %3562 = vmatprep.subr.bf16.mxu0 %v2346
    %3563 = vmatpush1.bf16.msra.mxu0 %v2345
    %3564 = vmatprep.subr.bf16.mxu0 %v2354
    %3565 = vmatpush1.bf16.msra.mxu0 %v2353
    %3566 = vmatprep.subr.bf16.mxu0 %v2362
    %3567 = vmatpush1.bf16.msra.mxu0 %v2361
    %3568 = vmatprep.mubr.bf16.mxu0 %v752
    %3569 = vmatmul.mubr.bf16.gmra.mrb[0].mxu0 %v751
    %v3570 = vpop.f32.mrb[0].mxu0
    %v3571 = vadd.f32 %v3530, %v3570
    %v3572 = vpop.f32.mrb[0].mxu0
    %v3573 = vadd.f32 %v3532, %v3572
    %v3574 = vpop.f32.mrb[0].mxu0
    %v3575 = vpop.f32.mrb[0].mxu0
    %3576 = vdwg.mxu0
    %3577 = vmatprep.subr.bf16.mxu0 %v2370
    %3578 = vmatpush1.bf16.msra.mxu0 %v2369
    %3579 = vmatprep.subr.bf16.mxu0 %v2378
    %3580 = vmatpush1.bf16.msra.mxu0 %v2377
    %3581 = vmatprep.subr.bf16.mxu0 %v2386
    %3582 = vmatpush1.bf16.msra.mxu0 %v2385
    %3583 = vmatprep.subr.bf16.mxu0 %v2394
    %3584 = vmatpush1.bf16.msra.mxu0 %v2393
    %3585 = vmatprep.subr.bf16.mxu0 %v2402
    %3586 = vmatpush1.bf16.msra.mxu0 %v2401
    %3587 = vmatprep.subr.bf16.mxu0 %v2410
    %3588 = vmatpush1.bf16.msra.mxu0 %v2409
    %3589 = vmatprep.subr.bf16.mxu0 %v2418
    %3590 = vmatpush1.bf16.msra.mxu0 %v2417
    %3591 = vmatprep.subr.bf16.mxu0 %v2426
    %3592 = vmatpush1.bf16.msra.mxu0 %v2425
    %3593 = vmatprep.subr.bf16.mxu0 %v2434
    %3594 = vmatpush1.bf16.msra.mxu0 %v2433
    %3595 = vmatprep.subr.bf16.mxu0 %v2442
    %3596 = vmatpush1.bf16.msra.mxu0 %v2441
    %3597 = vmatprep.subr.bf16.mxu0 %v2450
    %3598 = vmatpush1.bf16.msra.mxu0 %v2449
    %3599 = vmatprep.subr.bf16.mxu0 %v2458
    %3600 = vmatpush1.bf16.msra.mxu0 %v2457
    %3601 = vmatprep.subr.bf16.mxu0 %v2466
    %3602 = vmatpush1.bf16.msra.mxu0 %v2465
    %3603 = vmatprep.subr.bf16.mxu0 %v2474
    %3604 = vmatpush1.bf16.msra.mxu0 %v2473
    %3605 = vmatprep.subr.bf16.mxu0 %v2482
    %3606 = vmatpush1.bf16.msra.mxu0 %v2481
    %3607 = vmatprep.subr.bf16.mxu0 %v2490
    %3608 = vmatpush1.bf16.msra.mxu0 %v2489
    %3609 = vmatprep.mubr.bf16.mxu0 %v754
    %3610 = vmatmul.mubr.bf16.gmra.mrb[0].mxu0 %v753
    %v3611 = vpop.f32.mrb[0].mxu0
    %v3612 = vadd.f32 %v3571, %v3611
    %v3613 = vpop.f32.mrb[0].mxu0
    %v3614 = vadd.f32 %v3573, %v3613
    %v3615 = vpop.f32.mrb[0].mxu0
    %v3616 = vpop.f32.mrb[0].mxu0
    %3617 = vdwg.mxu0
    %3618 = vmatprep.subr.bf16.mxu0 %v2498
    %3619 = vmatpush1.bf16.msra.mxu0 %v2497
    %3620 = vmatprep.subr.bf16.mxu0 %v2506
    %3621 = vmatpush1.bf16.msra.mxu0 %v2505
    %3622 = vmatprep.subr.bf16.mxu0 %v2514
    %3623 = vmatpush1.bf16.msra.mxu0 %v2513
    %3624 = vmatprep.subr.bf16.mxu0 %v2522
    %3625 = vmatpush1.bf16.msra.mxu0 %v2521
    %3626 = vmatprep.subr.bf16.mxu0 %v2530
    %3627 = vmatpush1.bf16.msra.mxu0 %v2529
    %3628 = vmatprep.subr.bf16.mxu0 %v2538
    %3629 = vmatpush1.bf16.msra.mxu0 %v2537
    %3630 = vmatprep.subr.bf16.mxu0 %v2546
    %3631 = vmatpush1.bf16.msra.mxu0 %v2545
    %3632 = vmatprep.subr.bf16.mxu0 %v2554
    %3633 = vmatpush1.bf16.msra.mxu0 %v2553
    %3634 = vmatprep.subr.bf16.mxu0 0
    %3635 = vmatpush1.bf16.msra.mxu0 0
    %3636 = vmatprep.subr.bf16.mxu0 0
    %3637 = vmatpush1.bf16.msra.mxu0 0
    %3638 = vmatprep.subr.bf16.mxu0 0
    %3639 = vmatpush1.bf16.msra.mxu0 0
    %3640 = vmatprep.subr.bf16.mxu0 0
    %3641 = vmatpush1.bf16.msra.mxu0 0
    %3642 = vmatprep.subr.bf16.mxu0 0
    %3643 = vmatpush1.bf16.msra.mxu0 0
    %3644 = vmatprep.subr.bf16.mxu0 0
    %3645 = vmatpush1.bf16.msra.mxu0 0
    %3646 = vmatprep.subr.bf16.mxu0 0
    %3647 = vmatpush1.bf16.msra.mxu0 0
    %3648 = vmatprep.subr.bf16.mxu0 0
    %3649 = vmatpush1.bf16.msra.mxu0 0
    %3650 = vmatprep.mubr.bf16.mxu0 0
    %3651 = vmatmul.mubr.bf16.gmra.mrb[0].mxu0 %v755
    %v3652 = vpop.f32.mrb[0].mxu0
    %v3653 = vadd.f32 %v3612, %v3652
    %v3654 = vpop.f32.mrb[0].mxu0
    %v3655 = vadd.f32 %v3614, %v3654
    %v3656 = vpop.f32.mrb[0].mxu0
    %v3657 = vpop.f32.mrb[0].mxu0
    %3658 = vdwg.mxu0
    %v3660 = vlaneseq
    %v3661 = vshrl.u32 %v3660, 7
    %v3662 = vsub.s32 0, %v3661
    %v3663 = vrot.slane %v736, %v3662
    %v3664 = vlaneseq
    %v3665 = vshrl.u32 %v3664, 7
    %v3666 = vsub.s32 1, %v3665
    %v3667 = vrot.slane %v736, %v3666
    %v3668 = vlaneseq
    %v3669 = vshrl.u32 %v3668, 7
    %v3670 = vsub.s32 2, %v3669
    %v3671 = vrot.slane %v736, %v3670
    %v3672 = vlaneseq
    %v3673 = vshrl.u32 %v3672, 7
    %v3674 = vsub.s32 3, %v3673
    %v3675 = vrot.slane %v736, %v3674
    %v3676 = vlaneseq
    %v3677 = vshrl.u32 %v3676, 7
    %v3678 = vsub.s32 4, %v3677
    %v3679 = vrot.slane %v736, %v3678
    %v3680 = vlaneseq
    %v3681 = vshrl.u32 %v3680, 7
    %v3682 = vsub.s32 5, %v3681
    %v3683 = vrot.slane %v736, %v3682
    %v3684 = vlaneseq
    %v3685 = vshrl.u32 %v3684, 7
    %v3686 = vsub.s32 6, %v3685
    %v3687 = vrot.slane %v736, %v3686
    %v3688 = vlaneseq
    %v3689 = vshrl.u32 %v3688, 7
    %v3690 = vsub.s32 7, %v3689
    %v3691 = vrot.slane %v736, %v3690
    %v3700 = vmul.f32 %v3161, %v3663
    %v3701 = vmul.f32 %v3163, %v3667
    %v3702 = vmul.f32 %v3325, %v3671
    %v3703 = vmul.f32 %v3327, %v3675
    %v3704 = vmul.f32 %v3489, %v3679
    %v3705 = vmul.f32 %v3491, %v3683
    %v3706 = vmul.f32 %v3653, %v3687
    %v3707 = vmul.f32 %v3655, %v3691
    %v3709 = vlaneseq
    %v3710 = vshrl.u32 %v3709, 7
    %v3711 = vsub.s32 0, %v3710
    %v3712 = vrot.slane %v737, %v3711
    %v3713 = vlaneseq
    %v3714 = vshrl.u32 %v3713, 7
    %v3715 = vsub.s32 1, %v3714
    %v3716 = vrot.slane %v737, %v3715
    %v3717 = vlaneseq
    %v3718 = vshrl.u32 %v3717, 7
    %v3719 = vsub.s32 2, %v3718
    %v3720 = vrot.slane %v737, %v3719
    %v3721 = vlaneseq
    %v3722 = vshrl.u32 %v3721, 7
    %v3723 = vsub.s32 3, %v3722
    %v3724 = vrot.slane %v737, %v3723
    %v3725 = vlaneseq
    %v3726 = vshrl.u32 %v3725, 7
    %v3727 = vsub.s32 4, %v3726
    %v3728 = vrot.slane %v737, %v3727
    %v3729 = vlaneseq
    %v3730 = vshrl.u32 %v3729, 7
    %v3731 = vsub.s32 5, %v3730
    %v3732 = vrot.slane %v737, %v3731
    %v3733 = vlaneseq
    %v3734 = vshrl.u32 %v3733, 7
    %v3735 = vsub.s32 6, %v3734
    %v3736 = vrot.slane %v737, %v3735
    %v3737 = vlaneseq
    %v3738 = vshrl.u32 %v3737, 7
    %v3739 = vsub.s32 7, %v3738
    %v3740 = vrot.slane %v737, %v3739
    %v3749 = vadd.f32 %v3700, %v3712
    %v3750 = vadd.f32 %v3701, %v3716
    %v3751 = vadd.f32 %v3702, %v3720
    %v3752 = vadd.f32 %v3703, %v3724
    %v3753 = vadd.f32 %v3704, %v3728
    %v3754 = vadd.f32 %v3705, %v3732
    %v3755 = vadd.f32 %v3706, %v3736
    %v3756 = vadd.f32 %v3707, %v3740
    %v3757 = vmax.f32 %v3749, 0.0
    %v3758 = vmax.f32 %v3750, 0.0
    %v3759 = vmax.f32 %v3751, 0.0
    %v3760 = vmax.f32 %v3752, 0.0
    %v3761 = vmax.f32 %v3753, 0.0
    %v3762 = vmax.f32 %v3754, 0.0
    %v3763 = vmax.f32 %v3755, 0.0
    %v3764 = vmax.f32 %v3756, 0.0
    %v3765 = vpack.c.bf16 %v3757, %v3757
    %v3766 = vpack.c.bf16 %v3758, %v3758
    %v3767 = vpack.c.bf16 %v3759, %v3759
    %v3768 = vpack.c.bf16 %v3760, %v3760
    %v3769 = vpack.c.bf16 %v3761, %v3761
    %v3770 = vpack.c.bf16 %v3762, %v3762
    %v3771 = vpack.c.bf16 %v3763, %v3763
    %v3772 = vpack.c.bf16 %v3764, %v3764
    %v3773 = vld [vmem:[#allocation8] sm:$0xff]
    %v3774 = vld [vmem:[#allocation8 + $0x8] sm:$0xff]
    %v3775 = vld [vmem:[#allocation8 + $0x10] sm:$0xff]
    %v3776 = vld [vmem:[#allocation8 + $0x18] sm:$0xff]
    %v3777 = vld [vmem:[#allocation8 + $0x20] sm:$0xff]
    %v3778 = vld [vmem:[#allocation8 + $0x28] sm:$0xff]
    %v3779 = vld [vmem:[#allocation8 + $0x30] sm:$0xff]
    %v3780 = vld [vmem:[#allocation8 + $0x38] sm:$0xff]
    %v3781 = vld [vmem:[#allocation8 + $0x40] sm:$0xff]
    %v3782 = vld [vmem:[#allocation8 + $0x48] sm:$0xff]
    %v3783 = vld [vmem:[#allocation8 + $0x50] sm:$0xff]
    %v3784 = vld [vmem:[#allocation8 + $0x58] sm:$0xff]
    %v3785 = vld [vmem:[#allocation8 + $0x60] sm:$0xff]
    %v3786 = vld [vmem:[#allocation8 + $0x68] sm:$0xff]
    %v3787 = vld [vmem:[#allocation8 + $0x70] sm:$0xff]
    %v3788 = vld [vmem:[#allocation8 + $0x78] sm:$0xff]
    %v3789 = vld [vmem:[#allocation8 + $0x80] sm:$0xff]
    %v3790 = vld [vmem:[#allocation8 + $0x88] sm:$0xff]
    %v3791 = vld [vmem:[#allocation8 + $0x90] sm:$0xff]
    %v3792 = vld [vmem:[#allocation8 + $0x98] sm:$0xff]
    %v3793 = vld [vmem:[#allocation8 + $0xa0] sm:$0xff]
    %v3794 = vld [vmem:[#allocation8 + $0xa8] sm:$0xff]
    %v3795 = vld [vmem:[#allocation8 + $0xb0] sm:$0xff]
    %v3796 = vld [vmem:[#allocation8 + $0xb8] sm:$0xff]
    %v3797 = vld [vmem:[#allocation8 + $0xc0] sm:$0xff]
    %v3798 = vld [vmem:[#allocation8 + $0xc8] sm:$0xff]
    %v3799 = vld [vmem:[#allocation8 + $0xd0] sm:$0xff]
    %v3800 = vld [vmem:[#allocation8 + $0xd8] sm:$0xff]
    %v3801 = vld [vmem:[#allocation8 + $0xe0] sm:$0xff]
    %v3802 = vld [vmem:[#allocation8 + $0xe8] sm:$0xff]
    %v3803 = vld [vmem:[#allocation8 + $0xf0] sm:$0xff]
    %v3804 = vld [vmem:[#allocation8 + $0xf8] sm:$0xff]
    %v3805 = vld [vmem:[#allocation8 + $0x100] sm:$0xff]
    %v3806 = vld [vmem:[#allocation8 + $0x108] sm:$0xff]
    %v3807 = vld [vmem:[#allocation8 + $0x110] sm:$0xff]
    %v3808 = vld [vmem:[#allocation8 + $0x118] sm:$0xff]
    %v3809 = vld [vmem:[#allocation8 + $0x120] sm:$0xff]
    %v3810 = vld [vmem:[#allocation8 + $0x128] sm:$0xff]
    %v3811 = vld [vmem:[#allocation8 + $0x130] sm:$0xff]
    %v3812 = vld [vmem:[#allocation8 + $0x138] sm:$0xff]
    %v3813 = vld [vmem:[#allocation8 + $0x140] sm:$0xff]
    %v3814 = vld [vmem:[#allocation8 + $0x148] sm:$0xff]
    %v3815 = vld [vmem:[#allocation8 + $0x150] sm:$0xff]
    %v3816 = vld [vmem:[#allocation8 + $0x158] sm:$0xff]
    %v3817 = vld [vmem:[#allocation8 + $0x160] sm:$0xff]
    %v3818 = vld [vmem:[#allocation8 + $0x168] sm:$0xff]
    %v3819 = vld [vmem:[#allocation8 + $0x170] sm:$0xff]
    %v3820 = vld [vmem:[#allocation8 + $0x178] sm:$0xff]
    %v3821 = vld [vmem:[#allocation8 + $0x180] sm:$0xff]
    %v3822 = vld [vmem:[#allocation8 + $0x188] sm:$0xff]
    %v3823 = vld [vmem:[#allocation8 + $0x190] sm:$0xff]
    %v3824 = vld [vmem:[#allocation8 + $0x198] sm:$0xff]
    %v3825 = vld [vmem:[#allocation8 + $0x1a0] sm:$0xff]
    %v3826 = vld [vmem:[#allocation8 + $0x1a8] sm:$0xff]
    %v3827 = vld [vmem:[#allocation8 + $0x1b0] sm:$0xff]
    %v3828 = vld [vmem:[#allocation8 + $0x1b8] sm:$0xff]
    %v3829 = vld [vmem:[#allocation8 + $0x1c0] sm:$0xff]
    %v3830 = vld [vmem:[#allocation8 + $0x1c8] sm:$0xff]
    %v3831 = vld [vmem:[#allocation8 + $0x1d0] sm:$0xff]
    %v3832 = vld [vmem:[#allocation8 + $0x1d8] sm:$0xff]
    %v3833 = vld [vmem:[#allocation8 + $0x1e0] sm:$0xff]
    %v3834 = vld [vmem:[#allocation8 + $0x1e8] sm:$0xff]
    %v3835 = vld [vmem:[#allocation8 + $0x1f0] sm:$0xff]
    %v3836 = vld [vmem:[#allocation8 + $0x1f8] sm:$0xff]
    %v3837 = vld [vmem:[#allocation8 + $0x200] sm:$0xff]
    %v3838 = vld [vmem:[#allocation8 + $0x208] sm:$0xff]
    %v3839 = vld [vmem:[#allocation8 + $0x210] sm:$0xff]
    %v3840 = vld [vmem:[#allocation8 + $0x218] sm:$0xff]
    %v3841 = vld [vmem:[#allocation8 + $0x220] sm:$0xff]
    %v3842 = vld [vmem:[#allocation8 + $0x228] sm:$0xff]
    %v3843 = vld [vmem:[#allocation8 + $0x230] sm:$0xff]
    %v3844 = vld [vmem:[#allocation8 + $0x238] sm:$0xff]
    %v3845 = vld [vmem:[#allocation8 + $0x240] sm:$0xff]
    %v3846 = vld [vmem:[#allocation8 + $0x248] sm:$0xff]
    %v3847 = vld [vmem:[#allocation8 + $0x250] sm:$0xff]
    %v3848 = vld [vmem:[#allocation8 + $0x258] sm:$0xff]
    %v3849 = vld [vmem:[#allocation8 + $0x260] sm:$0xff]
    %v3850 = vld [vmem:[#allocation8 + $0x268] sm:$0xff]
    %v3851 = vld [vmem:[#allocation8 + $0x270] sm:$0xff]
    %v3852 = vld [vmem:[#allocation8 + $0x278] sm:$0xff]
    %v3853 = vld [vmem:[#allocation8 + $0x280] sm:$0xff]
    %v3854 = vld [vmem:[#allocation8 + $0x288] sm:$0xff]
    %v3855 = vld [vmem:[#allocation8 + $0x290] sm:$0xff]
    %v3856 = vld [vmem:[#allocation8 + $0x298] sm:$0xff]
    %v3857 = vld [vmem:[#allocation8 + $0x2a0] sm:$0xff]
    %v3858 = vld [vmem:[#allocation8 + $0x2a8] sm:$0xff]
    %v3859 = vld [vmem:[#allocation8 + $0x2b0] sm:$0xff]
    %v3860 = vld [vmem:[#allocation8 + $0x2b8] sm:$0xff]
    %v3861 = vld [vmem:[#allocation8 + $0x2c0] sm:$0xff]
    %v3862 = vld [vmem:[#allocation8 + $0x2c8] sm:$0xff]
    %v3863 = vld [vmem:[#allocation8 + $0x2d0] sm:$0xff]
    %v3864 = vld [vmem:[#allocation8 + $0x2d8] sm:$0xff]
    %v3865 = vld [vmem:[#allocation8 + $0x2e0] sm:$0xff]
    %v3866 = vld [vmem:[#allocation8 + $0x2e8] sm:$0xff]
    %v3867 = vld [vmem:[#allocation8 + $0x2f0] sm:$0xff]
    %v3868 = vld [vmem:[#allocation8 + $0x2f8] sm:$0xff]
    %v3869 = vld [vmem:[#allocation8 + $0x300] sm:$0xff]
    %v3870 = vld [vmem:[#allocation8 + $0x308] sm:$0xff]
    %v3871 = vld [vmem:[#allocation8 + $0x310] sm:$0xff]
    %v3872 = vld [vmem:[#allocation8 + $0x318] sm:$0xff]
    %v3873 = vld [vmem:[#allocation8 + $0x320] sm:$0xff]
    %v3874 = vld [vmem:[#allocation8 + $0x328] sm:$0xff]
    %v3875 = vld [vmem:[#allocation8 + $0x330] sm:$0xff]
    %v3876 = vld [vmem:[#allocation8 + $0x338] sm:$0xff]
    %v3877 = vld [vmem:[#allocation8 + $0x340] sm:$0xff]
    %v3878 = vld [vmem:[#allocation8 + $0x348] sm:$0xff]
    %v3879 = vld [vmem:[#allocation8 + $0x350] sm:$0xff]
    %v3880 = vld [vmem:[#allocation8 + $0x358] sm:$0xff]
    %v3881 = vld [vmem:[#allocation8 + $0x360] sm:$0xff]
    %v3882 = vld [vmem:[#allocation8 + $0x368] sm:$0xff]
    %v3883 = vld [vmem:[#allocation8 + $0x370] sm:$0xff]
    %v3884 = vld [vmem:[#allocation8 + $0x378] sm:$0xff]
    %v3885 = vld [vmem:[#allocation8 + $0x380] sm:$0xff]
    %v3886 = vld [vmem:[#allocation8 + $0x388] sm:$0xff]
    %v3887 = vld [vmem:[#allocation8 + $0x390] sm:$0xff]
    %v3888 = vld [vmem:[#allocation8 + $0x398] sm:$0xff]
    %v3889 = vld [vmem:[#allocation8 + $0x3a0] sm:$0xff]
    %v3890 = vld [vmem:[#allocation8 + $0x3a8] sm:$0xff]
    %v3891 = vld [vmem:[#allocation8 + $0x3b0] sm:$0xff]
    %v3892 = vld [vmem:[#allocation8 + $0x3b8] sm:$0xff]
    %v3893 = vld [vmem:[#allocation8 + $0x3c0] sm:$0xff]
    %v3894 = vld [vmem:[#allocation8 + $0x3c8] sm:$0xff]
    %v3895 = vld [vmem:[#allocation8 + $0x3d0] sm:$0xff]
    %v3896 = vld [vmem:[#allocation8 + $0x3d8] sm:$0xff]
    %v3897 = vld [vmem:[#allocation8 + $0x3e0] sm:$0xff]
    %v3898 = vld [vmem:[#allocation8 + $0x3e8] sm:$0xff]
    %v3899 = vld [vmem:[#allocation8 + $0x3f0] sm:$0xff]
    %v3900 = vld [vmem:[#allocation8 + $0x3f8] sm:$0xff]
    %v3901 = vld [vmem:[#allocation8 + $0x400] sm:$0xff]
    %v3902 = vld [vmem:[#allocation8 + $0x408] sm:$0xff]
    %v3903 = vld [vmem:[#allocation8 + $0x410] sm:$0xff]
    %v3904 = vld [vmem:[#allocation8 + $0x418] sm:$0xff]
    %v3905 = vld [vmem:[#allocation8 + $0x420] sm:$0xff]
    %v3906 = vld [vmem:[#allocation8 + $0x428] sm:$0xff]
    %v3907 = vld [vmem:[#allocation8 + $0x430] sm:$0xff]
    %v3908 = vld [vmem:[#allocation8 + $0x438] sm:$0xff]
    %v3909 = vld [vmem:[#allocation8 + $0x440] sm:$0xff]
    %v3910 = vld [vmem:[#allocation8 + $0x448] sm:$0xff]
    %v3911 = vld [vmem:[#allocation8 + $0x450] sm:$0xff]
    %v3912 = vld [vmem:[#allocation8 + $0x458] sm:$0xff]
    %v3913 = vld [vmem:[#allocation8 + $0x460] sm:$0xff]
    %v3914 = vld [vmem:[#allocation8 + $0x468] sm:$0xff]
    %v3915 = vld [vmem:[#allocation8 + $0x470] sm:$0xff]
    %v3916 = vld [vmem:[#allocation8 + $0x478] sm:$0xff]
    %v3917 = vld [vmem:[#allocation8 + $0x480] sm:$0xff]
    %v3918 = vld [vmem:[#allocation8 + $0x488] sm:$0xff]
    %v3919 = vld [vmem:[#allocation8 + $0x490] sm:$0xff]
    %v3920 = vld [vmem:[#allocation8 + $0x498] sm:$0xff]
    %v3921 = vld [vmem:[#allocation8 + $0x4a0] sm:$0xff]
    %v3922 = vld [vmem:[#allocation8 + $0x4a8] sm:$0xff]
    %v3923 = vld [vmem:[#allocation8 + $0x4b0] sm:$0xff]
    %v3924 = vld [vmem:[#allocation8 + $0x4b8] sm:$0xff]
    %v3925 = vld [vmem:[#allocation8 + $0x4c0] sm:$0xff]
    %v3926 = vld [vmem:[#allocation8 + $0x4c8] sm:$0xff]
    %v3927 = vld [vmem:[#allocation8 + $0x4d0] sm:$0xff]
    %v3928 = vld [vmem:[#allocation8 + $0x4d8] sm:$0xff]
    %v3929 = vld [vmem:[#allocation8 + $0x4e0] sm:$0xff]
    %v3930 = vld [vmem:[#allocation8 + $0x4e8] sm:$0xff]
    %v3931 = vld [vmem:[#allocation8 + $0x4f0] sm:$0xff]
    %v3932 = vld [vmem:[#allocation8 + $0x4f8] sm:$0xff]
    %v3933 = vld [vmem:[#allocation8 + $0x500] sm:$0xff]
    %v3934 = vld [vmem:[#allocation8 + $0x508] sm:$0xff]
    %v3935 = vld [vmem:[#allocation8 + $0x510] sm:$0xff]
    %v3936 = vld [vmem:[#allocation8 + $0x518] sm:$0xff]
    %v3937 = vld [vmem:[#allocation8 + $0x520] sm:$0xff]
    %v3938 = vld [vmem:[#allocation8 + $0x528] sm:$0xff]
    %v3939 = vld [vmem:[#allocation8 + $0x530] sm:$0xff]
    %v3940 = vld [vmem:[#allocation8 + $0x538] sm:$0xff]
    %v3941 = vld [vmem:[#allocation8 + $0x540] sm:$0xff]
    %v3942 = vld [vmem:[#allocation8 + $0x548] sm:$0xff]
    %v3943 = vld [vmem:[#allocation8 + $0x550] sm:$0xff]
    %v3944 = vld [vmem:[#allocation8 + $0x558] sm:$0xff]
    %v3945 = vld [vmem:[#allocation8 + $0x560] sm:$0xff]
    %v3946 = vld [vmem:[#allocation8 + $0x568] sm:$0xff]
    %v3947 = vld [vmem:[#allocation8 + $0x570] sm:$0xff]
    %v3948 = vld [vmem:[#allocation8 + $0x578] sm:$0xff]
    %v3949 = vld [vmem:[#allocation8 + $0x580] sm:$0xff]
    %v3950 = vld [vmem:[#allocation8 + $0x588] sm:$0xff]
    %v3951 = vld [vmem:[#allocation8 + $0x590] sm:$0xff]
    %v3952 = vld [vmem:[#allocation8 + $0x598] sm:$0xff]
    %v3953 = vld [vmem:[#allocation8 + $0x5a0] sm:$0xff]
    %v3954 = vld [vmem:[#allocation8 + $0x5a8] sm:$0xff]
    %v3955 = vld [vmem:[#allocation8 + $0x5b0] sm:$0xff]
    %v3956 = vld [vmem:[#allocation8 + $0x5b8] sm:$0xff]
    %v3957 = vld [vmem:[#allocation8 + $0x5c0] sm:$0xff]
    %v3958 = vld [vmem:[#allocation8 + $0x5c8] sm:$0xff]
    %v3959 = vld [vmem:[#allocation8 + $0x5d0] sm:$0xff]
    %v3960 = vld [vmem:[#allocation8 + $0x5d8] sm:$0xff]
    %v3961 = vld [vmem:[#allocation8 + $0x5e0] sm:$0xff]
    %v3962 = vld [vmem:[#allocation8 + $0x5e8] sm:$0xff]
    %v3963 = vld [vmem:[#allocation8 + $0x5f0] sm:$0xff]
    %v3964 = vld [vmem:[#allocation8 + $0x5f8] sm:$0xff]
    %v3965 = vld [vmem:[#allocation8 + $0x600] sm:$0xff]
    %v3966 = vld [vmem:[#allocation8 + $0x608] sm:$0xff]
    %v3967 = vld [vmem:[#allocation8 + $0x610] sm:$0xff]
    %v3968 = vld [vmem:[#allocation8 + $0x618] sm:$0xff]
    %v3969 = vld [vmem:[#allocation8 + $0x620] sm:$0xff]
    %v3970 = vld [vmem:[#allocation8 + $0x628] sm:$0xff]
    %v3971 = vld [vmem:[#allocation8 + $0x630] sm:$0xff]
    %v3972 = vld [vmem:[#allocation8 + $0x638] sm:$0xff]
    %v3973 = vld [vmem:[#allocation8 + $0x640] sm:$0xff]
    %v3974 = vld [vmem:[#allocation8 + $0x648] sm:$0xff]
    %v3975 = vld [vmem:[#allocation8 + $0x650] sm:$0xff]
    %v3976 = vld [vmem:[#allocation8 + $0x658] sm:$0xff]
    %v3977 = vld [vmem:[#allocation8 + $0x660] sm:$0xff]
    %v3978 = vld [vmem:[#allocation8 + $0x668] sm:$0xff]
    %v3979 = vld [vmem:[#allocation8 + $0x670] sm:$0xff]
    %v3980 = vld [vmem:[#allocation8 + $0x678] sm:$0xff]
    %v3981 = vld [vmem:[#allocation8 + $0x680] sm:$0xff]
    %v3982 = vld [vmem:[#allocation8 + $0x688] sm:$0xff]
    %v3983 = vld [vmem:[#allocation8 + $0x690] sm:$0xff]
    %v3984 = vld [vmem:[#allocation8 + $0x698] sm:$0xff]
    %v3985 = vld [vmem:[#allocation8 + $0x6a0] sm:$0xff]
    %v3986 = vld [vmem:[#allocation8 + $0x6a8] sm:$0xff]
    %v3987 = vld [vmem:[#allocation8 + $0x6b0] sm:$0xff]
    %v3988 = vld [vmem:[#allocation8 + $0x6b8] sm:$0xff]
    %v3989 = vld [vmem:[#allocation8 + $0x6c0] sm:$0xff]
    %v3990 = vld [vmem:[#allocation8 + $0x6c8] sm:$0xff]
    %v3991 = vld [vmem:[#allocation8 + $0x6d0] sm:$0xff]
    %v3992 = vld [vmem:[#allocation8 + $0x6d8] sm:$0xff]
    %v3993 = vld [vmem:[#allocation8 + $0x6e0] sm:$0xff]
    %v3994 = vld [vmem:[#allocation8 + $0x6e8] sm:$0xff]
    %v3995 = vld [vmem:[#allocation8 + $0x6f0] sm:$0xff]
    %v3996 = vld [vmem:[#allocation8 + $0x6f8] sm:$0xff]
    %v3997 = vld [vmem:[#allocation8 + $0x700] sm:$0xff]
    %v3998 = vld [vmem:[#allocation8 + $0x708] sm:$0xff]
    %v3999 = vld [vmem:[#allocation8 + $0x710] sm:$0xff]
    %v4000 = vld [vmem:[#allocation8 + $0x718] sm:$0xff]
    %v4001 = vld [vmem:[#allocation8 + $0x720] sm:$0xff]
    %v4002 = vld [vmem:[#allocation8 + $0x728] sm:$0xff]
    %v4003 = vld [vmem:[#allocation8 + $0x730] sm:$0xff]
    %v4004 = vld [vmem:[#allocation8 + $0x738] sm:$0xff]
    %v4005 = vld [vmem:[#allocation8 + $0x740] sm:$0xff]
    %v4006 = vld [vmem:[#allocation8 + $0x748] sm:$0xff]
    %v4007 = vld [vmem:[#allocation8 + $0x750] sm:$0xff]
    %v4008 = vld [vmem:[#allocation8 + $0x758] sm:$0xff]
    %v4009 = vld [vmem:[#allocation8 + $0x760] sm:$0xff]
    %v4010 = vld [vmem:[#allocation8 + $0x768] sm:$0xff]
    %v4011 = vld [vmem:[#allocation8 + $0x770] sm:$0xff]
    %v4012 = vld [vmem:[#allocation8 + $0x778] sm:$0xff]
    %v4013 = vld [vmem:[#allocation8 + $0x780] sm:$0xff]
    %v4014 = vld [vmem:[#allocation8 + $0x788] sm:$0xff]
    %v4015 = vld [vmem:[#allocation8 + $0x790] sm:$0xff]
    %v4016 = vld [vmem:[#allocation8 + $0x798] sm:$0xff]
    %v4017 = vld [vmem:[#allocation8 + $0x7a0] sm:$0xff]
    %v4018 = vld [vmem:[#allocation8 + $0x7a8] sm:$0xff]
    %v4019 = vld [vmem:[#allocation8 + $0x7b0] sm:$0xff]
    %v4020 = vld [vmem:[#allocation8 + $0x7b8] sm:$0xff]
    %v4021 = vld [vmem:[#allocation8 + $0x7c0] sm:$0xff]
    %v4022 = vld [vmem:[#allocation8 + $0x7c8] sm:$0xff]
    %v4023 = vld [vmem:[#allocation8 + $0x7d0] sm:$0xff]
    %v4024 = vld [vmem:[#allocation8 + $0x7d8] sm:$0xff]
    %v4025 = vld [vmem:[#allocation8 + $0x7e0] sm:$0xff]
    %v4026 = vld [vmem:[#allocation8 + $0x7e8] sm:$0xff]
    %v4027 = vld [vmem:[#allocation8 + $0x7f0] sm:$0xff]
    %v4028 = vld [vmem:[#allocation8 + $0x7f8] sm:$0xff]
    %v4029 = vld [vmem:[#allocation10] sm:$0xf]
    %v4030 = vld [vmem:[#allocation11] sm:$0xf]
    %v4287 = vunpack.c.l.b16 %v3773
    %v4288 = vunpack.c.h.b16 %v3773
    %v4289 = vunpack.c.l.b16 %v3774
    %v4290 = vunpack.c.h.b16 %v3774
    %v4291 = vunpack.c.l.b16 %v3775
    %v4292 = vunpack.c.h.b16 %v3775
    %v4293 = vunpack.c.l.b16 %v3776
    %v4294 = vunpack.c.h.b16 %v3776
    %v4295 = vunpack.c.l.b16 %v3777
    %v4296 = vunpack.c.h.b16 %v3777
    %v4297 = vunpack.c.l.b16 %v3778
    %v4298 = vunpack.c.h.b16 %v3778
    %v4299 = vunpack.c.l.b16 %v3779
    %v4300 = vunpack.c.h.b16 %v3779
    %v4301 = vunpack.c.l.b16 %v3780
    %v4302 = vunpack.c.h.b16 %v3780
    %v4303 = vunpack.c.l.b16 %v3781
    %v4304 = vunpack.c.h.b16 %v3781
    %v4305 = vunpack.c.l.b16 %v3782
    %v4306 = vunpack.c.h.b16 %v3782
    %v4307 = vunpack.c.l.b16 %v3783
    %v4308 = vunpack.c.h.b16 %v3783
    %v4309 = vunpack.c.l.b16 %v3784
    %v4310 = vunpack.c.h.b16 %v3784
    %v4311 = vunpack.c.l.b16 %v3785
    %v4312 = vunpack.c.h.b16 %v3785
    %v4313 = vunpack.c.l.b16 %v3786
    %v4314 = vunpack.c.h.b16 %v3786
    %v4315 = vunpack.c.l.b16 %v3787
    %v4316 = vunpack.c.h.b16 %v3787
    %v4317 = vunpack.c.l.b16 %v3788
    %v4318 = vunpack.c.h.b16 %v3788
    %v4319 = vunpack.c.l.b16 %v3789
    %v4320 = vunpack.c.h.b16 %v3789
    %v4321 = vunpack.c.l.b16 %v3790
    %v4322 = vunpack.c.h.b16 %v3790
    %v4323 = vunpack.c.l.b16 %v3791
    %v4324 = vunpack.c.h.b16 %v3791
    %v4325 = vunpack.c.l.b16 %v3792
    %v4326 = vunpack.c.h.b16 %v3792
    %v4327 = vunpack.c.l.b16 %v3793
    %v4328 = vunpack.c.h.b16 %v3793
    %v4329 = vunpack.c.l.b16 %v3794
    %v4330 = vunpack.c.h.b16 %v3794
    %v4331 = vunpack.c.l.b16 %v3795
    %v4332 = vunpack.c.h.b16 %v3795
    %v4333 = vunpack.c.l.b16 %v3796
    %v4334 = vunpack.c.h.b16 %v3796
    %v4335 = vunpack.c.l.b16 %v3797
    %v4336 = vunpack.c.h.b16 %v3797
    %v4337 = vunpack.c.l.b16 %v3798
    %v4338 = vunpack.c.h.b16 %v3798
    %v4339 = vunpack.c.l.b16 %v3799
    %v4340 = vunpack.c.h.b16 %v3799
    %v4341 = vunpack.c.l.b16 %v3800
    %v4342 = vunpack.c.h.b16 %v3800
    %v4343 = vunpack.c.l.b16 %v3801
    %v4344 = vunpack.c.h.b16 %v3801
    %v4345 = vunpack.c.l.b16 %v3802
    %v4346 = vunpack.c.h.b16 %v3802
    %v4347 = vunpack.c.l.b16 %v3803
    %v4348 = vunpack.c.h.b16 %v3803
    %v4349 = vunpack.c.l.b16 %v3804
    %v4350 = vunpack.c.h.b16 %v3804
    %v4351 = vunpack.c.l.b16 %v3805
    %v4352 = vunpack.c.h.b16 %v3805
    %v4353 = vunpack.c.l.b16 %v3806
    %v4354 = vunpack.c.h.b16 %v3806
    %v4355 = vunpack.c.l.b16 %v3807
    %v4356 = vunpack.c.h.b16 %v3807
    %v4357 = vunpack.c.l.b16 %v3808
    %v4358 = vunpack.c.h.b16 %v3808
    %v4359 = vunpack.c.l.b16 %v3809
    %v4360 = vunpack.c.h.b16 %v3809
    %v4361 = vunpack.c.l.b16 %v3810
    %v4362 = vunpack.c.h.b16 %v3810
    %v4363 = vunpack.c.l.b16 %v3811
    %v4364 = vunpack.c.h.b16 %v3811
    %v4365 = vunpack.c.l.b16 %v3812
    %v4366 = vunpack.c.h.b16 %v3812
    %v4367 = vunpack.c.l.b16 %v3813
    %v4368 = vunpack.c.h.b16 %v3813
    %v4369 = vunpack.c.l.b16 %v3814
    %v4370 = vunpack.c.h.b16 %v3814
    %v4371 = vunpack.c.l.b16 %v3815
    %v4372 = vunpack.c.h.b16 %v3815
    %v4373 = vunpack.c.l.b16 %v3816
    %v4374 = vunpack.c.h.b16 %v3816
    %v4375 = vunpack.c.l.b16 %v3817
    %v4376 = vunpack.c.h.b16 %v3817
    %v4377 = vunpack.c.l.b16 %v3818
    %v4378 = vunpack.c.h.b16 %v3818
    %v4379 = vunpack.c.l.b16 %v3819
    %v4380 = vunpack.c.h.b16 %v3819
    %v4381 = vunpack.c.l.b16 %v3820
    %v4382 = vunpack.c.h.b16 %v3820
    %v4383 = vunpack.c.l.b16 %v3821
    %v4384 = vunpack.c.h.b16 %v3821
    %v4385 = vunpack.c.l.b16 %v3822
    %v4386 = vunpack.c.h.b16 %v3822
    %v4387 = vunpack.c.l.b16 %v3823
    %v4388 = vunpack.c.h.b16 %v3823
    %v4389 = vunpack.c.l.b16 %v3824
    %v4390 = vunpack.c.h.b16 %v3824
    %v4391 = vunpack.c.l.b16 %v3825
    %v4392 = vunpack.c.h.b16 %v3825
    %v4393 = vunpack.c.l.b16 %v3826
    %v4394 = vunpack.c.h.b16 %v3826
    %v4395 = vunpack.c.l.b16 %v3827
    %v4396 = vunpack.c.h.b16 %v3827
    %v4397 = vunpack.c.l.b16 %v3828
    %v4398 = vunpack.c.h.b16 %v3828
    %v4399 = vunpack.c.l.b16 %v3829
    %v4400 = vunpack.c.h.b16 %v3829
    %v4401 = vunpack.c.l.b16 %v3830
    %v4402 = vunpack.c.h.b16 %v3830
    %v4403 = vunpack.c.l.b16 %v3831
    %v4404 = vunpack.c.h.b16 %v3831
    %v4405 = vunpack.c.l.b16 %v3832
    %v4406 = vunpack.c.h.b16 %v3832
    %v4407 = vunpack.c.l.b16 %v3833
    %v4408 = vunpack.c.h.b16 %v3833
    %v4409 = vunpack.c.l.b16 %v3834
    %v4410 = vunpack.c.h.b16 %v3834
    %v4411 = vunpack.c.l.b16 %v3835
    %v4412 = vunpack.c.h.b16 %v3835
    %v4413 = vunpack.c.l.b16 %v3836
    %v4414 = vunpack.c.h.b16 %v3836
    %v4415 = vunpack.c.l.b16 %v3837
    %v4416 = vunpack.c.h.b16 %v3837
    %v4417 = vunpack.c.l.b16 %v3838
    %v4418 = vunpack.c.h.b16 %v3838
    %v4419 = vunpack.c.l.b16 %v3839
    %v4420 = vunpack.c.h.b16 %v3839
    %v4421 = vunpack.c.l.b16 %v3840
    %v4422 = vunpack.c.h.b16 %v3840
    %v4423 = vunpack.c.l.b16 %v3841
    %v4424 = vunpack.c.h.b16 %v3841
    %v4425 = vunpack.c.l.b16 %v3842
    %v4426 = vunpack.c.h.b16 %v3842
    %v4427 = vunpack.c.l.b16 %v3843
    %v4428 = vunpack.c.h.b16 %v3843
    %v4429 = vunpack.c.l.b16 %v3844
    %v4430 = vunpack.c.h.b16 %v3844
    %v4431 = vunpack.c.l.b16 %v3845
    %v4432 = vunpack.c.h.b16 %v3845
    %v4433 = vunpack.c.l.b16 %v3846
    %v4434 = vunpack.c.h.b16 %v3846
    %v4435 = vunpack.c.l.b16 %v3847
    %v4436 = vunpack.c.h.b16 %v3847
    %v4437 = vunpack.c.l.b16 %v3848
    %v4438 = vunpack.c.h.b16 %v3848
    %v4439 = vunpack.c.l.b16 %v3849
    %v4440 = vunpack.c.h.b16 %v3849
    %v4441 = vunpack.c.l.b16 %v3850
    %v4442 = vunpack.c.h.b16 %v3850
    %v4443 = vunpack.c.l.b16 %v3851
    %v4444 = vunpack.c.h.b16 %v3851
    %v4445 = vunpack.c.l.b16 %v3852
    %v4446 = vunpack.c.h.b16 %v3852
    %v4447 = vunpack.c.l.b16 %v3853
    %v4448 = vunpack.c.h.b16 %v3853
    %v4449 = vunpack.c.l.b16 %v3854
    %v4450 = vunpack.c.h.b16 %v3854
    %v4451 = vunpack.c.l.b16 %v3855
    %v4452 = vunpack.c.h.b16 %v3855
    %v4453 = vunpack.c.l.b16 %v3856
    %v4454 = vunpack.c.h.b16 %v3856
    %v4455 = vunpack.c.l.b16 %v3857
    %v4456 = vunpack.c.h.b16 %v3857
    %v4457 = vunpack.c.l.b16 %v3858
    %v4458 = vunpack.c.h.b16 %v3858
    %v4459 = vunpack.c.l.b16 %v3859
    %v4460 = vunpack.c.h.b16 %v3859
    %v4461 = vunpack.c.l.b16 %v3860
    %v4462 = vunpack.c.h.b16 %v3860
    %v4463 = vunpack.c.l.b16 %v3861
    %v4464 = vunpack.c.h.b16 %v3861
    %v4465 = vunpack.c.l.b16 %v3862
    %v4466 = vunpack.c.h.b16 %v3862
    %v4467 = vunpack.c.l.b16 %v3863
    %v4468 = vunpack.c.h.b16 %v3863
    %v4469 = vunpack.c.l.b16 %v3864
    %v4470 = vunpack.c.h.b16 %v3864
    %v4471 = vunpack.c.l.b16 %v3865
    %v4472 = vunpack.c.h.b16 %v3865
    %v4473 = vunpack.c.l.b16 %v3866
    %v4474 = vunpack.c.h.b16 %v3866
    %v4475 = vunpack.c.l.b16 %v3867
    %v4476 = vunpack.c.h.b16 %v3867
    %v4477 = vunpack.c.l.b16 %v3868
    %v4478 = vunpack.c.h.b16 %v3868
    %v4479 = vunpack.c.l.b16 %v3869
    %v4480 = vunpack.c.h.b16 %v3869
    %v4481 = vunpack.c.l.b16 %v3870
    %v4482 = vunpack.c.h.b16 %v3870
    %v4483 = vunpack.c.l.b16 %v3871
    %v4484 = vunpack.c.h.b16 %v3871
    %v4485 = vunpack.c.l.b16 %v3872
    %v4486 = vunpack.c.h.b16 %v3872
    %v4487 = vunpack.c.l.b16 %v3873
    %v4488 = vunpack.c.h.b16 %v3873
    %v4489 = vunpack.c.l.b16 %v3874
    %v4490 = vunpack.c.h.b16 %v3874
    %v4491 = vunpack.c.l.b16 %v3875
    %v4492 = vunpack.c.h.b16 %v3875
    %v4493 = vunpack.c.l.b16 %v3876
    %v4494 = vunpack.c.h.b16 %v3876
    %v4495 = vunpack.c.l.b16 %v3877
    %v4496 = vunpack.c.h.b16 %v3877
    %v4497 = vunpack.c.l.b16 %v3878
    %v4498 = vunpack.c.h.b16 %v3878
    %v4499 = vunpack.c.l.b16 %v3879
    %v4500 = vunpack.c.h.b16 %v3879
    %v4501 = vunpack.c.l.b16 %v3880
    %v4502 = vunpack.c.h.b16 %v3880
    %v4503 = vunpack.c.l.b16 %v3881
    %v4504 = vunpack.c.h.b16 %v3881
    %v4505 = vunpack.c.l.b16 %v3882
    %v4506 = vunpack.c.h.b16 %v3882
    %v4507 = vunpack.c.l.b16 %v3883
    %v4508 = vunpack.c.h.b16 %v3883
    %v4509 = vunpack.c.l.b16 %v3884
    %v4510 = vunpack.c.h.b16 %v3884
    %v4511 = vunpack.c.l.b16 %v3885
    %v4512 = vunpack.c.h.b16 %v3885
    %v4513 = vunpack.c.l.b16 %v3886
    %v4514 = vunpack.c.h.b16 %v3886
    %v4515 = vunpack.c.l.b16 %v3887
    %v4516 = vunpack.c.h.b16 %v3887
    %v4517 = vunpack.c.l.b16 %v3888
    %v4518 = vunpack.c.h.b16 %v3888
    %v4519 = vunpack.c.l.b16 %v3889
    %v4520 = vunpack.c.h.b16 %v3889
    %v4521 = vunpack.c.l.b16 %v3890
    %v4522 = vunpack.c.h.b16 %v3890
    %v4523 = vunpack.c.l.b16 %v3891
    %v4524 = vunpack.c.h.b16 %v3891
    %v4525 = vunpack.c.l.b16 %v3892
    %v4526 = vunpack.c.h.b16 %v3892
    %v4527 = vunpack.c.l.b16 %v3893
    %v4528 = vunpack.c.h.b16 %v3893
    %v4529 = vunpack.c.l.b16 %v3894
    %v4530 = vunpack.c.h.b16 %v3894
    %v4531 = vunpack.c.l.b16 %v3895
    %v4532 = vunpack.c.h.b16 %v3895
    %v4533 = vunpack.c.l.b16 %v3896
    %v4534 = vunpack.c.h.b16 %v3896
    %v4535 = vunpack.c.l.b16 %v3897
    %v4536 = vunpack.c.h.b16 %v3897
    %v4537 = vunpack.c.l.b16 %v3898
    %v4538 = vunpack.c.h.b16 %v3898
    %v4539 = vunpack.c.l.b16 %v3899
    %v4540 = vunpack.c.h.b16 %v3899
    %v4541 = vunpack.c.l.b16 %v3900
    %v4542 = vunpack.c.h.b16 %v3900
    %v4543 = vunpack.c.l.b16 %v3901
    %v4544 = vunpack.c.h.b16 %v3901
    %v4545 = vunpack.c.l.b16 %v3902
    %v4546 = vunpack.c.h.b16 %v3902
    %v4547 = vunpack.c.l.b16 %v3903
    %v4548 = vunpack.c.h.b16 %v3903
    %v4549 = vunpack.c.l.b16 %v3904
    %v4550 = vunpack.c.h.b16 %v3904
    %v4551 = vunpack.c.l.b16 %v3905
    %v4552 = vunpack.c.h.b16 %v3905
    %v4553 = vunpack.c.l.b16 %v3906
    %v4554 = vunpack.c.h.b16 %v3906
    %v4555 = vunpack.c.l.b16 %v3907
    %v4556 = vunpack.c.h.b16 %v3907
    %v4557 = vunpack.c.l.b16 %v3908
    %v4558 = vunpack.c.h.b16 %v3908
    %v4559 = vunpack.c.l.b16 %v3909
    %v4560 = vunpack.c.h.b16 %v3909
    %v4561 = vunpack.c.l.b16 %v3910
    %v4562 = vunpack.c.h.b16 %v3910
    %v4563 = vunpack.c.l.b16 %v3911
    %v4564 = vunpack.c.h.b16 %v3911
    %v4565 = vunpack.c.l.b16 %v3912
    %v4566 = vunpack.c.h.b16 %v3912
    %v4567 = vunpack.c.l.b16 %v3913
    %v4568 = vunpack.c.h.b16 %v3913
    %v4569 = vunpack.c.l.b16 %v3914
    %v4570 = vunpack.c.h.b16 %v3914
    %v4571 = vunpack.c.l.b16 %v3915
    %v4572 = vunpack.c.h.b16 %v3915
    %v4573 = vunpack.c.l.b16 %v3916
    %v4574 = vunpack.c.h.b16 %v3916
    %v4575 = vunpack.c.l.b16 %v3917
    %v4576 = vunpack.c.h.b16 %v3917
    %v4577 = vunpack.c.l.b16 %v3918
    %v4578 = vunpack.c.h.b16 %v3918
    %v4579 = vunpack.c.l.b16 %v3919
    %v4580 = vunpack.c.h.b16 %v3919
    %v4581 = vunpack.c.l.b16 %v3920
    %v4582 = vunpack.c.h.b16 %v3920
    %v4583 = vunpack.c.l.b16 %v3921
    %v4584 = vunpack.c.h.b16 %v3921
    %v4585 = vunpack.c.l.b16 %v3922
    %v4586 = vunpack.c.h.b16 %v3922
    %v4587 = vunpack.c.l.b16 %v3923
    %v4588 = vunpack.c.h.b16 %v3923
    %v4589 = vunpack.c.l.b16 %v3924
    %v4590 = vunpack.c.h.b16 %v3924
    %v4591 = vunpack.c.l.b16 %v3925
    %v4592 = vunpack.c.h.b16 %v3925
    %v4593 = vunpack.c.l.b16 %v3926
    %v4594 = vunpack.c.h.b16 %v3926
    %v4595 = vunpack.c.l.b16 %v3927
    %v4596 = vunpack.c.h.b16 %v3927
    %v4597 = vunpack.c.l.b16 %v3928
    %v4598 = vunpack.c.h.b16 %v3928
    %v4599 = vunpack.c.l.b16 %v3929
    %v4600 = vunpack.c.h.b16 %v3929
    %v4601 = vunpack.c.l.b16 %v3930
    %v4602 = vunpack.c.h.b16 %v3930
    %v4603 = vunpack.c.l.b16 %v3931
    %v4604 = vunpack.c.h.b16 %v3931
    %v4605 = vunpack.c.l.b16 %v3932
    %v4606 = vunpack.c.h.b16 %v3932
    %v4607 = vunpack.c.l.b16 %v3933
    %v4608 = vunpack.c.h.b16 %v3933
    %v4609 = vunpack.c.l.b16 %v3934
    %v4610 = vunpack.c.h.b16 %v3934
    %v4611 = vunpack.c.l.b16 %v3935
    %v4612 = vunpack.c.h.b16 %v3935
    %v4613 = vunpack.c.l.b16 %v3936
    %v4614 = vunpack.c.h.b16 %v3936
    %v4615 = vunpack.c.l.b16 %v3937
    %v4616 = vunpack.c.h.b16 %v3937
    %v4617 = vunpack.c.l.b16 %v3938
    %v4618 = vunpack.c.h.b16 %v3938
    %v4619 = vunpack.c.l.b16 %v3939
    %v4620 = vunpack.c.h.b16 %v3939
    %v4621 = vunpack.c.l.b16 %v3940
    %v4622 = vunpack.c.h.b16 %v3940
    %v4623 = vunpack.c.l.b16 %v3941
    %v4624 = vunpack.c.h.b16 %v3941
    %v4625 = vunpack.c.l.b16 %v3942
    %v4626 = vunpack.c.h.b16 %v3942
    %v4627 = vunpack.c.l.b16 %v3943
    %v4628 = vunpack.c.h.b16 %v3943
    %v4629 = vunpack.c.l.b16 %v3944
    %v4630 = vunpack.c.h.b16 %v3944
    %v4631 = vunpack.c.l.b16 %v3945
    %v4632 = vunpack.c.h.b16 %v3945
    %v4633 = vunpack.c.l.b16 %v3946
    %v4634 = vunpack.c.h.b16 %v3946
    %v4635 = vunpack.c.l.b16 %v3947
    %v4636 = vunpack.c.h.b16 %v3947
    %v4637 = vunpack.c.l.b16 %v3948
    %v4638 = vunpack.c.h.b16 %v3948
    %v4639 = vunpack.c.l.b16 %v3949
    %v4640 = vunpack.c.h.b16 %v3949
    %v4641 = vunpack.c.l.b16 %v3950
    %v4642 = vunpack.c.h.b16 %v3950
    %v4643 = vunpack.c.l.b16 %v3951
    %v4644 = vunpack.c.h.b16 %v3951
    %v4645 = vunpack.c.l.b16 %v3952
    %v4646 = vunpack.c.h.b16 %v3952
    %v4647 = vunpack.c.l.b16 %v3953
    %v4648 = vunpack.c.h.b16 %v3953
    %v4649 = vunpack.c.l.b16 %v3954
    %v4650 = vunpack.c.h.b16 %v3954
    %v4651 = vunpack.c.l.b16 %v3955
    %v4652 = vunpack.c.h.b16 %v3955
    %v4653 = vunpack.c.l.b16 %v3956
    %v4654 = vunpack.c.h.b16 %v3956
    %v4655 = vunpack.c.l.b16 %v3957
    %v4656 = vunpack.c.h.b16 %v3957
    %v4657 = vunpack.c.l.b16 %v3958
    %v4658 = vunpack.c.h.b16 %v3958
    %v4659 = vunpack.c.l.b16 %v3959
    %v4660 = vunpack.c.h.b16 %v3959
    %v4661 = vunpack.c.l.b16 %v3960
    %v4662 = vunpack.c.h.b16 %v3960
    %v4663 = vunpack.c.l.b16 %v3961
    %v4664 = vunpack.c.h.b16 %v3961
    %v4665 = vunpack.c.l.b16 %v3962
    %v4666 = vunpack.c.h.b16 %v3962
    %v4667 = vunpack.c.l.b16 %v3963
    %v4668 = vunpack.c.h.b16 %v3963
    %v4669 = vunpack.c.l.b16 %v3964
    %v4670 = vunpack.c.h.b16 %v3964
    %v4671 = vunpack.c.l.b16 %v3965
    %v4672 = vunpack.c.h.b16 %v3965
    %v4673 = vunpack.c.l.b16 %v3966
    %v4674 = vunpack.c.h.b16 %v3966
    %v4675 = vunpack.c.l.b16 %v3967
    %v4676 = vunpack.c.h.b16 %v3967
    %v4677 = vunpack.c.l.b16 %v3968
    %v4678 = vunpack.c.h.b16 %v3968
    %v4679 = vunpack.c.l.b16 %v3969
    %v4680 = vunpack.c.h.b16 %v3969
    %v4681 = vunpack.c.l.b16 %v3970
    %v4682 = vunpack.c.h.b16 %v3970
    %v4683 = vunpack.c.l.b16 %v3971
    %v4684 = vunpack.c.h.b16 %v3971
    %v4685 = vunpack.c.l.b16 %v3972
    %v4686 = vunpack.c.h.b16 %v3972
    %v4687 = vunpack.c.l.b16 %v3973
    %v4688 = vunpack.c.h.b16 %v3973
    %v4689 = vunpack.c.l.b16 %v3974
    %v4690 = vunpack.c.h.b16 %v3974
    %v4691 = vunpack.c.l.b16 %v3975
    %v4692 = vunpack.c.h.b16 %v3975
    %v4693 = vunpack.c.l.b16 %v3976
    %v4694 = vunpack.c.h.b16 %v3976
    %v4695 = vunpack.c.l.b16 %v3977
    %v4696 = vunpack.c.h.b16 %v3977
    %v4697 = vunpack.c.l.b16 %v3978
    %v4698 = vunpack.c.h.b16 %v3978
    %v4699 = vunpack.c.l.b16 %v3979
    %v4700 = vunpack.c.h.b16 %v3979
    %v4701 = vunpack.c.l.b16 %v3980
    %v4702 = vunpack.c.h.b16 %v3980
    %v4703 = vunpack.c.l.b16 %v3981
    %v4704 = vunpack.c.h.b16 %v3981
    %v4705 = vunpack.c.l.b16 %v3982
    %v4706 = vunpack.c.h.b16 %v3982
    %v4707 = vunpack.c.l.b16 %v3983
    %v4708 = vunpack.c.h.b16 %v3983
    %v4709 = vunpack.c.l.b16 %v3984
    %v4710 = vunpack.c.h.b16 %v3984
    %v4711 = vunpack.c.l.b16 %v3985
    %v4712 = vunpack.c.h.b16 %v3985
    %v4713 = vunpack.c.l.b16 %v3986
    %v4714 = vunpack.c.h.b16 %v3986
    %v4715 = vunpack.c.l.b16 %v3987
    %v4716 = vunpack.c.h.b16 %v3987
    %v4717 = vunpack.c.l.b16 %v3988
    %v4718 = vunpack.c.h.b16 %v3988
    %v4719 = vunpack.c.l.b16 %v3989
    %v4720 = vunpack.c.h.b16 %v3989
    %v4721 = vunpack.c.l.b16 %v3990
    %v4722 = vunpack.c.h.b16 %v3990
    %v4723 = vunpack.c.l.b16 %v3991
    %v4724 = vunpack.c.h.b16 %v3991
    %v4725 = vunpack.c.l.b16 %v3992
    %v4726 = vunpack.c.h.b16 %v3992
    %v4727 = vunpack.c.l.b16 %v3993
    %v4728 = vunpack.c.h.b16 %v3993
    %v4729 = vunpack.c.l.b16 %v3994
    %v4730 = vunpack.c.h.b16 %v3994
    %v4731 = vunpack.c.l.b16 %v3995
    %v4732 = vunpack.c.h.b16 %v3995
    %v4733 = vunpack.c.l.b16 %v3996
    %v4734 = vunpack.c.h.b16 %v3996
    %v4735 = vunpack.c.l.b16 %v3997
    %v4736 = vunpack.c.h.b16 %v3997
    %v4737 = vunpack.c.l.b16 %v3998
    %v4738 = vunpack.c.h.b16 %v3998
    %v4739 = vunpack.c.l.b16 %v3999
    %v4740 = vunpack.c.h.b16 %v3999
    %v4741 = vunpack.c.l.b16 %v4000
    %v4742 = vunpack.c.h.b16 %v4000
    %v4743 = vunpack.c.l.b16 %v4001
    %v4744 = vunpack.c.h.b16 %v4001
    %v4745 = vunpack.c.l.b16 %v4002
    %v4746 = vunpack.c.h.b16 %v4002
    %v4747 = vunpack.c.l.b16 %v4003
    %v4748 = vunpack.c.h.b16 %v4003
    %v4749 = vunpack.c.l.b16 %v4004
    %v4750 = vunpack.c.h.b16 %v4004
    %v4751 = vunpack.c.l.b16 %v4005
    %v4752 = vunpack.c.h.b16 %v4005
    %v4753 = vunpack.c.l.b16 %v4006
    %v4754 = vunpack.c.h.b16 %v4006
    %v4755 = vunpack.c.l.b16 %v4007
    %v4756 = vunpack.c.h.b16 %v4007
    %v4757 = vunpack.c.l.b16 %v4008
    %v4758 = vunpack.c.h.b16 %v4008
    %v4759 = vunpack.c.l.b16 %v4009
    %v4760 = vunpack.c.h.b16 %v4009
    %v4761 = vunpack.c.l.b16 %v4010
    %v4762 = vunpack.c.h.b16 %v4010
    %v4763 = vunpack.c.l.b16 %v4011
    %v4764 = vunpack.c.h.b16 %v4011
    %v4765 = vunpack.c.l.b16 %v4012
    %v4766 = vunpack.c.h.b16 %v4012
    %v4767 = vunpack.c.l.b16 %v4013
    %v4768 = vunpack.c.h.b16 %v4013
    %v4769 = vunpack.c.l.b16 %v4014
    %v4770 = vunpack.c.h.b16 %v4014
    %v4771 = vunpack.c.l.b16 %v4015
    %v4772 = vunpack.c.h.b16 %v4015
    %v4773 = vunpack.c.l.b16 %v4016
    %v4774 = vunpack.c.h.b16 %v4016
    %v4775 = vunpack.c.l.b16 %v4017
    %v4776 = vunpack.c.h.b16 %v4017
    %v4777 = vunpack.c.l.b16 %v4018
    %v4778 = vunpack.c.h.b16 %v4018
    %v4779 = vunpack.c.l.b16 %v4019
    %v4780 = vunpack.c.h.b16 %v4019
    %v4781 = vunpack.c.l.b16 %v4020
    %v4782 = vunpack.c.h.b16 %v4020
    %v4783 = vunpack.c.l.b16 %v4021
    %v4784 = vunpack.c.h.b16 %v4021
    %v4785 = vunpack.c.l.b16 %v4022
    %v4786 = vunpack.c.h.b16 %v4022
    %v4787 = vunpack.c.l.b16 %v4023
    %v4788 = vunpack.c.h.b16 %v4023
    %v4789 = vunpack.c.l.b16 %v4024
    %v4790 = vunpack.c.h.b16 %v4024
    %v4791 = vunpack.c.l.b16 %v4025
    %v4792 = vunpack.c.h.b16 %v4025
    %v4793 = vunpack.c.l.b16 %v4026
    %v4794 = vunpack.c.h.b16 %v4026
    %v4795 = vunpack.c.l.b16 %v4027
    %v4796 = vunpack.c.h.b16 %v4027
    %v4797 = vunpack.c.l.b16 %v4028
    %v4798 = vunpack.c.h.b16 %v4028
    %v4799 = vpack.c.b16 %v4291, %v4287
    %v4800 = vpack.c.b16 %v4292, %v4288
    %v4801 = vpack.c.b16 %v4293, %v4289
    %v4802 = vpack.c.b16 %v4294, %v4290
    %v4803 = vpack.c.b16 %v4299, %v4295
    %v4804 = vpack.c.b16 %v4300, %v4296
    %v4805 = vpack.c.b16 %v4301, %v4297
    %v4806 = vpack.c.b16 %v4302, %v4298
    %v4807 = vpack.c.b16 %v4307, %v4303
    %v4808 = vpack.c.b16 %v4308, %v4304
    %v4809 = vpack.c.b16 %v4309, %v4305
    %v4810 = vpack.c.b16 %v4310, %v4306
    %v4811 = vpack.c.b16 %v4315, %v4311
    %v4812 = vpack.c.b16 %v4316, %v4312
    %v4813 = vpack.c.b16 %v4317, %v4313
    %v4814 = vpack.c.b16 %v4318, %v4314
    %v4815 = vpack.c.b16 %v4323, %v4319
    %v4816 = vpack.c.b16 %v4324, %v4320
    %v4817 = vpack.c.b16 %v4325, %v4321
    %v4818 = vpack.c.b16 %v4326, %v4322
    %v4819 = vpack.c.b16 %v4331, %v4327
    %v4820 = vpack.c.b16 %v4332, %v4328
    %v4821 = vpack.c.b16 %v4333, %v4329
    %v4822 = vpack.c.b16 %v4334, %v4330
    %v4823 = vpack.c.b16 %v4339, %v4335
    %v4824 = vpack.c.b16 %v4340, %v4336
    %v4825 = vpack.c.b16 %v4341, %v4337
    %v4826 = vpack.c.b16 %v4342, %v4338
    %v4827 = vpack.c.b16 %v4347, %v4343
    %v4828 = vpack.c.b16 %v4348, %v4344
    %v4829 = vpack.c.b16 %v4349, %v4345
    %v4830 = vpack.c.b16 %v4350, %v4346
    %v4831 = vpack.c.b16 %v4355, %v4351
    %v4832 = vpack.c.b16 %v4356, %v4352
    %v4833 = vpack.c.b16 %v4357, %v4353
    %v4834 = vpack.c.b16 %v4358, %v4354
    %v4835 = vpack.c.b16 %v4363, %v4359
    %v4836 = vpack.c.b16 %v4364, %v4360
    %v4837 = vpack.c.b16 %v4365, %v4361
    %v4838 = vpack.c.b16 %v4366, %v4362
    %v4839 = vpack.c.b16 %v4371, %v4367
    %v4840 = vpack.c.b16 %v4372, %v4368
    %v4841 = vpack.c.b16 %v4373, %v4369
    %v4842 = vpack.c.b16 %v4374, %v4370
    %v4843 = vpack.c.b16 %v4379, %v4375
    %v4844 = vpack.c.b16 %v4380, %v4376
    %v4845 = vpack.c.b16 %v4381, %v4377
    %v4846 = vpack.c.b16 %v4382, %v4378
    %v4847 = vpack.c.b16 %v4387, %v4383
    %v4848 = vpack.c.b16 %v4388, %v4384
    %v4849 = vpack.c.b16 %v4389, %v4385
    %v4850 = vpack.c.b16 %v4390, %v4386
    %v4851 = vpack.c.b16 %v4395, %v4391
    %v4852 = vpack.c.b16 %v4396, %v4392
    %v4853 = vpack.c.b16 %v4397, %v4393
    %v4854 = vpack.c.b16 %v4398, %v4394
    %v4855 = vpack.c.b16 %v4403, %v4399
    %v4856 = vpack.c.b16 %v4404, %v4400
    %v4857 = vpack.c.b16 %v4405, %v4401
    %v4858 = vpack.c.b16 %v4406, %v4402
    %v4859 = vpack.c.b16 %v4411, %v4407
    %v4860 = vpack.c.b16 %v4412, %v4408
    %v4861 = vpack.c.b16 %v4413, %v4409
    %v4862 = vpack.c.b16 %v4414, %v4410
    %v4863 = vpack.c.b16 %v4419, %v4415
    %v4864 = vpack.c.b16 %v4420, %v4416
    %v4865 = vpack.c.b16 %v4421, %v4417
    %v4866 = vpack.c.b16 %v4422, %v4418
    %v4867 = vpack.c.b16 %v4427, %v4423
    %v4868 = vpack.c.b16 %v4428, %v4424
    %v4869 = vpack.c.b16 %v4429, %v4425
    %v4870 = vpack.c.b16 %v4430, %v4426
    %v4871 = vpack.c.b16 %v4435, %v4431
    %v4872 = vpack.c.b16 %v4436, %v4432
    %v4873 = vpack.c.b16 %v4437, %v4433
    %v4874 = vpack.c.b16 %v4438, %v4434
    %v4875 = vpack.c.b16 %v4443, %v4439
    %v4876 = vpack.c.b16 %v4444, %v4440
    %v4877 = vpack.c.b16 %v4445, %v4441
    %v4878 = vpack.c.b16 %v4446, %v4442
    %v4879 = vpack.c.b16 %v4451, %v4447
    %v4880 = vpack.c.b16 %v4452, %v4448
    %v4881 = vpack.c.b16 %v4453, %v4449
    %v4882 = vpack.c.b16 %v4454, %v4450
    %v4883 = vpack.c.b16 %v4459, %v4455
    %v4884 = vpack.c.b16 %v4460, %v4456
    %v4885 = vpack.c.b16 %v4461, %v4457
    %v4886 = vpack.c.b16 %v4462, %v4458
    %v4887 = vpack.c.b16 %v4467, %v4463
    %v4888 = vpack.c.b16 %v4468, %v4464
    %v4889 = vpack.c.b16 %v4469, %v4465
    %v4890 = vpack.c.b16 %v4470, %v4466
    %v4891 = vpack.c.b16 %v4475, %v4471
    %v4892 = vpack.c.b16 %v4476, %v4472
    %v4893 = vpack.c.b16 %v4477, %v4473
    %v4894 = vpack.c.b16 %v4478, %v4474
    %v4895 = vpack.c.b16 %v4483, %v4479
    %v4896 = vpack.c.b16 %v4484, %v4480
    %v4897 = vpack.c.b16 %v4485, %v4481
    %v4898 = vpack.c.b16 %v4486, %v4482
    %v4899 = vpack.c.b16 %v4491, %v4487
    %v4900 = vpack.c.b16 %v4492, %v4488
    %v4901 = vpack.c.b16 %v4493, %v4489
    %v4902 = vpack.c.b16 %v4494, %v4490
    %v4903 = vpack.c.b16 %v4499, %v4495
    %v4904 = vpack.c.b16 %v4500, %v4496
    %v4905 = vpack.c.b16 %v4501, %v4497
    %v4906 = vpack.c.b16 %v4502, %v4498
    %v4907 = vpack.c.b16 %v4507, %v4503
    %v4908 = vpack.c.b16 %v4508, %v4504
    %v4909 = vpack.c.b16 %v4509, %v4505
    %v4910 = vpack.c.b16 %v4510, %v4506
    %v4911 = vpack.c.b16 %v4515, %v4511
    %v4912 = vpack.c.b16 %v4516, %v4512
    %v4913 = vpack.c.b16 %v4517, %v4513
    %v4914 = vpack.c.b16 %v4518, %v4514
    %v4915 = vpack.c.b16 %v4523, %v4519
    %v4916 = vpack.c.b16 %v4524, %v4520
    %v4917 = vpack.c.b16 %v4525, %v4521
    %v4918 = vpack.c.b16 %v4526, %v4522
    %v4919 = vpack.c.b16 %v4531, %v4527
    %v4920 = vpack.c.b16 %v4532, %v4528
    %v4921 = vpack.c.b16 %v4533, %v4529
    %v4922 = vpack.c.b16 %v4534, %v4530
    %v4923 = vpack.c.b16 %v4539, %v4535
    %v4924 = vpack.c.b16 %v4540, %v4536
    %v4925 = vpack.c.b16 %v4541, %v4537
    %v4926 = vpack.c.b16 %v4542, %v4538
    %v4927 = vpack.c.b16 %v4547, %v4543
    %v4928 = vpack.c.b16 %v4548, %v4544
    %v4929 = vpack.c.b16 %v4549, %v4545
    %v4930 = vpack.c.b16 %v4550, %v4546
    %v4931 = vpack.c.b16 %v4555, %v4551
    %v4932 = vpack.c.b16 %v4556, %v4552
    %v4933 = vpack.c.b16 %v4557, %v4553
    %v4934 = vpack.c.b16 %v4558, %v4554
    %v4935 = vpack.c.b16 %v4563, %v4559
    %v4936 = vpack.c.b16 %v4564, %v4560
    %v4937 = vpack.c.b16 %v4565, %v4561
    %v4938 = vpack.c.b16 %v4566, %v4562
    %v4939 = vpack.c.b16 %v4571, %v4567
    %v4940 = vpack.c.b16 %v4572, %v4568
    %v4941 = vpack.c.b16 %v4573, %v4569
    %v4942 = vpack.c.b16 %v4574, %v4570
    %v4943 = vpack.c.b16 %v4579, %v4575
    %v4944 = vpack.c.b16 %v4580, %v4576
    %v4945 = vpack.c.b16 %v4581, %v4577
    %v4946 = vpack.c.b16 %v4582, %v4578
    %v4947 = vpack.c.b16 %v4587, %v4583
    %v4948 = vpack.c.b16 %v4588, %v4584
    %v4949 = vpack.c.b16 %v4589, %v4585
    %v4950 = vpack.c.b16 %v4590, %v4586
    %v4951 = vpack.c.b16 %v4595, %v4591
    %v4952 = vpack.c.b16 %v4596, %v4592
    %v4953 = vpack.c.b16 %v4597, %v4593
    %v4954 = vpack.c.b16 %v4598, %v4594
    %v4955 = vpack.c.b16 %v4603, %v4599
    %v4956 = vpack.c.b16 %v4604, %v4600
    %v4957 = vpack.c.b16 %v4605, %v4601
    %v4958 = vpack.c.b16 %v4606, %v4602
    %v4959 = vpack.c.b16 %v4611, %v4607
    %v4960 = vpack.c.b16 %v4612, %v4608
    %v4961 = vpack.c.b16 %v4613, %v4609
    %v4962 = vpack.c.b16 %v4614, %v4610
    %v4963 = vpack.c.b16 %v4619, %v4615
    %v4964 = vpack.c.b16 %v4620, %v4616
    %v4965 = vpack.c.b16 %v4621, %v4617
    %v4966 = vpack.c.b16 %v4622, %v4618
    %v4967 = vpack.c.b16 %v4627, %v4623
    %v4968 = vpack.c.b16 %v4628, %v4624
    %v4969 = vpack.c.b16 %v4629, %v4625
    %v4970 = vpack.c.b16 %v4630, %v4626
    %v4971 = vpack.c.b16 %v4635, %v4631
    %v4972 = vpack.c.b16 %v4636, %v4632
    %v4973 = vpack.c.b16 %v4637, %v4633
    %v4974 = vpack.c.b16 %v4638, %v4634
    %v4975 = vpack.c.b16 %v4643, %v4639
    %v4976 = vpack.c.b16 %v4644, %v4640
    %v4977 = vpack.c.b16 %v4645, %v4641
    %v4978 = vpack.c.b16 %v4646, %v4642
    %v4979 = vpack.c.b16 %v4651, %v4647
    %v4980 = vpack.c.b16 %v4652, %v4648
    %v4981 = vpack.c.b16 %v4653, %v4649
    %v4982 = vpack.c.b16 %v4654, %v4650
    %v4983 = vpack.c.b16 %v4659, %v4655
    %v4984 = vpack.c.b16 %v4660, %v4656
    %v4985 = vpack.c.b16 %v4661, %v4657
    %v4986 = vpack.c.b16 %v4662, %v4658
    %v4987 = vpack.c.b16 %v4667, %v4663
    %v4988 = vpack.c.b16 %v4668, %v4664
    %v4989 = vpack.c.b16 %v4669, %v4665
    %v4990 = vpack.c.b16 %v4670, %v4666
    %v4991 = vpack.c.b16 %v4675, %v4671
    %v4992 = vpack.c.b16 %v4676, %v4672
    %v4993 = vpack.c.b16 %v4677, %v4673
    %v4994 = vpack.c.b16 %v4678, %v4674
    %v4995 = vpack.c.b16 %v4683, %v4679
    %v4996 = vpack.c.b16 %v4684, %v4680
    %v4997 = vpack.c.b16 %v4685, %v4681
    %v4998 = vpack.c.b16 %v4686, %v4682
    %v4999 = vpack.c.b16 %v4691, %v4687
    %v5000 = vpack.c.b16 %v4692, %v4688
    %v5001 = vpack.c.b16 %v4693, %v4689
    %v5002 = vpack.c.b16 %v4694, %v4690
    %v5003 = vpack.c.b16 %v4699, %v4695
    %v5004 = vpack.c.b16 %v4700, %v4696
    %v5005 = vpack.c.b16 %v4701, %v4697
    %v5006 = vpack.c.b16 %v4702, %v4698
    %v5007 = vpack.c.b16 %v4707, %v4703
    %v5008 = vpack.c.b16 %v4708, %v4704
    %v5009 = vpack.c.b16 %v4709, %v4705
    %v5010 = vpack.c.b16 %v4710, %v4706
    %v5011 = vpack.c.b16 %v4715, %v4711
    %v5012 = vpack.c.b16 %v4716, %v4712
    %v5013 = vpack.c.b16 %v4717, %v4713
    %v5014 = vpack.c.b16 %v4718, %v4714
    %v5015 = vpack.c.b16 %v4723, %v4719
    %v5016 = vpack.c.b16 %v4724, %v4720
    %v5017 = vpack.c.b16 %v4725, %v4721
    %v5018 = vpack.c.b16 %v4726, %v4722
    %v5019 = vpack.c.b16 %v4731, %v4727
    %v5020 = vpack.c.b16 %v4732, %v4728
    %v5021 = vpack.c.b16 %v4733, %v4729
    %v5022 = vpack.c.b16 %v4734, %v4730
    %v5023 = vpack.c.b16 %v4739, %v4735
    %v5024 = vpack.c.b16 %v4740, %v4736
    %v5025 = vpack.c.b16 %v4741, %v4737
    %v5026 = vpack.c.b16 %v4742, %v4738
    %v5027 = vpack.c.b16 %v4747, %v4743
    %v5028 = vpack.c.b16 %v4748, %v4744
    %v5029 = vpack.c.b16 %v4749, %v4745
    %v5030 = vpack.c.b16 %v4750, %v4746
    %v5031 = vpack.c.b16 %v4755, %v4751
    %v5032 = vpack.c.b16 %v4756, %v4752
    %v5033 = vpack.c.b16 %v4757, %v4753
    %v5034 = vpack.c.b16 %v4758, %v4754
    %v5035 = vpack.c.b16 %v4763, %v4759
    %v5036 = vpack.c.b16 %v4764, %v4760
    %v5037 = vpack.c.b16 %v4765, %v4761
    %v5038 = vpack.c.b16 %v4766, %v4762
    %v5039 = vpack.c.b16 %v4771, %v4767
    %v5040 = vpack.c.b16 %v4772, %v4768
    %v5041 = vpack.c.b16 %v4773, %v4769
    %v5042 = vpack.c.b16 %v4774, %v4770
    %v5043 = vpack.c.b16 %v4779, %v4775
    %v5044 = vpack.c.b16 %v4780, %v4776
    %v5045 = vpack.c.b16 %v4781, %v4777
    %v5046 = vpack.c.b16 %v4782, %v4778
    %v5047 = vpack.c.b16 %v4787, %v4783
    %v5048 = vpack.c.b16 %v4788, %v4784
    %v5049 = vpack.c.b16 %v4789, %v4785
    %v5050 = vpack.c.b16 %v4790, %v4786
    %v5051 = vpack.c.b16 %v4795, %v4791
    %v5052 = vpack.c.b16 %v4796, %v4792
    %v5053 = vpack.c.b16 %v4797, %v4793
    %v5054 = vpack.c.b16 %v4798, %v4794
    %5311 = vmatprep.subr.bf16.mxu0 %v4800
    %5312 = vmatpush1.bf16.msra.mxu0 %v4799
    %5313 = vmatprep.subr.bf16.mxu0 %v4804
    %5314 = vmatpush1.bf16.msra.mxu0 %v4803
    %5315 = vmatprep.subr.bf16.mxu0 %v4808
    %5316 = vmatpush1.bf16.msra.mxu0 %v4807
    %5317 = vmatprep.subr.bf16.mxu0 %v4812
    %5318 = vmatpush1.bf16.msra.mxu0 %v4811
    %5319 = vmatprep.subr.bf16.mxu0 %v4816
    %5320 = vmatpush1.bf16.msra.mxu0 %v4815
    %5321 = vmatprep.subr.bf16.mxu0 %v4820
    %5322 = vmatpush1.bf16.msra.mxu0 %v4819
    %5323 = vmatprep.subr.bf16.mxu0 %v4824
    %5324 = vmatpush1.bf16.msra.mxu0 %v4823
    %5325 = vmatprep.subr.bf16.mxu0 %v4828
    %5326 = vmatpush1.bf16.msra.mxu0 %v4827
    %5327 = vmatprep.subr.bf16.mxu0 %v4832
    %5328 = vmatpush1.bf16.msra.mxu0 %v4831
    %5329 = vmatprep.subr.bf16.mxu0 %v4836
    %5330 = vmatpush1.bf16.msra.mxu0 %v4835
    %5331 = vmatprep.subr.bf16.mxu0 %v4840
    %5332 = vmatpush1.bf16.msra.mxu0 %v4839
    %5333 = vmatprep.subr.bf16.mxu0 %v4844
    %5334 = vmatpush1.bf16.msra.mxu0 %v4843
    %5335 = vmatprep.subr.bf16.mxu0 %v4848
    %5336 = vmatpush1.bf16.msra.mxu0 %v4847
    %5337 = vmatprep.subr.bf16.mxu0 %v4852
    %5338 = vmatpush1.bf16.msra.mxu0 %v4851
    %5339 = vmatprep.subr.bf16.mxu0 %v4856
    %5340 = vmatpush1.bf16.msra.mxu0 %v4855
    %5341 = vmatprep.subr.bf16.mxu0 %v4860
    %5342 = vmatpush1.bf16.msra.mxu0 %v4859
    %5343 = vmatprep.mubr.bf16.mxu0 %v3766
    %5344 = vmatmul.mubr.bf16.gmra.mrb[0].mxu0 %v3765
    %v5345 = vpop.f32.mrb[0].mxu0
    %v5346 = vadd.f32 0.0, %v5345
    %v5347 = vpop.f32.mrb[0].mxu0
    %v5348 = vadd.f32 0.0, %v5347
    %v5349 = vpop.f32.mrb[0].mxu0
    %v5350 = vpop.f32.mrb[0].mxu0
    %5351 = vdwg.mxu0
    %5352 = vmatprep.subr.bf16.mxu0 %v4864
    %5353 = vmatpush1.bf16.msra.mxu0 %v4863
    %5354 = vmatprep.subr.bf16.mxu0 %v4868
    %5355 = vmatpush1.bf16.msra.mxu0 %v4867
    %5356 = vmatprep.subr.bf16.mxu0 %v4872
    %5357 = vmatpush1.bf16.msra.mxu0 %v4871
    %5358 = vmatprep.subr.bf16.mxu0 %v4876
    %5359 = vmatpush1.bf16.msra.mxu0 %v4875
    %5360 = vmatprep.subr.bf16.mxu0 %v4880
    %5361 = vmatpush1.bf16.msra.mxu0 %v4879
    %5362 = vmatprep.subr.bf16.mxu0 %v4884
    %5363 = vmatpush1.bf16.msra.mxu0 %v4883
    %5364 = vmatprep.subr.bf16.mxu0 %v4888
    %5365 = vmatpush1.bf16.msra.mxu0 %v4887
    %5366 = vmatprep.subr.bf16.mxu0 %v4892
    %5367 = vmatpush1.bf16.msra.mxu0 %v4891
    %5368 = vmatprep.subr.bf16.mxu0 %v4896
    %5369 = vmatpush1.bf16.msra.mxu0 %v4895
    %5370 = vmatprep.subr.bf16.mxu0 %v4900
    %5371 = vmatpush1.bf16.msra.mxu0 %v4899
    %5372 = vmatprep.subr.bf16.mxu0 %v4904
    %5373 = vmatpush1.bf16.msra.mxu0 %v4903
    %5374 = vmatprep.subr.bf16.mxu0 %v4908
    %5375 = vmatpush1.bf16.msra.mxu0 %v4907
    %5376 = vmatprep.subr.bf16.mxu0 %v4912
    %5377 = vmatpush1.bf16.msra.mxu0 %v4911
    %5378 = vmatprep.subr.bf16.mxu0 %v4916
    %5379 = vmatpush1.bf16.msra.mxu0 %v4915
    %5380 = vmatprep.subr.bf16.mxu0 %v4920
    %5381 = vmatpush1.bf16.msra.mxu0 %v4919
    %5382 = vmatprep.subr.bf16.mxu0 %v4924
    %5383 = vmatpush1.bf16.msra.mxu0 %v4923
    %5384 = vmatprep.mubr.bf16.mxu0 %v3768
    %5385 = vmatmul.mubr.bf16.gmra.mrb[0].mxu0 %v3767
    %v5386 = vpop.f32.mrb[0].mxu0
    %v5387 = vadd.f32 %v5346, %v5386
    %v5388 = vpop.f32.mrb[0].mxu0
    %v5389 = vadd.f32 %v5348, %v5388
    %v5390 = vpop.f32.mrb[0].mxu0
    %v5391 = vpop.f32.mrb[0].mxu0
    %5392 = vdwg.mxu0
    %5393 = vmatprep.subr.bf16.mxu0 %v4928
    %5394 = vmatpush1.bf16.msra.mxu0 %v4927
    %5395 = vmatprep.subr.bf16.mxu0 %v4932
    %5396 = vmatpush1.bf16.msra.mxu0 %v4931
    %5397 = vmatprep.subr.bf16.mxu0 %v4936
    %5398 = vmatpush1.bf16.msra.mxu0 %v4935
    %5399 = vmatprep.subr.bf16.mxu0 %v4940
    %5400 = vmatpush1.bf16.msra.mxu0 %v4939
    %5401 = vmatprep.subr.bf16.mxu0 %v4944
    %5402 = vmatpush1.bf16.msra.mxu0 %v4943
    %5403 = vmatprep.subr.bf16.mxu0 %v4948
    %5404 = vmatpush1.bf16.msra.mxu0 %v4947
    %5405 = vmatprep.subr.bf16.mxu0 %v4952
    %5406 = vmatpush1.bf16.msra.mxu0 %v4951
    %5407 = vmatprep.subr.bf16.mxu0 %v4956
    %5408 = vmatpush1.bf16.msra.mxu0 %v4955
    %5409 = vmatprep.subr.bf16.mxu0 %v4960
    %5410 = vmatpush1.bf16.msra.mxu0 %v4959
    %5411 = vmatprep.subr.bf16.mxu0 %v4964
    %5412 = vmatpush1.bf16.msra.mxu0 %v4963
    %5413 = vmatprep.subr.bf16.mxu0 %v4968
    %5414 = vmatpush1.bf16.msra.mxu0 %v4967
    %5415 = vmatprep.subr.bf16.mxu0 %v4972
    %5416 = vmatpush1.bf16.msra.mxu0 %v4971
    %5417 = vmatprep.subr.bf16.mxu0 %v4976
    %5418 = vmatpush1.bf16.msra.mxu0 %v4975
    %5419 = vmatprep.subr.bf16.mxu0 %v4980
    %5420 = vmatpush1.bf16.msra.mxu0 %v4979
    %5421 = vmatprep.subr.bf16.mxu0 %v4984
    %5422 = vmatpush1.bf16.msra.mxu0 %v4983
    %5423 = vmatprep.subr.bf16.mxu0 %v4988
    %5424 = vmatpush1.bf16.msra.mxu0 %v4987
    %5425 = vmatprep.mubr.bf16.mxu0 %v3770
    %5426 = vmatmul.mubr.bf16.gmra.mrb[0].mxu0 %v3769
    %v5427 = vpop.f32.mrb[0].mxu0
    %v5428 = vadd.f32 %v5387, %v5427
    %v5429 = vpop.f32.mrb[0].mxu0
    %v5430 = vadd.f32 %v5389, %v5429
    %v5431 = vpop.f32.mrb[0].mxu0
    %v5432 = vpop.f32.mrb[0].mxu0
    %5433 = vdwg.mxu0
    %5434 = vmatprep.subr.bf16.mxu0 %v4992
    %5435 = vmatpush1.bf16.msra.mxu0 %v4991
    %5436 = vmatprep.subr.bf16.mxu0 %v4996
    %5437 = vmatpush1.bf16.msra.mxu0 %v4995
    %5438 = vmatprep.subr.bf16.mxu0 %v5000
    %5439 = vmatpush1.bf16.msra.mxu0 %v4999
    %5440 = vmatprep.subr.bf16.mxu0 %v5004
    %5441 = vmatpush1.bf16.msra.mxu0 %v5003
    %5442 = vmatprep.subr.bf16.mxu0 %v5008
    %5443 = vmatpush1.bf16.msra.mxu0 %v5007
    %5444 = vmatprep.subr.bf16.mxu0 %v5012
    %5445 = vmatpush1.bf16.msra.mxu0 %v5011
    %5446 = vmatprep.subr.bf16.mxu0 %v5016
    %5447 = vmatpush1.bf16.msra.mxu0 %v5015
    %5448 = vmatprep.subr.bf16.mxu0 %v5020
    %5449 = vmatpush1.bf16.msra.mxu0 %v5019
    %5450 = vmatprep.subr.bf16.mxu0 %v5024
    %5451 = vmatpush1.bf16.msra.mxu0 %v5023
    %5452 = vmatprep.subr.bf16.mxu0 %v5028
    %5453 = vmatpush1.bf16.msra.mxu0 %v5027
    %5454 = vmatprep.subr.bf16.mxu0 %v5032
    %5455 = vmatpush1.bf16.msra.mxu0 %v5031
    %5456 = vmatprep.subr.bf16.mxu0 %v5036
    %5457 = vmatpush1.bf16.msra.mxu0 %v5035
    %5458 = vmatprep.subr.bf16.mxu0 %v5040
    %5459 = vmatpush1.bf16.msra.mxu0 %v5039
    %5460 = vmatprep.subr.bf16.mxu0 %v5044
    %5461 = vmatpush1.bf16.msra.mxu0 %v5043
    %5462 = vmatprep.subr.bf16.mxu0 %v5048
    %5463 = vmatpush1.bf16.msra.mxu0 %v5047
    %5464 = vmatprep.subr.bf16.mxu0 %v5052
    %5465 = vmatpush1.bf16.msra.mxu0 %v5051
    %5466 = vmatprep.mubr.bf16.mxu0 %v3772
    %5467 = vmatmul.mubr.bf16.gmra.mrb[0].mxu0 %v3771
    %v5468 = vpop.f32.mrb[0].mxu0
    %v5469 = vadd.f32 %v5428, %v5468
    %v5470 = vpop.f32.mrb[0].mxu0
    %v5471 = vadd.f32 %v5430, %v5470
    %v5472 = vpop.f32.mrb[0].mxu0
    %v5473 = vpop.f32.mrb[0].mxu0
    %5474 = vdwg.mxu0
    %5475 = vmatprep.subr.bf16.mxu0 %v4802
    %5476 = vmatpush1.bf16.msra.mxu0 %v4801
    %5477 = vmatprep.subr.bf16.mxu0 %v4806
    %5478 = vmatpush1.bf16.msra.mxu0 %v4805
    %5479 = vmatprep.subr.bf16.mxu0 %v4810
    %5480 = vmatpush1.bf16.msra.mxu0 %v4809
    %5481 = vmatprep.subr.bf16.mxu0 %v4814
    %5482 = vmatpush1.bf16.msra.mxu0 %v4813
    %5483 = vmatprep.subr.bf16.mxu0 %v4818
    %5484 = vmatpush1.bf16.msra.mxu0 %v4817
    %5485 = vmatprep.subr.bf16.mxu0 %v4822
    %5486 = vmatpush1.bf16.msra.mxu0 %v4821
    %5487 = vmatprep.subr.bf16.mxu0 %v4826
    %5488 = vmatpush1.bf16.msra.mxu0 %v4825
    %5489 = vmatprep.subr.bf16.mxu0 %v4830
    %5490 = vmatpush1.bf16.msra.mxu0 %v4829
    %5491 = vmatprep.subr.bf16.mxu0 %v4834
    %5492 = vmatpush1.bf16.msra.mxu0 %v4833
    %5493 = vmatprep.subr.bf16.mxu0 %v4838
    %5494 = vmatpush1.bf16.msra.mxu0 %v4837
    %5495 = vmatprep.subr.bf16.mxu0 %v4842
    %5496 = vmatpush1.bf16.msra.mxu0 %v4841
    %5497 = vmatprep.subr.bf16.mxu0 %v4846
    %5498 = vmatpush1.bf16.msra.mxu0 %v4845
    %5499 = vmatprep.subr.bf16.mxu0 %v4850
    %5500 = vmatpush1.bf16.msra.mxu0 %v4849
    %5501 = vmatprep.subr.bf16.mxu0 %v4854
    %5502 = vmatpush1.bf16.msra.mxu0 %v4853
    %5503 = vmatprep.subr.bf16.mxu0 %v4858
    %5504 = vmatpush1.bf16.msra.mxu0 %v4857
    %5505 = vmatprep.subr.bf16.mxu0 %v4862
    %5506 = vmatpush1.bf16.msra.mxu0 %v4861
    %5507 = vmatprep.mubr.bf16.mxu0 %v3766
    %5508 = vmatmul.mubr.bf16.gmra.mrb[0].mxu0 %v3765
    %v5509 = vpop.f32.mrb[0].mxu0
    %v5510 = vadd.f32 0.0, %v5509
    %v5511 = vpop.f32.mrb[0].mxu0
    %v5512 = vadd.f32 0.0, %v5511
    %v5513 = vpop.f32.mrb[0].mxu0
    %v5514 = vpop.f32.mrb[0].mxu0
    %5515 = vdwg.mxu0
    %5516 = vmatprep.subr.bf16.mxu0 %v4866
    %5517 = vmatpush1.bf16.msra.mxu0 %v4865
    %5518 = vmatprep.subr.bf16.mxu0 %v4870
    %5519 = vmatpush1.bf16.msra.mxu0 %v4869
    %5520 = vmatprep.subr.bf16.mxu0 %v4874
    %5521 = vmatpush1.bf16.msra.mxu0 %v4873
    %5522 = vmatprep.subr.bf16.mxu0 %v4878
    %5523 = vmatpush1.bf16.msra.mxu0 %v4877
    %5524 = vmatprep.subr.bf16.mxu0 %v4882
    %5525 = vmatpush1.bf16.msra.mxu0 %v4881
    %5526 = vmatprep.subr.bf16.mxu0 %v4886
    %5527 = vmatpush1.bf16.msra.mxu0 %v4885
    %5528 = vmatprep.subr.bf16.mxu0 %v4890
    %5529 = vmatpush1.bf16.msra.mxu0 %v4889
    %5530 = vmatprep.subr.bf16.mxu0 %v4894
    %5531 = vmatpush1.bf16.msra.mxu0 %v4893
    %5532 = vmatprep.subr.bf16.mxu0 %v4898
    %5533 = vmatpush1.bf16.msra.mxu0 %v4897
    %5534 = vmatprep.subr.bf16.mxu0 %v4902
    %5535 = vmatpush1.bf16.msra.mxu0 %v4901
    %5536 = vmatprep.subr.bf16.mxu0 %v4906
    %5537 = vmatpush1.bf16.msra.mxu0 %v4905
    %5538 = vmatprep.subr.bf16.mxu0 %v4910
    %5539 = vmatpush1.bf16.msra.mxu0 %v4909
    %5540 = vmatprep.subr.bf16.mxu0 %v4914
    %5541 = vmatpush1.bf16.msra.mxu0 %v4913
    %5542 = vmatprep.subr.bf16.mxu0 %v4918
    %5543 = vmatpush1.bf16.msra.mxu0 %v4917
    %5544 = vmatprep.subr.bf16.mxu0 %v4922
    %5545 = vmatpush1.bf16.msra.mxu0 %v4921
    %5546 = vmatprep.subr.bf16.mxu0 %v4926
    %5547 = vmatpush1.bf16.msra.mxu0 %v4925
    %5548 = vmatprep.mubr.bf16.mxu0 %v3768
    %5549 = vmatmul.mubr.bf16.gmra.mrb[0].mxu0 %v3767
    %v5550 = vpop.f32.mrb[0].mxu0
    %v5551 = vadd.f32 %v5510, %v5550
    %v5552 = vpop.f32.mrb[0].mxu0
    %v5553 = vadd.f32 %v5512, %v5552
    %v5554 = vpop.f32.mrb[0].mxu0
    %v5555 = vpop.f32.mrb[0].mxu0
    %5556 = vdwg.mxu0
    %5557 = vmatprep.subr.bf16.mxu0 %v4930
    %5558 = vmatpush1.bf16.msra.mxu0 %v4929
    %5559 = vmatprep.subr.bf16.mxu0 %v4934
    %5560 = vmatpush1.bf16.msra.mxu0 %v4933
    %5561 = vmatprep.subr.bf16.mxu0 %v4938
    %5562 = vmatpush1.bf16.msra.mxu0 %v4937
    %5563 = vmatprep.subr.bf16.mxu0 %v4942
    %5564 = vmatpush1.bf16.msra.mxu0 %v4941
    %5565 = vmatprep.subr.bf16.mxu0 %v4946
    %5566 = vmatpush1.bf16.msra.mxu0 %v4945
    %5567 = vmatprep.subr.bf16.mxu0 %v4950
    %5568 = vmatpush1.bf16.msra.mxu0 %v4949
    %5569 = vmatprep.subr.bf16.mxu0 %v4954
    %5570 = vmatpush1.bf16.msra.mxu0 %v4953
    %5571 = vmatprep.subr.bf16.mxu0 %v4958
    %5572 = vmatpush1.bf16.msra.mxu0 %v4957
    %5573 = vmatprep.subr.bf16.mxu0 %v4962
    %5574 = vmatpush1.bf16.msra.mxu0 %v4961
    %5575 = vmatprep.subr.bf16.mxu0 %v4966
    %5576 = vmatpush1.bf16.msra.mxu0 %v4965
    %5577 = vmatprep.subr.bf16.mxu0 %v4970
    %5578 = vmatpush1.bf16.msra.mxu0 %v4969
    %5579 = vmatprep.subr.bf16.mxu0 %v4974
    %5580 = vmatpush1.bf16.msra.mxu0 %v4973
    %5581 = vmatprep.subr.bf16.mxu0 %v4978
    %5582 = vmatpush1.bf16.msra.mxu0 %v4977
    %5583 = vmatprep.subr.bf16.mxu0 %v4982
    %5584 = vmatpush1.bf16.msra.mxu0 %v4981
    %5585 = vmatprep.subr.bf16.mxu0 %v4986
    %5586 = vmatpush1.bf16.msra.mxu0 %v4985
    %5587 = vmatprep.subr.bf16.mxu0 %v4990
    %5588 = vmatpush1.bf16.msra.mxu0 %v4989
    %5589 = vmatprep.mubr.bf16.mxu0 %v3770
    %5590 = vmatmul.mubr.bf16.gmra.mrb[0].mxu0 %v3769
    %v5591 = vpop.f32.mrb[0].mxu0
    %v5592 = vadd.f32 %v5551, %v5591
    %v5593 = vpop.f32.mrb[0].mxu0
    %v5594 = vadd.f32 %v5553, %v5593
    %v5595 = vpop.f32.mrb[0].mxu0
    %v5596 = vpop.f32.mrb[0].mxu0
    %5597 = vdwg.mxu0
    %5598 = vmatprep.subr.bf16.mxu0 %v4994
    %5599 = vmatpush1.bf16.msra.mxu0 %v4993
    %5600 = vmatprep.subr.bf16.mxu0 %v4998
    %5601 = vmatpush1.bf16.msra.mxu0 %v4997
    %5602 = vmatprep.subr.bf16.mxu0 %v5002
    %5603 = vmatpush1.bf16.msra.mxu0 %v5001
    %5604 = vmatprep.subr.bf16.mxu0 %v5006
    %5605 = vmatpush1.bf16.msra.mxu0 %v5005
    %5606 = vmatprep.subr.bf16.mxu0 %v5010
    %5607 = vmatpush1.bf16.msra.mxu0 %v5009
    %5608 = vmatprep.subr.bf16.mxu0 %v5014
    %5609 = vmatpush1.bf16.msra.mxu0 %v5013
    %5610 = vmatprep.subr.bf16.mxu0 %v5018
    %5611 = vmatpush1.bf16.msra.mxu0 %v5017
    %5612 = vmatprep.subr.bf16.mxu0 %v5022
    %5613 = vmatpush1.bf16.msra.mxu0 %v5021
    %5614 = vmatprep.subr.bf16.mxu0 %v5026
    %5615 = vmatpush1.bf16.msra.mxu0 %v5025
    %5616 = vmatprep.subr.bf16.mxu0 %v5030
    %5617 = vmatpush1.bf16.msra.mxu0 %v5029
    %5618 = vmatprep.subr.bf16.mxu0 %v5034
    %5619 = vmatpush1.bf16.msra.mxu0 %v5033
    %5620 = vmatprep.subr.bf16.mxu0 %v5038
    %5621 = vmatpush1.bf16.msra.mxu0 %v5037
    %5622 = vmatprep.subr.bf16.mxu0 %v5042
    %5623 = vmatpush1.bf16.msra.mxu0 %v5041
    %5624 = vmatprep.subr.bf16.mxu0 %v5046
    %5625 = vmatpush1.bf16.msra.mxu0 %v5045
    %5626 = vmatprep.subr.bf16.mxu0 %v5050
    %5627 = vmatpush1.bf16.msra.mxu0 %v5049
    %5628 = vmatprep.subr.bf16.mxu0 %v5054
    %5629 = vmatpush1.bf16.msra.mxu0 %v5053
    %5630 = vmatprep.mubr.bf16.mxu0 %v3772
    %5631 = vmatmul.mubr.bf16.gmra.mrb[0].mxu0 %v3771
    %v5632 = vpop.f32.mrb[0].mxu0
    %v5633 = vadd.f32 %v5592, %v5632
    %v5634 = vpop.f32.mrb[0].mxu0
    %v5635 = vadd.f32 %v5594, %v5634
    %v5636 = vpop.f32.mrb[0].mxu0
    %v5637 = vpop.f32.mrb[0].mxu0
    %5638 = vdwg.mxu0
    %v5640 = vlaneseq
    %v5641 = vshrl.u32 %v5640, 7
    %v5642 = vsub.s32 0, %v5641
    %v5643 = vrot.slane %v4029, %v5642
    %v5644 = vlaneseq
    %v5645 = vshrl.u32 %v5644, 7
    %v5646 = vsub.s32 1, %v5645
    %v5647 = vrot.slane %v4029, %v5646
    %v5648 = vlaneseq
    %v5649 = vshrl.u32 %v5648, 7
    %v5650 = vsub.s32 2, %v5649
    %v5651 = vrot.slane %v4029, %v5650
    %v5652 = vlaneseq
    %v5653 = vshrl.u32 %v5652, 7
    %v5654 = vsub.s32 3, %v5653
    %v5655 = vrot.slane %v4029, %v5654
    %v5660 = vmul.f32 %v5469, %v5643
    %v5661 = vmul.f32 %v5471, %v5647
    %v5662 = vmul.f32 %v5633, %v5651
    %v5663 = vmul.f32 %v5635, %v5655
    %v5665 = vlaneseq
    %v5666 = vshrl.u32 %v5665, 7
    %v5667 = vsub.s32 0, %v5666
    %v5668 = vrot.slane %v4030, %v5667
    %v5669 = vlaneseq
    %v5670 = vshrl.u32 %v5669, 7
    %v5671 = vsub.s32 1, %v5670
    %v5672 = vrot.slane %v4030, %v5671
    %v5673 = vlaneseq
    %v5674 = vshrl.u32 %v5673, 7
    %v5675 = vsub.s32 2, %v5674
    %v5676 = vrot.slane %v4030, %v5675
    %v5677 = vlaneseq
    %v5678 = vshrl.u32 %v5677, 7
    %v5679 = vsub.s32 3, %v5678
    %v5680 = vrot.slane %v4030, %v5679
    %v5685 = vadd.f32 %v5660, %v5668
    %v5686 = vadd.f32 %v5661, %v5672
    %v5687 = vadd.f32 %v5662, %v5676
    %v5688 = vadd.f32 %v5663, %v5680
    %v5689 = vmax.f32 %v5685, 0.0
    %v5690 = vmax.f32 %v5686, 0.0
    %v5691 = vmax.f32 %v5687, 0.0
    %v5692 = vmax.f32 %v5688, 0.0
    %v5693 = vpack.c.bf16 %v5689, %v5689
    %v5694 = vpack.c.bf16 %v5690, %v5690
    %v5695 = vpack.c.bf16 %v5691, %v5691
    %v5696 = vpack.c.bf16 %v5692, %v5692
    %v5697 = vld [vmem:[#allocation13] sm:$0xff]
    %v5698 = vld [vmem:[#allocation13 + $0x8] sm:$0xff]
    %v5699 = vld [vmem:[#allocation13 + $0x10] sm:$0xff]
    %v5700 = vld [vmem:[#allocation13 + $0x18] sm:$0xff]
    %v5701 = vld [vmem:[#allocation13 + $0x20] sm:$0xff]
    %v5702 = vld [vmem:[#allocation13 + $0x28] sm:$0xff]
    %v5703 = vld [vmem:[#allocation13 + $0x30] sm:$0xff]
    %v5704 = vld [vmem:[#allocation13 + $0x38] sm:$0xff]
    %v5705 = vld [vmem:[#allocation13 + $0x40] sm:$0xff]
    %v5706 = vld [vmem:[#allocation13 + $0x48] sm:$0xff]
    %v5707 = vld [vmem:[#allocation13 + $0x50] sm:$0xff]
    %v5708 = vld [vmem:[#allocation13 + $0x58] sm:$0xff]
    %v5709 = vld [vmem:[#allocation13 + $0x60] sm:$0xff]
    %v5710 = vld [vmem:[#allocation13 + $0x68] sm:$0xff]
    %v5711 = vld [vmem:[#allocation13 + $0x70] sm:$0xff]
    %v5712 = vld [vmem:[#allocation13 + $0x78] sm:$0xff]
    %v5713 = vld [vmem:[#allocation13 + $0x80] sm:$0xff]
    %v5714 = vld [vmem:[#allocation13 + $0x88] sm:$0xff]
    %v5715 = vld [vmem:[#allocation13 + $0x90] sm:$0xff]
    %v5716 = vld [vmem:[#allocation13 + $0x98] sm:$0xff]
    %v5717 = vld [vmem:[#allocation13 + $0xa0] sm:$0xff]
    %v5718 = vld [vmem:[#allocation13 + $0xa8] sm:$0xff]
    %v5719 = vld [vmem:[#allocation13 + $0xb0] sm:$0xff]
    %v5720 = vld [vmem:[#allocation13 + $0xb8] sm:$0xff]
    %v5721 = vld [vmem:[#allocation13 + $0xc0] sm:$0xff]
    %v5722 = vld [vmem:[#allocation13 + $0xc8] sm:$0xff]
    %v5723 = vld [vmem:[#allocation13 + $0xd0] sm:$0xff]
    %v5724 = vld [vmem:[#allocation13 + $0xd8] sm:$0xff]
    %v5725 = vld [vmem:[#allocation13 + $0xe0] sm:$0xff]
    %v5726 = vld [vmem:[#allocation13 + $0xe8] sm:$0xff]
    %v5727 = vld [vmem:[#allocation13 + $0xf0] sm:$0xff]
    %v5728 = vld [vmem:[#allocation13 + $0xf8] sm:$0xff]
    %v5729 = vld [vmem:[#allocation13 + $0x100] sm:$0xff]
    %v5730 = vld [vmem:[#allocation13 + $0x108] sm:$0xff]
    %v5731 = vld [vmem:[#allocation13 + $0x110] sm:$0xff]
    %v5732 = vld [vmem:[#allocation13 + $0x118] sm:$0xff]
    %v5733 = vld [vmem:[#allocation13 + $0x120] sm:$0xff]
    %v5734 = vld [vmem:[#allocation13 + $0x128] sm:$0xff]
    %v5735 = vld [vmem:[#allocation13 + $0x130] sm:$0xff]
    %v5736 = vld [vmem:[#allocation13 + $0x138] sm:$0xff]
    %v5737 = vld [vmem:[#allocation13 + $0x140] sm:$0xff]
    %v5738 = vld [vmem:[#allocation13 + $0x148] sm:$0xff]
    %v5739 = vld [vmem:[#allocation13 + $0x150] sm:$0xff]
    %v5740 = vld [vmem:[#allocation13 + $0x158] sm:$0xff]
    %v5741 = vld [vmem:[#allocation13 + $0x160] sm:$0xff]
    %v5742 = vld [vmem:[#allocation13 + $0x168] sm:$0xff]
    %v5743 = vld [vmem:[#allocation13 + $0x170] sm:$0xff]
    %v5744 = vld [vmem:[#allocation13 + $0x178] sm:$0xff]
    %v5745 = vld [vmem:[#allocation13 + $0x180] sm:$0xff]
    %v5746 = vld [vmem:[#allocation13 + $0x188] sm:$0xff]
    %v5747 = vld [vmem:[#allocation13 + $0x190] sm:$0xff]
    %v5748 = vld [vmem:[#allocation13 + $0x198] sm:$0xff]
    %v5749 = vld [vmem:[#allocation13 + $0x1a0] sm:$0xff]
    %v5750 = vld [vmem:[#allocation13 + $0x1a8] sm:$0xff]
    %v5751 = vld [vmem:[#allocation13 + $0x1b0] sm:$0xff]
    %v5752 = vld [vmem:[#allocation13 + $0x1b8] sm:$0xff]
    %v5753 = vld [vmem:[#allocation13 + $0x1c0] sm:$0xff]
    %v5754 = vld [vmem:[#allocation13 + $0x1c8] sm:$0xff]
    %v5755 = vld [vmem:[#allocation13 + $0x1d0] sm:$0xff]
    %v5756 = vld [vmem:[#allocation13 + $0x1d8] sm:$0xff]
    %v5757 = vld [vmem:[#allocation13 + $0x1e0] sm:$0xff]
    %v5758 = vld [vmem:[#allocation13 + $0x1e8] sm:$0xff]
    %v5759 = vld [vmem:[#allocation13 + $0x1f0] sm:$0xff]
    %v5760 = vld [vmem:[#allocation13 + $0x1f8] sm:$0xff]
    %v5761 = vld [vmem:[#allocation14] sm:$0x3]
    %v5762 = vld [vmem:[#allocation16] sm:$0x3]
    %v5827 = vunpack.c.l.b16 %v5697
    %v5828 = vunpack.c.h.b16 %v5697
    %v5829 = vunpack.c.l.b16 %v5698
    %v5830 = vunpack.c.h.b16 %v5698
    %v5831 = vunpack.c.l.b16 %v5699
    %v5832 = vunpack.c.h.b16 %v5699
    %v5833 = vunpack.c.l.b16 %v5700
    %v5834 = vunpack.c.h.b16 %v5700
    %v5835 = vunpack.c.l.b16 %v5701
    %v5836 = vunpack.c.h.b16 %v5701
    %v5837 = vunpack.c.l.b16 %v5702
    %v5838 = vunpack.c.h.b16 %v5702
    %v5839 = vunpack.c.l.b16 %v5703
    %v5840 = vunpack.c.h.b16 %v5703
    %v5841 = vunpack.c.l.b16 %v5704
    %v5842 = vunpack.c.h.b16 %v5704
    %v5843 = vunpack.c.l.b16 %v5705
    %v5844 = vunpack.c.h.b16 %v5705
    %v5845 = vunpack.c.l.b16 %v5706
    %v5846 = vunpack.c.h.b16 %v5706
    %v5847 = vunpack.c.l.b16 %v5707
    %v5848 = vunpack.c.h.b16 %v5707
    %v5849 = vunpack.c.l.b16 %v5708
    %v5850 = vunpack.c.h.b16 %v5708
    %v5851 = vunpack.c.l.b16 %v5709
    %v5852 = vunpack.c.h.b16 %v5709
    %v5853 = vunpack.c.l.b16 %v5710
    %v5854 = vunpack.c.h.b16 %v5710
    %v5855 = vunpack.c.l.b16 %v5711
    %v5856 = vunpack.c.h.b16 %v5711
    %v5857 = vunpack.c.l.b16 %v5712
    %v5858 = vunpack.c.h.b16 %v5712
    %v5859 = vunpack.c.l.b16 %v5713
    %v5860 = vunpack.c.h.b16 %v5713
    %v5861 = vunpack.c.l.b16 %v5714
    %v5862 = vunpack.c.h.b16 %v5714
    %v5863 = vunpack.c.l.b16 %v5715
    %v5864 = vunpack.c.h.b16 %v5715
    %v5865 = vunpack.c.l.b16 %v5716
    %v5866 = vunpack.c.h.b16 %v5716
    %v5867 = vunpack.c.l.b16 %v5717
    %v5868 = vunpack.c.h.b16 %v5717
    %v5869 = vunpack.c.l.b16 %v5718
    %v5870 = vunpack.c.h.b16 %v5718
    %v5871 = vunpack.c.l.b16 %v5719
    %v5872 = vunpack.c.h.b16 %v5719
    %v5873 = vunpack.c.l.b16 %v5720
    %v5874 = vunpack.c.h.b16 %v5720
    %v5875 = vunpack.c.l.b16 %v5721
    %v5876 = vunpack.c.h.b16 %v5721
    %v5877 = vunpack.c.l.b16 %v5722
    %v5878 = vunpack.c.h.b16 %v5722
    %v5879 = vunpack.c.l.b16 %v5723
    %v5880 = vunpack.c.h.b16 %v5723
    %v5881 = vunpack.c.l.b16 %v5724
    %v5882 = vunpack.c.h.b16 %v5724
    %v5883 = vunpack.c.l.b16 %v5725
    %v5884 = vunpack.c.h.b16 %v5725
    %v5885 = vunpack.c.l.b16 %v5726
    %v5886 = vunpack.c.h.b16 %v5726
    %v5887 = vunpack.c.l.b16 %v5727
    %v5888 = vunpack.c.h.b16 %v5727
    %v5889 = vunpack.c.l.b16 %v5728
    %v5890 = vunpack.c.h.b16 %v5728
    %v5891 = vunpack.c.l.b16 %v5729
    %v5892 = vunpack.c.h.b16 %v5729
    %v5893 = vunpack.c.l.b16 %v5730
    %v5894 = vunpack.c.h.b16 %v5730
    %v5895 = vunpack.c.l.b16 %v5731
    %v5896 = vunpack.c.h.b16 %v5731
    %v5897 = vunpack.c.l.b16 %v5732
    %v5898 = vunpack.c.h.b16 %v5732
    %v5899 = vunpack.c.l.b16 %v5733
    %v5900 = vunpack.c.h.b16 %v5733
    %v5901 = vunpack.c.l.b16 %v5734
    %v5902 = vunpack.c.h.b16 %v5734
    %v5903 = vunpack.c.l.b16 %v5735
    %v5904 = vunpack.c.h.b16 %v5735
    %v5905 = vunpack.c.l.b16 %v5736
    %v5906 = vunpack.c.h.b16 %v5736
    %v5907 = vunpack.c.l.b16 %v5737
    %v5908 = vunpack.c.h.b16 %v5737
    %v5909 = vunpack.c.l.b16 %v5738
    %v5910 = vunpack.c.h.b16 %v5738
    %v5911 = vunpack.c.l.b16 %v5739
    %v5912 = vunpack.c.h.b16 %v5739
    %v5913 = vunpack.c.l.b16 %v5740
    %v5914 = vunpack.c.h.b16 %v5740
    %v5915 = vunpack.c.l.b16 %v5741
    %v5916 = vunpack.c.h.b16 %v5741
    %v5917 = vunpack.c.l.b16 %v5742
    %v5918 = vunpack.c.h.b16 %v5742
    %v5919 = vunpack.c.l.b16 %v5743
    %v5920 = vunpack.c.h.b16 %v5743
    %v5921 = vunpack.c.l.b16 %v5744
    %v5922 = vunpack.c.h.b16 %v5744
    %v5923 = vunpack.c.l.b16 %v5745
    %v5924 = vunpack.c.h.b16 %v5745
    %v5925 = vunpack.c.l.b16 %v5746
    %v5926 = vunpack.c.h.b16 %v5746
    %v5927 = vunpack.c.l.b16 %v5747
    %v5928 = vunpack.c.h.b16 %v5747
    %v5929 = vunpack.c.l.b16 %v5748
    %v5930 = vunpack.c.h.b16 %v5748
    %v5931 = vunpack.c.l.b16 %v5749
    %v5932 = vunpack.c.h.b16 %v5749
    %v5933 = vunpack.c.l.b16 %v5750
    %v5934 = vunpack.c.h.b16 %v5750
    %v5935 = vunpack.c.l.b16 %v5751
    %v5936 = vunpack.c.h.b16 %v5751
    %v5937 = vunpack.c.l.b16 %v5752
    %v5938 = vunpack.c.h.b16 %v5752
    %v5939 = vunpack.c.l.b16 %v5753
    %v5940 = vunpack.c.h.b16 %v5753
    %v5941 = vunpack.c.l.b16 %v5754
    %v5942 = vunpack.c.h.b16 %v5754
    %v5943 = vunpack.c.l.b16 %v5755
    %v5944 = vunpack.c.h.b16 %v5755
    %v5945 = vunpack.c.l.b16 %v5756
    %v5946 = vunpack.c.h.b16 %v5756
    %v5947 = vunpack.c.l.b16 %v5757
    %v5948 = vunpack.c.h.b16 %v5757
    %v5949 = vunpack.c.l.b16 %v5758
    %v5950 = vunpack.c.h.b16 %v5758
    %v5951 = vunpack.c.l.b16 %v5759
    %v5952 = vunpack.c.h.b16 %v5759
    %v5953 = vunpack.c.l.b16 %v5760
    %v5954 = vunpack.c.h.b16 %v5760
    %v5955 = vpack.c.b16 %v5829, %v5827
    %v5956 = vpack.c.b16 %v5830, %v5828
    %v5957 = vpack.c.b16 %v5833, %v5831
    %v5958 = vpack.c.b16 %v5834, %v5832
    %v5959 = vpack.c.b16 %v5837, %v5835
    %v5960 = vpack.c.b16 %v5838, %v5836
    %v5961 = vpack.c.b16 %v5841, %v5839
    %v5962 = vpack.c.b16 %v5842, %v5840
    %v5963 = vpack.c.b16 %v5845, %v5843
    %v5964 = vpack.c.b16 %v5846, %v5844
    %v5965 = vpack.c.b16 %v5849, %v5847
    %v5966 = vpack.c.b16 %v5850, %v5848
    %v5967 = vpack.c.b16 %v5853, %v5851
    %v5968 = vpack.c.b16 %v5854, %v5852
    %v5969 = vpack.c.b16 %v5857, %v5855
    %v5970 = vpack.c.b16 %v5858, %v5856
    %v5971 = vpack.c.b16 %v5861, %v5859
    %v5972 = vpack.c.b16 %v5862, %v5860
    %v5973 = vpack.c.b16 %v5865, %v5863
    %v5974 = vpack.c.b16 %v5866, %v5864
    %v5975 = vpack.c.b16 %v5869, %v5867
    %v5976 = vpack.c.b16 %v5870, %v5868
    %v5977 = vpack.c.b16 %v5873, %v5871
    %v5978 = vpack.c.b16 %v5874, %v5872
    %v5979 = vpack.c.b16 %v5877, %v5875
    %v5980 = vpack.c.b16 %v5878, %v5876
    %v5981 = vpack.c.b16 %v5881, %v5879
    %v5982 = vpack.c.b16 %v5882, %v5880
    %v5983 = vpack.c.b16 %v5885, %v5883
    %v5984 = vpack.c.b16 %v5886, %v5884
    %v5985 = vpack.c.b16 %v5889, %v5887
    %v5986 = vpack.c.b16 %v5890, %v5888
    %v5987 = vpack.c.b16 %v5893, %v5891
    %v5988 = vpack.c.b16 %v5894, %v5892
    %v5989 = vpack.c.b16 %v5897, %v5895
    %v5990 = vpack.c.b16 %v5898, %v5896
    %v5991 = vpack.c.b16 %v5901, %v5899
    %v5992 = vpack.c.b16 %v5902, %v5900
    %v5993 = vpack.c.b16 %v5905, %v5903
    %v5994 = vpack.c.b16 %v5906, %v5904
    %v5995 = vpack.c.b16 %v5909, %v5907
    %v5996 = vpack.c.b16 %v5910, %v5908
    %v5997 = vpack.c.b16 %v5913, %v5911
    %v5998 = vpack.c.b16 %v5914, %v5912
    %v5999 = vpack.c.b16 %v5917, %v5915
    %v6000 = vpack.c.b16 %v5918, %v5916
    %v6001 = vpack.c.b16 %v5921, %v5919
    %v6002 = vpack.c.b16 %v5922, %v5920
    %v6003 = vpack.c.b16 %v5925, %v5923
    %v6004 = vpack.c.b16 %v5926, %v5924
    %v6005 = vpack.c.b16 %v5929, %v5927
    %v6006 = vpack.c.b16 %v5930, %v5928
    %v6007 = vpack.c.b16 %v5933, %v5931
    %v6008 = vpack.c.b16 %v5934, %v5932
    %v6009 = vpack.c.b16 %v5937, %v5935
    %v6010 = vpack.c.b16 %v5938, %v5936
    %v6011 = vpack.c.b16 %v5941, %v5939
    %v6012 = vpack.c.b16 %v5942, %v5940
    %v6013 = vpack.c.b16 %v5945, %v5943
    %v6014 = vpack.c.b16 %v5946, %v5944
    %v6015 = vpack.c.b16 %v5949, %v5947
    %v6016 = vpack.c.b16 %v5950, %v5948
    %v6017 = vpack.c.b16 %v5953, %v5951
    %v6018 = vpack.c.b16 %v5954, %v5952
    %6083 = vmatprep.subr.bf16.mxu0 %v5956
    %6084 = vmatpush1.bf16.msra.mxu0 %v5955
    %6085 = vmatprep.subr.bf16.mxu0 %v5958
    %6086 = vmatpush1.bf16.msra.mxu0 %v5957
    %6087 = vmatprep.subr.bf16.mxu0 %v5960
    %6088 = vmatpush1.bf16.msra.mxu0 %v5959
    %6089 = vmatprep.subr.bf16.mxu0 %v5962
    %6090 = vmatpush1.bf16.msra.mxu0 %v5961
    %6091 = vmatprep.subr.bf16.mxu0 %v5964
    %6092 = vmatpush1.bf16.msra.mxu0 %v5963
    %6093 = vmatprep.subr.bf16.mxu0 %v5966
    %6094 = vmatpush1.bf16.msra.mxu0 %v5965
    %6095 = vmatprep.subr.bf16.mxu0 %v5968
    %6096 = vmatpush1.bf16.msra.mxu0 %v5967
    %6097 = vmatprep.subr.bf16.mxu0 %v5970
    %6098 = vmatpush1.bf16.msra.mxu0 %v5969
    %6099 = vmatprep.subr.bf16.mxu0 %v5972
    %6100 = vmatpush1.bf16.msra.mxu0 %v5971
    %6101 = vmatprep.subr.bf16.mxu0 %v5974
    %6102 = vmatpush1.bf16.msra.mxu0 %v5973
    %6103 = vmatprep.subr.bf16.mxu0 %v5976
    %6104 = vmatpush1.bf16.msra.mxu0 %v5975
    %6105 = vmatprep.subr.bf16.mxu0 %v5978
    %6106 = vmatpush1.bf16.msra.mxu0 %v5977
    %6107 = vmatprep.subr.bf16.mxu0 %v5980
    %6108 = vmatpush1.bf16.msra.mxu0 %v5979
    %6109 = vmatprep.subr.bf16.mxu0 %v5982
    %6110 = vmatpush1.bf16.msra.mxu0 %v5981
    %6111 = vmatprep.subr.bf16.mxu0 %v5984
    %6112 = vmatpush1.bf16.msra.mxu0 %v5983
    %6113 = vmatprep.subr.bf16.mxu0 %v5986
    %6114 = vmatpush1.bf16.msra.mxu0 %v5985
    %6115 = vmatprep.mubr.bf16.mxu0 %v5694
    %6116 = vmatmul.mubr.bf16.gmra.mrb[0].mxu0 %v5693
    %v6117 = vpop.f32.mrb[0].mxu0
    %v6118 = vadd.f32 0.0, %v6117
    %v6119 = vpop.f32.mrb[0].mxu0
    %v6120 = vadd.f32 0.0, %v6119
    %v6121 = vpop.f32.mrb[0].mxu0
    %v6122 = vpop.f32.mrb[0].mxu0
    %6123 = vdwg.mxu0
    %6124 = vmatprep.subr.bf16.mxu0 %v5988
    %6125 = vmatpush1.bf16.msra.mxu0 %v5987
    %6126 = vmatprep.subr.bf16.mxu0 %v5990
    %6127 = vmatpush1.bf16.msra.mxu0 %v5989
    %6128 = vmatprep.subr.bf16.mxu0 %v5992
    %6129 = vmatpush1.bf16.msra.mxu0 %v5991
    %6130 = vmatprep.subr.bf16.mxu0 %v5994
    %6131 = vmatpush1.bf16.msra.mxu0 %v5993
    %6132 = vmatprep.subr.bf16.mxu0 %v5996
    %6133 = vmatpush1.bf16.msra.mxu0 %v5995
    %6134 = vmatprep.subr.bf16.mxu0 %v5998
    %6135 = vmatpush1.bf16.msra.mxu0 %v5997
    %6136 = vmatprep.subr.bf16.mxu0 %v6000
    %6137 = vmatpush1.bf16.msra.mxu0 %v5999
    %6138 = vmatprep.subr.bf16.mxu0 %v6002
    %6139 = vmatpush1.bf16.msra.mxu0 %v6001
    %6140 = vmatprep.subr.bf16.mxu0 %v6004
    %6141 = vmatpush1.bf16.msra.mxu0 %v6003
    %6142 = vmatprep.subr.bf16.mxu0 %v6006
    %6143 = vmatpush1.bf16.msra.mxu0 %v6005
    %6144 = vmatprep.subr.bf16.mxu0 %v6008
    %6145 = vmatpush1.bf16.msra.mxu0 %v6007
    %6146 = vmatprep.subr.bf16.mxu0 %v6010
    %6147 = vmatpush1.bf16.msra.mxu0 %v6009
    %6148 = vmatprep.subr.bf16.mxu0 %v6012
    %6149 = vmatpush1.bf16.msra.mxu0 %v6011
    %6150 = vmatprep.subr.bf16.mxu0 %v6014
    %6151 = vmatpush1.bf16.msra.mxu0 %v6013
    %6152 = vmatprep.subr.bf16.mxu0 %v6016
    %6153 = vmatpush1.bf16.msra.mxu0 %v6015
    %6154 = vmatprep.subr.bf16.mxu0 %v6018
    %6155 = vmatpush1.bf16.msra.mxu0 %v6017
    %6156 = vmatprep.mubr.bf16.mxu0 %v5696
    %6157 = vmatmul.mubr.bf16.gmra.mrb[0].mxu0 %v5695
    %v6158 = vpop.f32.mrb[0].mxu0
    %v6159 = vadd.f32 %v6118, %v6158
    %v6160 = vpop.f32.mrb[0].mxu0
    %v6161 = vadd.f32 %v6120, %v6160
    %v6162 = vpop.f32.mrb[0].mxu0
    %v6163 = vpop.f32.mrb[0].mxu0
    %6164 = vdwg.mxu0
    %v6166 = vlaneseq
    %v6167 = vshrl.u32 %v6166, 7
    %v6168 = vsub.s32 0, %v6167
    %v6169 = vrot.slane %v5761, %v6168
    %v6170 = vlaneseq
    %v6171 = vshrl.u32 %v6170, 7
    %v6172 = vsub.s32 1, %v6171
    %v6173 = vrot.slane %v5761, %v6172
    %v6176 = vmul.f32 %v6159, %v6169
    %v6177 = vmul.f32 %v6161, %v6173
    %v6179 = vlaneseq
    %v6180 = vshrl.u32 %v6179, 7
    %v6181 = vsub.s32 0, %v6180
    %v6182 = vrot.slane %v5762, %v6181
    %v6183 = vlaneseq
    %v6184 = vshrl.u32 %v6183, 7
    %v6185 = vsub.s32 1, %v6184
    %v6186 = vrot.slane %v5762, %v6185
    %v6189 = vadd.f32 %v6176, %v6182
    %v6190 = vadd.f32 %v6177, %v6186
    %v6191 = vmax.f32 %v6189, 0.0
    %v6192 = vmax.f32 %v6190, 0.0
    %v6193 = vpack.c.bf16 %v6191, %v6191
    %v6194 = vpack.c.bf16 %v6192, %v6192
    %v6195 = vld [vmem:[#allocation17] sm:$0xff]
    %v6196 = vld [vmem:[#allocation17 + $0x8] sm:$0xff]
    %v6197 = vld [vmem:[#allocation17 + $0x10] sm:$0xff]
    %v6198 = vld [vmem:[#allocation17 + $0x18] sm:$0xff]
    %v6199 = vld [vmem:[#allocation17 + $0x20] sm:$0xff]
    %v6200 = vld [vmem:[#allocation17 + $0x28] sm:$0xff]
    %v6201 = vld [vmem:[#allocation17 + $0x30] sm:$0xff]
    %v6202 = vld [vmem:[#allocation17 + $0x38] sm:$0xff]
    %v6203 = vld [vmem:[#allocation17 + $0x40] sm:$0xff]
    %v6204 = vld [vmem:[#allocation17 + $0x48] sm:$0xff]
    %v6205 = vld [vmem:[#allocation17 + $0x50] sm:$0xff]
    %v6206 = vld [vmem:[#allocation17 + $0x58] sm:$0xff]
    %v6207 = vld [vmem:[#allocation17 + $0x60] sm:$0xff]
    %v6208 = vld [vmem:[#allocation17 + $0x68] sm:$0xff]
    %v6209 = vld [vmem:[#allocation17 + $0x70] sm:$0xff]
    %v6210 = vld [vmem:[#allocation17 + $0x78] sm:$0xff]
    %v6211 = vld [vmem:[#allocation17 + $0x80] sm:$0xff]
    %v6212 = vld [vmem:[#allocation17 + $0x88] sm:$0xff]
    %v6213 = vld [vmem:[#allocation17 + $0x90] sm:$0xff]
    %v6214 = vld [vmem:[#allocation17 + $0x98] sm:$0xff]
    %v6215 = vld [vmem:[#allocation17 + $0xa0] sm:$0xff]
    %v6216 = vld [vmem:[#allocation17 + $0xa8] sm:$0xff]
    %v6217 = vld [vmem:[#allocation17 + $0xb0] sm:$0xff]
    %v6218 = vld [vmem:[#allocation17 + $0xb8] sm:$0xff]
    %v6219 = vld [vmem:[#allocation17 + $0xc0] sm:$0xff]
    %v6220 = vld [vmem:[#allocation17 + $0xc8] sm:$0xff]
    %v6221 = vld [vmem:[#allocation17 + $0xd0] sm:$0xff]
    %v6222 = vld [vmem:[#allocation17 + $0xd8] sm:$0xff]
    %v6223 = vld [vmem:[#allocation17 + $0xe0] sm:$0xff]
    %v6224 = vld [vmem:[#allocation17 + $0xe8] sm:$0xff]
    %v6225 = vld [vmem:[#allocation17 + $0xf0] sm:$0xff]
    %v6226 = vld [vmem:[#allocation17 + $0xf8] sm:$0xff]
    %v6227 = vld [vmem:[#allocation19] sm:$0x3]
    %v6228 = vld [vmem:[#allocation20] sm:$0x3]
    %v6261 = vunpack.c.l.b16 %v6195
    %v6262 = vunpack.c.h.b16 %v6195
    %v6263 = vunpack.c.l.b16 %v6196
    %v6264 = vunpack.c.h.b16 %v6196
    %v6265 = vunpack.c.l.b16 %v6197
    %v6266 = vunpack.c.h.b16 %v6197
    %v6267 = vunpack.c.l.b16 %v6198
    %v6268 = vunpack.c.h.b16 %v6198
    %v6269 = vunpack.c.l.b16 %v6199
    %v6270 = vunpack.c.h.b16 %v6199
    %v6271 = vunpack.c.l.b16 %v6200
    %v6272 = vunpack.c.h.b16 %v6200
    %v6273 = vunpack.c.l.b16 %v6201
    %v6274 = vunpack.c.h.b16 %v6201
    %v6275 = vunpack.c.l.b16 %v6202
    %v6276 = vunpack.c.h.b16 %v6202
    %v6277 = vunpack.c.l.b16 %v6203
    %v6278 = vunpack.c.h.b16 %v6203
    %v6279 = vunpack.c.l.b16 %v6204
    %v6280 = vunpack.c.h.b16 %v6204
    %v6281 = vunpack.c.l.b16 %v6205
    %v6282 = vunpack.c.h.b16 %v6205
    %v6283 = vunpack.c.l.b16 %v6206
    %v6284 = vunpack.c.h.b16 %v6206
    %v6285 = vunpack.c.l.b16 %v6207
    %v6286 = vunpack.c.h.b16 %v6207
    %v6287 = vunpack.c.l.b16 %v6208
    %v6288 = vunpack.c.h.b16 %v6208
    %v6289 = vunpack.c.l.b16 %v6209
    %v6290 = vunpack.c.h.b16 %v6209
    %v6291 = vunpack.c.l.b16 %v6210
    %v6292 = vunpack.c.h.b16 %v6210
    %v6293 = vunpack.c.l.b16 %v6211
    %v6294 = vunpack.c.h.b16 %v6211
    %v6295 = vunpack.c.l.b16 %v6212
    %v6296 = vunpack.c.h.b16 %v6212
    %v6297 = vunpack.c.l.b16 %v6213
    %v6298 = vunpack.c.h.b16 %v6213
    %v6299 = vunpack.c.l.b16 %v6214
    %v6300 = vunpack.c.h.b16 %v6214
    %v6301 = vunpack.c.l.b16 %v6215
    %v6302 = vunpack.c.h.b16 %v6215
    %v6303 = vunpack.c.l.b16 %v6216
    %v6304 = vunpack.c.h.b16 %v6216
    %v6305 = vunpack.c.l.b16 %v6217
    %v6306 = vunpack.c.h.b16 %v6217
    %v6307 = vunpack.c.l.b16 %v6218
    %v6308 = vunpack.c.h.b16 %v6218
    %v6309 = vunpack.c.l.b16 %v6219
    %v6310 = vunpack.c.h.b16 %v6219
    %v6311 = vunpack.c.l.b16 %v6220
    %v6312 = vunpack.c.h.b16 %v6220
    %v6313 = vunpack.c.l.b16 %v6221
    %v6314 = vunpack.c.h.b16 %v6221
    %v6315 = vunpack.c.l.b16 %v6222
    %v6316 = vunpack.c.h.b16 %v6222
    %v6317 = vunpack.c.l.b16 %v6223
    %v6318 = vunpack.c.h.b16 %v6223
    %v6319 = vunpack.c.l.b16 %v6224
    %v6320 = vunpack.c.h.b16 %v6224
    %v6321 = vunpack.c.l.b16 %v6225
    %v6322 = vunpack.c.h.b16 %v6225
    %v6323 = vunpack.c.l.b16 %v6226
    %v6324 = vunpack.c.h.b16 %v6226
    %v6325 = vpack.c.b16 %v6263, %v6261
    %v6326 = vpack.c.b16 %v6264, %v6262
    %v6327 = vpack.c.b16 %v6267, %v6265
    %v6328 = vpack.c.b16 %v6268, %v6266
    %v6329 = vpack.c.b16 %v6271, %v6269
    %v6330 = vpack.c.b16 %v6272, %v6270
    %v6331 = vpack.c.b16 %v6275, %v6273
    %v6332 = vpack.c.b16 %v6276, %v6274
    %v6333 = vpack.c.b16 %v6279, %v6277
    %v6334 = vpack.c.b16 %v6280, %v6278
    %v6335 = vpack.c.b16 %v6283, %v6281
    %v6336 = vpack.c.b16 %v6284, %v6282
    %v6337 = vpack.c.b16 %v6287, %v6285
    %v6338 = vpack.c.b16 %v6288, %v6286
    %v6339 = vpack.c.b16 %v6291, %v6289
    %v6340 = vpack.c.b16 %v6292, %v6290
    %v6341 = vpack.c.b16 %v6295, %v6293
    %v6342 = vpack.c.b16 %v6296, %v6294
    %v6343 = vpack.c.b16 %v6299, %v6297
    %v6344 = vpack.c.b16 %v6300, %v6298
    %v6345 = vpack.c.b16 %v6303, %v6301
    %v6346 = vpack.c.b16 %v6304, %v6302
    %v6347 = vpack.c.b16 %v6307, %v6305
    %v6348 = vpack.c.b16 %v6308, %v6306
    %v6349 = vpack.c.b16 %v6311, %v6309
    %v6350 = vpack.c.b16 %v6312, %v6310
    %v6351 = vpack.c.b16 %v6315, %v6313
    %v6352 = vpack.c.b16 %v6316, %v6314
    %v6353 = vpack.c.b16 %v6319, %v6317
    %v6354 = vpack.c.b16 %v6320, %v6318
    %v6355 = vpack.c.b16 %v6323, %v6321
    %v6356 = vpack.c.b16 %v6324, %v6322
    %6389 = vmatprep.subr.bf16.mxu0 %v6326
    %6390 = vmatpush1.bf16.msra.mxu0 %v6325
    %6391 = vmatprep.subr.bf16.mxu0 %v6328
    %6392 = vmatpush1.bf16.msra.mxu0 %v6327
    %6393 = vmatprep.subr.bf16.mxu0 %v6330
    %6394 = vmatpush1.bf16.msra.mxu0 %v6329
    %6395 = vmatprep.subr.bf16.mxu0 %v6332
    %6396 = vmatpush1.bf16.msra.mxu0 %v6331
    %6397 = vmatprep.subr.bf16.mxu0 %v6334
    %6398 = vmatpush1.bf16.msra.mxu0 %v6333
    %6399 = vmatprep.subr.bf16.mxu0 %v6336
    %6400 = vmatpush1.bf16.msra.mxu0 %v6335
    %6401 = vmatprep.subr.bf16.mxu0 %v6338
    %6402 = vmatpush1.bf16.msra.mxu0 %v6337
    %6403 = vmatprep.subr.bf16.mxu0 %v6340
    %6404 = vmatpush1.bf16.msra.mxu0 %v6339
    %6405 = vmatprep.subr.bf16.mxu0 %v6342
    %6406 = vmatpush1.bf16.msra.mxu0 %v6341
    %6407 = vmatprep.subr.bf16.mxu0 %v6344
    %6408 = vmatpush1.bf16.msra.mxu0 %v6343
    %6409 = vmatprep.subr.bf16.mxu0 %v6346
    %6410 = vmatpush1.bf16.msra.mxu0 %v6345
    %6411 = vmatprep.subr.bf16.mxu0 %v6348
    %6412 = vmatpush1.bf16.msra.mxu0 %v6347
    %6413 = vmatprep.subr.bf16.mxu0 %v6350
    %6414 = vmatpush1.bf16.msra.mxu0 %v6349
    %6415 = vmatprep.subr.bf16.mxu0 %v6352
    %6416 = vmatpush1.bf16.msra.mxu0 %v6351
    %6417 = vmatprep.subr.bf16.mxu0 %v6354
    %6418 = vmatpush1.bf16.msra.mxu0 %v6353
    %6419 = vmatprep.subr.bf16.mxu0 %v6356
    %6420 = vmatpush1.bf16.msra.mxu0 %v6355
    %6421 = vmatprep.mubr.bf16.mxu0 %v6194
    %6422 = vmatmul.mubr.bf16.gmra.mrb[0].mxu0 %v6193
    %v6423 = vpop.f32.mrb[0].mxu0
    %v6424 = vadd.f32 0.0, %v6423
    %v6425 = vpop.f32.mrb[0].mxu0
    %v6426 = vadd.f32 0.0, %v6425
    %v6427 = vpop.f32.mrb[0].mxu0
    %v6428 = vpop.f32.mrb[0].mxu0
    %6429 = vdwg.mxu0
    %v6431 = vlaneseq
    %v6432 = vshrl.u32 %v6431, 7
    %v6433 = vsub.s32 0, %v6432
    %v6434 = vrot.slane %v6227, %v6433
    %v6435 = vlaneseq
    %v6436 = vshrl.u32 %v6435, 7
    %v6437 = vsub.s32 1, %v6436
    %v6438 = vrot.slane %v6227, %v6437
    %v6441 = vmul.f32 %v6424, %v6434
    %v6442 = vmul.f32 %v6426, %v6438
    %v6444 = vlaneseq
    %v6445 = vshrl.u32 %v6444, 7
    %v6446 = vsub.s32 0, %v6445
    %v6447 = vrot.slane %v6228, %v6446
    %v6448 = vlaneseq
    %v6449 = vshrl.u32 %v6448, 7
    %v6450 = vsub.s32 1, %v6449
    %v6451 = vrot.slane %v6228, %v6450
    %v6454 = vadd.f32 %v6441, %v6447
    %v6455 = vadd.f32 %v6442, %v6451
    %v6456 = vmax.f32 %v6454, 0.0
    %v6457 = vmax.f32 %v6455, 0.0
    %v6458 = vpack.c.bf16 %v6456, %v6456
    %v6459 = vpack.c.bf16 %v6457, %v6457
    %v6460 = vld [vmem:[#allocation22] sm:$0xff]
    %v6461 = vld [vmem:[#allocation22 + $0x8] sm:$0xff]
    %v6462 = vld [vmem:[#allocation22 + $0x10] sm:$0xff]
    %v6463 = vld [vmem:[#allocation22 + $0x18] sm:$0xff]
    %v6464 = vld [vmem:[#allocation22 + $0x20] sm:$0xff]
    %v6465 = vld [vmem:[#allocation22 + $0x28] sm:$0xff]
    %v6466 = vld [vmem:[#allocation22 + $0x30] sm:$0xff]
    %v6467 = vld [vmem:[#allocation22 + $0x38] sm:$0xff]
    %v6468 = vld [vmem:[#allocation22 + $0x40] sm:$0xff]
    %v6469 = vld [vmem:[#allocation22 + $0x48] sm:$0xff]
    %v6470 = vld [vmem:[#allocation22 + $0x50] sm:$0xff]
    %v6471 = vld [vmem:[#allocation22 + $0x58] sm:$0xff]
    %v6472 = vld [vmem:[#allocation22 + $0x60] sm:$0xff]
    %v6473 = vld [vmem:[#allocation22 + $0x68] sm:$0xff]
    %v6474 = vld [vmem:[#allocation22 + $0x70] sm:$0xff]
    %v6475 = vld [vmem:[#allocation22 + $0x78] sm:$0xff]
    %v6476 = vld [vmem:[#allocation22 + $0x80] sm:$0xff]
    %v6477 = vld [vmem:[#allocation22 + $0x88] sm:$0xff]
    %v6478 = vld [vmem:[#allocation22 + $0x90] sm:$0xff]
    %v6479 = vld [vmem:[#allocation22 + $0x98] sm:$0xff]
    %v6480 = vld [vmem:[#allocation22 + $0xa0] sm:$0xff]
    %v6481 = vld [vmem:[#allocation22 + $0xa8] sm:$0xff]
    %v6482 = vld [vmem:[#allocation22 + $0xb0] sm:$0xff]
    %v6483 = vld [vmem:[#allocation22 + $0xb8] sm:$0xff]
    %v6484 = vld [vmem:[#allocation22 + $0xc0] sm:$0xff]
    %v6485 = vld [vmem:[#allocation22 + $0xc8] sm:$0xff]
    %v6486 = vld [vmem:[#allocation22 + $0xd0] sm:$0xff]
    %v6487 = vld [vmem:[#allocation22 + $0xd8] sm:$0xff]
    %v6488 = vld [vmem:[#allocation22 + $0xe0] sm:$0xff]
    %v6489 = vld [vmem:[#allocation22 + $0xe8] sm:$0xff]
    %v6490 = vld [vmem:[#allocation22 + $0xf0] sm:$0xff]
    %v6491 = vld [vmem:[#allocation22 + $0xf8] sm:$0xff]
    %v6492 = vld [vmem:[#allocation23] sm:$0x3]
    %v6493 = vld [vmem:[#allocation25] sm:$0x3]
    %v6526 = vunpack.c.l.b16 %v6460
    %v6527 = vunpack.c.h.b16 %v6460
    %v6528 = vunpack.c.l.b16 %v6461
    %v6529 = vunpack.c.h.b16 %v6461
    %v6530 = vunpack.c.l.b16 %v6462
    %v6531 = vunpack.c.h.b16 %v6462
    %v6532 = vunpack.c.l.b16 %v6463
    %v6533 = vunpack.c.h.b16 %v6463
    %v6534 = vunpack.c.l.b16 %v6464
    %v6535 = vunpack.c.h.b16 %v6464
    %v6536 = vunpack.c.l.b16 %v6465
    %v6537 = vunpack.c.h.b16 %v6465
    %v6538 = vunpack.c.l.b16 %v6466
    %v6539 = vunpack.c.h.b16 %v6466
    %v6540 = vunpack.c.l.b16 %v6467
    %v6541 = vunpack.c.h.b16 %v6467
    %v6542 = vunpack.c.l.b16 %v6468
    %v6543 = vunpack.c.h.b16 %v6468
    %v6544 = vunpack.c.l.b16 %v6469
    %v6545 = vunpack.c.h.b16 %v6469
    %v6546 = vunpack.c.l.b16 %v6470
    %v6547 = vunpack.c.h.b16 %v6470
    %v6548 = vunpack.c.l.b16 %v6471
    %v6549 = vunpack.c.h.b16 %v6471
    %v6550 = vunpack.c.l.b16 %v6472
    %v6551 = vunpack.c.h.b16 %v6472
    %v6552 = vunpack.c.l.b16 %v6473
    %v6553 = vunpack.c.h.b16 %v6473
    %v6554 = vunpack.c.l.b16 %v6474
    %v6555 = vunpack.c.h.b16 %v6474
    %v6556 = vunpack.c.l.b16 %v6475
    %v6557 = vunpack.c.h.b16 %v6475
    %v6558 = vunpack.c.l.b16 %v6476
    %v6559 = vunpack.c.h.b16 %v6476
    %v6560 = vunpack.c.l.b16 %v6477
    %v6561 = vunpack.c.h.b16 %v6477
    %v6562 = vunpack.c.l.b16 %v6478
    %v6563 = vunpack.c.h.b16 %v6478
    %v6564 = vunpack.c.l.b16 %v6479
    %v6565 = vunpack.c.h.b16 %v6479
    %v6566 = vunpack.c.l.b16 %v6480
    %v6567 = vunpack.c.h.b16 %v6480
    %v6568 = vunpack.c.l.b16 %v6481
    %v6569 = vunpack.c.h.b16 %v6481
    %v6570 = vunpack.c.l.b16 %v6482
    %v6571 = vunpack.c.h.b16 %v6482
    %v6572 = vunpack.c.l.b16 %v6483
    %v6573 = vunpack.c.h.b16 %v6483
    %v6574 = vunpack.c.l.b16 %v6484
    %v6575 = vunpack.c.h.b16 %v6484
    %v6576 = vunpack.c.l.b16 %v6485
    %v6577 = vunpack.c.h.b16 %v6485
    %v6578 = vunpack.c.l.b16 %v6486
    %v6579 = vunpack.c.h.b16 %v6486
    %v6580 = vunpack.c.l.b16 %v6487
    %v6581 = vunpack.c.h.b16 %v6487
    %v6582 = vunpack.c.l.b16 %v6488
    %v6583 = vunpack.c.h.b16 %v6488
    %v6584 = vunpack.c.l.b16 %v6489
    %v6585 = vunpack.c.h.b16 %v6489
    %v6586 = vunpack.c.l.b16 %v6490
    %v6587 = vunpack.c.h.b16 %v6490
    %v6588 = vunpack.c.l.b16 %v6491
    %v6589 = vunpack.c.h.b16 %v6491
    %v6590 = vpack.c.b16 %v6528, %v6526
    %v6591 = vpack.c.b16 %v6529, %v6527
    %v6592 = vpack.c.b16 %v6532, %v6530
    %v6593 = vpack.c.b16 %v6533, %v6531
    %v6594 = vpack.c.b16 %v6536, %v6534
    %v6595 = vpack.c.b16 %v6537, %v6535
    %v6596 = vpack.c.b16 %v6540, %v6538
    %v6597 = vpack.c.b16 %v6541, %v6539
    %v6598 = vpack.c.b16 %v6544, %v6542
    %v6599 = vpack.c.b16 %v6545, %v6543
    %v6600 = vpack.c.b16 %v6548, %v6546
    %v6601 = vpack.c.b16 %v6549, %v6547
    %v6602 = vpack.c.b16 %v6552, %v6550
    %v6603 = vpack.c.b16 %v6553, %v6551
    %v6604 = vpack.c.b16 %v6556, %v6554
    %v6605 = vpack.c.b16 %v6557, %v6555
    %v6606 = vpack.c.b16 %v6560, %v6558
    %v6607 = vpack.c.b16 %v6561, %v6559
    %v6608 = vpack.c.b16 %v6564, %v6562
    %v6609 = vpack.c.b16 %v6565, %v6563
    %v6610 = vpack.c.b16 %v6568, %v6566
    %v6611 = vpack.c.b16 %v6569, %v6567
    %v6612 = vpack.c.b16 %v6572, %v6570
    %v6613 = vpack.c.b16 %v6573, %v6571
    %v6614 = vpack.c.b16 %v6576, %v6574
    %v6615 = vpack.c.b16 %v6577, %v6575
    %v6616 = vpack.c.b16 %v6580, %v6578
    %v6617 = vpack.c.b16 %v6581, %v6579
    %v6618 = vpack.c.b16 %v6584, %v6582
    %v6619 = vpack.c.b16 %v6585, %v6583
    %v6620 = vpack.c.b16 %v6588, %v6586
    %v6621 = vpack.c.b16 %v6589, %v6587
    %6654 = vmatprep.subr.bf16.mxu0 %v6591
    %6655 = vmatpush1.bf16.msra.mxu0 %v6590
    %6656 = vmatprep.subr.bf16.mxu0 %v6593
    %6657 = vmatpush1.bf16.msra.mxu0 %v6592
    %6658 = vmatprep.subr.bf16.mxu0 %v6595
    %6659 = vmatpush1.bf16.msra.mxu0 %v6594
    %6660 = vmatprep.subr.bf16.mxu0 %v6597
    %6661 = vmatpush1.bf16.msra.mxu0 %v6596
    %6662 = vmatprep.subr.bf16.mxu0 %v6599
    %6663 = vmatpush1.bf16.msra.mxu0 %v6598
    %6664 = vmatprep.subr.bf16.mxu0 %v6601
    %6665 = vmatpush1.bf16.msra.mxu0 %v6600
    %6666 = vmatprep.subr.bf16.mxu0 %v6603
    %6667 = vmatpush1.bf16.msra.mxu0 %v6602
    %6668 = vmatprep.subr.bf16.mxu0 %v6605
    %6669 = vmatpush1.bf16.msra.mxu0 %v6604
    %6670 = vmatprep.subr.bf16.mxu0 %v6607
    %6671 = vmatpush1.bf16.msra.mxu0 %v6606
    %6672 = vmatprep.subr.bf16.mxu0 %v6609
    %6673 = vmatpush1.bf16.msra.mxu0 %v6608
    %6674 = vmatprep.subr.bf16.mxu0 %v6611
    %6675 = vmatpush1.bf16.msra.mxu0 %v6610
    %6676 = vmatprep.subr.bf16.mxu0 %v6613
    %6677 = vmatpush1.bf16.msra.mxu0 %v6612
    %6678 = vmatprep.subr.bf16.mxu0 %v6615
    %6679 = vmatpush1.bf16.msra.mxu0 %v6614
    %6680 = vmatprep.subr.bf16.mxu0 %v6617
    %6681 = vmatpush1.bf16.msra.mxu0 %v6616
    %6682 = vmatprep.subr.bf16.mxu0 %v6619
    %6683 = vmatpush1.bf16.msra.mxu0 %v6618
    %6684 = vmatprep.subr.bf16.mxu0 %v6621
    %6685 = vmatpush1.bf16.msra.mxu0 %v6620
    %6686 = vmatprep.mubr.bf16.mxu0 %v6459
    %6687 = vmatmul.mubr.bf16.gmra.mrb[0].mxu0 %v6458
    %v6688 = vpop.f32.mrb[0].mxu0
    %v6689 = vadd.f32 0.0, %v6688
    %v6690 = vpop.f32.mrb[0].mxu0
    %v6691 = vadd.f32 0.0, %v6690
    %v6692 = vpop.f32.mrb[0].mxu0
    %v6693 = vpop.f32.mrb[0].mxu0
    %6694 = vdwg.mxu0
    %v6696 = vlaneseq
    %v6697 = vshrl.u32 %v6696, 7
    %v6698 = vsub.s32 0, %v6697
    %v6699 = vrot.slane %v6492, %v6698
    %v6700 = vlaneseq
    %v6701 = vshrl.u32 %v6700, 7
    %v6702 = vsub.s32 1, %v6701
    %v6703 = vrot.slane %v6492, %v6702
    %v6706 = vmul.f32 %v6689, %v6699
    %v6707 = vmul.f32 %v6691, %v6703
    %v6709 = vlaneseq
    %v6710 = vshrl.u32 %v6709, 7
    %v6711 = vsub.s32 0, %v6710
    %v6712 = vrot.slane %v6493, %v6711
    %v6713 = vlaneseq
    %v6714 = vshrl.u32 %v6713, 7
    %v6715 = vsub.s32 1, %v6714
    %v6716 = vrot.slane %v6493, %v6715
    %v6719 = vadd.f32 %v6706, %v6712
    %v6720 = vadd.f32 %v6707, %v6716
    %v6721 = vmax.f32 %v6719, 0.0
    %v6722 = vmax.f32 %v6720, 0.0
    %v6723 = vpack.c.bf16 %v6721, %v6721
    %v6724 = vpack.c.bf16 %v6722, %v6722
    %v6725 = vld [vmem:[#allocation26] sm:$0xf]
    %v6726 = vld [vmem:[#allocation26 + $0x4] sm:$0xf]
    %v6727 = vld [vmem:[#allocation26 + $0x8] sm:$0xf]
    %v6728 = vld [vmem:[#allocation26 + $0xc] sm:$0xf]
    %v6729 = vld [vmem:[#allocation26 + $0x10] sm:$0xf]
    %v6730 = vld [vmem:[#allocation26 + $0x14] sm:$0xf]
    %v6731 = vld [vmem:[#allocation26 + $0x18] sm:$0xf]
    %v6732 = vld [vmem:[#allocation26 + $0x1c] sm:$0xf]
    %v6733 = vld [vmem:[#allocation26 + $0x20] sm:$0xf]
    %v6734 = vld [vmem:[#allocation26 + $0x24] sm:$0xf]
    %v6735 = vld [vmem:[#allocation26 + $0x28] sm:$0xf]
    %v6736 = vld [vmem:[#allocation26 + $0x2c] sm:$0xf]
    %v6737 = vld [vmem:[#allocation26 + $0x30] sm:$0xf]
    %v6738 = vld [vmem:[#allocation26 + $0x34] sm:$0xf]
    %v6739 = vld [vmem:[#allocation26 + $0x38] sm:$0xf]
    %v6740 = vld [vmem:[#allocation26 + $0x3c] sm:$0xf]
    %v6741 = vld [vmem:[#allocation26 + $0x40] sm:$0xf]
    %v6742 = vld [vmem:[#allocation26 + $0x44] sm:$0xf]
    %v6743 = vld [vmem:[#allocation26 + $0x48] sm:$0xf]
    %v6744 = vld [vmem:[#allocation26 + $0x4c] sm:$0xf]
    %v6745 = vld [vmem:[#allocation26 + $0x50] sm:$0xf]
    %v6746 = vld [vmem:[#allocation26 + $0x54] sm:$0xf]
    %v6747 = vld [vmem:[#allocation26 + $0x58] sm:$0xf]
    %v6748 = vld [vmem:[#allocation26 + $0x5c] sm:$0xf]
    %v6749 = vld [vmem:[#allocation26 + $0x60] sm:$0xf]
    %v6750 = vld [vmem:[#allocation26 + $0x64] sm:$0xf]
    %v6751 = vld [vmem:[#allocation26 + $0x68] sm:$0xf]
    %v6752 = vld [vmem:[#allocation26 + $0x6c] sm:$0xf]
    %v6753 = vld [vmem:[#allocation26 + $0x70] sm:$0xf]
    %v6754 = vld [vmem:[#allocation26 + $0x74] sm:$0xf]
    %v6755 = vld [vmem:[#allocation26 + $0x78] sm:$0xf]
    %v6756 = vld [vmem:[#allocation26 + $0x7c] sm:$0xf]
    %v6757 = vld [vmem:[#allocation28] sm:$0x1]
    %v6758 = vld [vmem:[#allocation29] sm:$0x1]
    %v6791 = vunpack.c.l.b16 %v6725
    %v6792 = vunpack.c.l.b16 %v6726
    %v6793 = vunpack.c.l.b16 %v6727
    %v6794 = vunpack.c.l.b16 %v6728
    %v6795 = vunpack.c.l.b16 %v6729
    %v6796 = vunpack.c.l.b16 %v6730
    %v6797 = vunpack.c.l.b16 %v6731
    %v6798 = vunpack.c.l.b16 %v6732
    %v6799 = vunpack.c.l.b16 %v6733
    %v6800 = vunpack.c.l.b16 %v6734
    %v6801 = vunpack.c.l.b16 %v6735
    %v6802 = vunpack.c.l.b16 %v6736
    %v6803 = vunpack.c.l.b16 %v6737
    %v6804 = vunpack.c.l.b16 %v6738
    %v6805 = vunpack.c.l.b16 %v6739
    %v6806 = vunpack.c.l.b16 %v6740
    %v6807 = vunpack.c.l.b16 %v6741
    %v6808 = vunpack.c.l.b16 %v6742
    %v6809 = vunpack.c.l.b16 %v6743
    %v6810 = vunpack.c.l.b16 %v6744
    %v6811 = vunpack.c.l.b16 %v6745
    %v6812 = vunpack.c.l.b16 %v6746
    %v6813 = vunpack.c.l.b16 %v6747
    %v6814 = vunpack.c.l.b16 %v6748
    %v6815 = vunpack.c.l.b16 %v6749
    %v6816 = vunpack.c.l.b16 %v6750
    %v6817 = vunpack.c.l.b16 %v6751
    %v6818 = vunpack.c.l.b16 %v6752
    %v6819 = vunpack.c.l.b16 %v6753
    %v6820 = vunpack.c.l.b16 %v6754
    %v6821 = vunpack.c.l.b16 %v6755
    %v6822 = vunpack.c.l.b16 %v6756
    %v6823 = vpack.c.b16 %v6792, %v6791
    %v6824 = vpack.c.b16 %v6794, %v6793
    %v6825 = vpack.c.b16 %v6796, %v6795
    %v6826 = vpack.c.b16 %v6798, %v6797
    %v6827 = vpack.c.b16 %v6800, %v6799
    %v6828 = vpack.c.b16 %v6802, %v6801
    %v6829 = vpack.c.b16 %v6804, %v6803
    %v6830 = vpack.c.b16 %v6806, %v6805
    %v6831 = vpack.c.b16 %v6808, %v6807
    %v6832 = vpack.c.b16 %v6810, %v6809
    %v6833 = vpack.c.b16 %v6812, %v6811
    %v6834 = vpack.c.b16 %v6814, %v6813
    %v6835 = vpack.c.b16 %v6816, %v6815
    %v6836 = vpack.c.b16 %v6818, %v6817
    %v6837 = vpack.c.b16 %v6820, %v6819
    %v6838 = vpack.c.b16 %v6822, %v6821
    %6855 = vmatprep.subr.bf16.mxu0 0
    %6856 = vmatpush1.bf16.msra.mxu0 %v6823
    %6857 = vmatprep.subr.bf16.mxu0 0
    %6858 = vmatpush1.bf16.msra.mxu0 %v6824
    %6859 = vmatprep.subr.bf16.mxu0 0
    %6860 = vmatpush1.bf16.msra.mxu0 %v6825
    %6861 = vmatprep.subr.bf16.mxu0 0
    %6862 = vmatpush1.bf16.msra.mxu0 %v6826
    %6863 = vmatprep.subr.bf16.mxu0 0
    %6864 = vmatpush1.bf16.msra.mxu0 %v6827
    %6865 = vmatprep.subr.bf16.mxu0 0
    %6866 = vmatpush1.bf16.msra.mxu0 %v6828
    %6867 = vmatprep.subr.bf16.mxu0 0
    %6868 = vmatpush1.bf16.msra.mxu0 %v6829
    %6869 = vmatprep.subr.bf16.mxu0 0
    %6870 = vmatpush1.bf16.msra.mxu0 %v6830
    %6871 = vmatprep.subr.bf16.mxu0 0
    %6872 = vmatpush1.bf16.msra.mxu0 %v6831
    %6873 = vmatprep.subr.bf16.mxu0 0
    %6874 = vmatpush1.bf16.msra.mxu0 %v6832
    %6875 = vmatprep.subr.bf16.mxu0 0
    %6876 = vmatpush1.bf16.msra.mxu0 %v6833
    %6877 = vmatprep.subr.bf16.mxu0 0
    %6878 = vmatpush1.bf16.msra.mxu0 %v6834
    %6879 = vmatprep.subr.bf16.mxu0 0
    %6880 = vmatpush1.bf16.msra.mxu0 %v6835
    %6881 = vmatprep.subr.bf16.mxu0 0
    %6882 = vmatpush1.bf16.msra.mxu0 %v6836
    %6883 = vmatprep.subr.bf16.mxu0 0
    %6884 = vmatpush1.bf16.msra.mxu0 %v6837
    %6885 = vmatprep.subr.bf16.mxu0 0
    %6886 = vmatpush1.bf16.msra.mxu0 %v6838
    %6887 = vmatprep.mubr.bf16.mxu0 %v6724
    %6888 = vmatmul.mubr.bf16.gmra.mrb[0].mxu0 %v6723
    %v6889 = vpop.f32.mrb[0].mxu0
    %v6890 = vadd.f32 0.0, %v6889
    %v6891 = vpop.f32.mrb[0].mxu0
    %v6892 = vpop.f32.mrb[0].mxu0
    %v6893 = vpop.f32.mrb[0].mxu0
    %6894 = vdwg.mxu0
    %v6896 = vlaneseq
    %v6897 = vshrl.u32 %v6896, 7
    %v6898 = vsub.s32 0, %v6897
    %v6899 = vrot.slane %v6757, %v6898
    %v6901 = vmul.f32 %v6890, %v6899
    %v6903 = vlaneseq
    %v6904 = vshrl.u32 %v6903, 7
    %v6905 = vsub.s32 0, %v6904
    %v6906 = vrot.slane %v6758, %v6905
    %v6908 = vadd.f32 %v6901, %v6906
    %6909 = vst [vmem:[#allocation31] sm:$0xff] %v6908
    // Predicated region
    $region150: #{discriminator_forward.1} parent=1 // pred_check
      _
    $region151: #{discriminator_forward.1} parent=1 // pred_check_branch
      %6911 = sbr.rel (0) target = $region153
    $region152: #{discriminator_forward.1} parent=1 // pred_region
      %s6913 = ssub.s32 128, 128
      %6914 = vsyncadd [#allocation4], %s6913
      %s6916 = sshll.u32 [#allocation31], 4
      %s6917 = int_to_ptr.vmem [resolvable:$true] %s6916
      %6919 = dma.vmem_to_hbm [thread:$0]  %s6917, 128, %s19, [#allocation4]
    $region153: #{discriminator_forward.1} parent=1 // pred_fallthru
      _
    // Predicated region
    $region154: #{discriminator_forward.1} parent=1 // pred_check
      _
    $region155: #{discriminator_forward.1} parent=1 // pred_check_branch
      %6921 = sbr.rel (0) target = $region157
    $region156: #{discriminator_forward.1} parent=1 // pred_region
      %6922 = dma.done [#allocation4], 128
    $region157: #{discriminator_forward.1} parent=1 // pred_fallthru
      _
    %6923 = vsyncpa [#allocation3], 1
    %6924 = vsyncpa [#allocation6], 1
    %6925 = vsyncpa [#allocation9], 1
    %6926 = vsyncpa [#allocation12], 1
    %6927 = vsyncpa [#allocation15], 1
    %6928 = vsyncpa [#allocation18], 1
    %6929 = vsyncpa [#allocation21], 1
    %6930 = vsyncpa [#allocation24], 1
    %6931 = vsyncpa [#allocation27], 1
    %6932 = vsyncpa [#allocation30], 1
    %6933 = vsyncpa [#allocation4], 1

</llo_original>
